<compile_context>
chip_gen: v6e
topology: v6e:2x2x1
jax: 0.10.0
libtpu: 0.0.40
codegen_flags: <defaults>
</compile_context>

<pallas_src>
import functools

import numpy as np
import jax
import jax.numpy as jnp
from jax.experimental import pallas as pl
from jax.experimental.pallas import tpu as pltpu

_PREC = jax.lax.Precision.HIGHEST      # f32-exact matmuls for the DFT / reference

LAYER_TILE_CAP = 8192                  # flattened-spatial tile cap for layer kernels
TAIL_TILE_CAP = 4096                   # smaller for fc-tail (H=128 intermediate)


# ----------------------------------------------------------------------------
# tiling / VMEM helpers
# ----------------------------------------------------------------------------

def _round_up(x, m):
    return ((x + m - 1) // m) * m


def _spatial_tile(S, cap):
    """Tile size along the flattened-spatial (lane) axis; cap is a multiple of 128."""
    if S <= cap:
        return S            # block == full dim is always a legal block shape
    return cap              # tail tile is clipped/masked


@functools.lru_cache(maxsize=None)
def _vmem_limit_bytes():
    """~half the generation's physical VMEM (64 MiB v5e/v6e, 32 MiB v7x)."""
    try:
        return int(min(pltpu.get_tpu_info().vmem_capacity_bytes // 2, 64 * 1024 * 1024))
    except Exception:
        return 32 * 1024 * 1024


def _mosaic_params(*semantics):
    return pltpu.CompilerParams(dimension_semantics=semantics,
                                vmem_limit_bytes=_vmem_limit_bytes())


def _choose_mode_tile(M, cin, cout):
    """Mode-axis tile for the spectral cmul kernel (VMEM + vreg budgeted)."""
    budget = min(8 * 1024 * 1024, _vmem_limit_bytes() // 4)
    # weight-block VMEM: re/im (2) x double-buffer (2) x cin x cout x tM x 4 B
    vmem_cap = budget // (16 * cin * cout)
    # vreg pressure: 2 accumulators + 2 weight rows, each (cout, tM) f32, <= ~48 vregs
    vreg_cap = (48 * 4096) // (16 * cout)
    t = min(2048, vmem_cap, vreg_cap, _round_up(M, 128))
    return max(128, (t // 128) * 128)


# ----------------------------------------------------------------------------
# fc0: channels-first linear  (Cout,Cin) @ (Cin, tS) -> lane-dense output
# ----------------------------------------------------------------------------

def _linear_cf_kernel(x_ref, w_ref, b_ref, o_ref):
    y = jnp.dot(w_ref[...], x_ref[...], preferred_element_type=jnp.float32)
    o_ref[...] = y + b_ref[...]


def pallas_linear_cf(x, w, b):
    """x: (B, Cin, S), w: (Cout, Cin), b: (Cout,) -> (B, Cout, S)."""
    B, Cin, S = x.shape
    Cout = w.shape[0]
    tS = _spatial_tile(S, LAYER_TILE_CAP)
    ST = pl.cdiv(S, tS)
    return pl.pallas_call(
        _linear_cf_kernel,
        out_shape=jax.ShapeDtypeStruct((B, Cout, S), jnp.float32),
        grid=(B, ST),
        in_specs=[
            pl.BlockSpec((None, Cin, tS), lambda b_, s: (b_, 0, s)),
            pl.BlockSpec((Cout, Cin), lambda b_, s: (0, 0)),      # resident
            pl.BlockSpec((Cout, 1), lambda b_, s: (0, 0)),
        ],
        out_specs=pl.BlockSpec((None, Cout, tS), lambda b_, s: (b_, 0, s)),
        compiler_params=_mosaic_params("parallel", "parallel"),
    )(x, w, b.reshape(Cout, 1))


# ----------------------------------------------------------------------------
# Fourier-layer kernel A: s = W@h + b + x1, plus per-(b, tile) BN partial stats
# ----------------------------------------------------------------------------

def _conv_add_stats_kernel(h_ref, x1_ref, w_ref, b_ref, s_ref, stats_ref,
                           *, s_total, t_s):
    s_idx = pl.program_id(1)
    s = jnp.dot(w_ref[...], h_ref[...], preferred_element_type=jnp.float32)
    s = s + b_ref[...] + x1_ref[...]
    s_ref[...] = s

    def _stats(vals):
        stats_ref[...] = jnp.concatenate(
            [jnp.sum(vals, axis=1, keepdims=True),
             jnp.sum(vals * vals, axis=1, keepdims=True)], axis=1)

    if s_total % t_s == 0:
        _stats(s)                       # no tail -> no masking anywhere
    else:
        last = pl.num_programs(1) - 1

        @pl.when(s_idx == last)         # only the ragged tail tile pays for the mask
        def _():
            lane = jax.lax.broadcasted_iota(jnp.int32, s.shape, 1)
            valid = s_total - s_idx * t_s
            _stats(jnp.where(lane < valid, s, 0.0))

        @pl.when(s_idx != last)
        def _():
            _stats(s)


def pallas_conv1x1_add_stats(h, x1, w, b):
    """h, x1: (B, C, S) -> (s, stats);  s = w@h + b + x1, stats: (B, ST, C, 2)."""
    B, C, S = h.shape
    tS = _spatial_tile(S, LAYER_TILE_CAP)
    ST = pl.cdiv(S, tS)
    act = pl.BlockSpec((None, C, tS), lambda b_, s: (b_, 0, s))
    return pl.pallas_call(
        functools.partial(_conv_add_stats_kernel, s_total=S, t_s=tS),
        out_shape=(jax.ShapeDtypeStruct((B, C, S), jnp.float32),
                   jax.ShapeDtypeStruct((B, ST, C, 2), jnp.float32)),
        grid=(B, ST),
        in_specs=[
            act,                                                   # h
            act,                                                   # x1 (spectral)
            pl.BlockSpec((C, C), lambda b_, s: (0, 0)),            # W (resident)
            pl.BlockSpec((C, 1), lambda b_, s: (0, 0)),            # bias
        ],
        out_specs=(act,
                   pl.BlockSpec((None, None, C, 2), lambda b_, s: (b_, s, 0, 0))),
        compiler_params=_mosaic_params("parallel", "parallel"),
    )(h, x1, w, b.reshape(C, 1))


# ----------------------------------------------------------------------------
# Fourier-layer kernel B: in-place per-channel affine (folded BN) + ReLU
# ----------------------------------------------------------------------------

def _bn_relu_kernel(s_ref, scale_ref, shift_ref, o_ref, *, apply_relu):
    y = s_ref[...] * scale_ref[...] + shift_ref[...]
    if apply_relu:
        y = jnp.maximum(y, 0.0)
    o_ref[...] = y


def pallas_bn_relu(s, scale, shift, apply_relu):
    B, C, S = s.shape
    tS = _spatial_tile(S, LAYER_TILE_CAP)
    ST = pl.cdiv(S, tS)
    act = pl.BlockSpec((None, C, tS), lambda b_, t: (b_, 0, t))
    return pl.pallas_call(
        functools.partial(_bn_relu_kernel, apply_relu=apply_relu),
        out_shape=jax.ShapeDtypeStruct((B, C, S), jnp.float32),
        grid=(B, ST),
        in_specs=[act,
                  pl.BlockSpec((C, 1), lambda b_, t: (0, 0)),
                  pl.BlockSpec((C, 1), lambda b_, t: (0, 0))],
        out_specs=act,
        input_output_aliases={0: 0},        # normalize s in place
        compiler_params=_mosaic_params("parallel", "parallel"),
    )(s, scale.reshape(C, 1), shift.reshape(C, 1))


def fused_layer(h, x1, w, b, gamma, beta, apply_relu, eps=1e-5):
    """relu(bn(w@h + b + x1)) with exact training-mode batch statistics."""
    B, C, S = h.shape
    s, stats = pallas_conv1x1_add_stats(h, x1, w, b)
    tot = jnp.sum(stats, axis=(0, 1))                    # (C, 2) - tiny XLA reduce
    count = float(B * S)
    mean = tot[:, 0] / count
    var = tot[:, 1] / count - mean * mean                # biased variance (PyTorch BN)
    inv = jax.lax.rsqrt(var + eps)
    scale = gamma * inv
    shift = beta - mean * scale
    return pallas_bn_relu(s, scale, shift, apply_relu)


# ----------------------------------------------------------------------------
# spectral complex channel mixing (4 corners in one call, lane axis = modes)
# ----------------------------------------------------------------------------

def _cmul_kernel(xr_ref, xi_ref, wr_ref, wi_ref, or_ref, oi_ref, *, cin):
    # out[o, m] = sum_i x[i, m] * w[i, o, m]   (complex, via real/imag parts)
    # Statically unrolled over Cin: only two (Cout, tM) accumulators + two weight
    # rows are live at a time (no materialized (Cin, Cout, tM) products / spills).
    acc_r = jnp.zeros(or_ref.shape, jnp.float32)
    acc_i = jnp.zeros(oi_ref.shape, jnp.float32)
    for i in range(cin):
        xr = xr_ref[i]            # (tM,)  lane vector, sublane-broadcast below
        xi = xi_ref[i]
        wr = wr_ref[i]            # (Cout, tM)
        wi = wi_ref[i]
        acc_r = acc_r + xr * wr - xi * wi
        acc_i = acc_i + xi * wr + xr * wi
    or_ref[...] = acc_r
    oi_ref[...] = acc_i


def pallas_spectral_cmul(xr, xi, wr, wi, tM):
    """xr, xi: (4, B, Cin, Mp); wr, wi: (4, Cin, Cout, Mp) -> two (4, B, Cout, Mp)."""
    _, B, Cin, Mp = xr.shape
    Cout = wr.shape[2]
    MT = Mp // tM
    x_spec = pl.BlockSpec((None, None, Cin, tM), lambda c, m, b: (c, b, 0, m))
    w_spec = pl.BlockSpec((None, Cin, Cout, tM), lambda c, m, b: (c, 0, 0, m))  # resident over b
    o_spec = pl.BlockSpec((None, None, Cout, tM), lambda c, m, b: (c, b, 0, m))
    return pl.pallas_call(
        functools.partial(_cmul_kernel, cin=Cin),
        out_shape=(jax.ShapeDtypeStruct((4, B, Cout, Mp), jnp.float32),
                   jax.ShapeDtypeStruct((4, B, Cout, Mp), jnp.float32)),
        grid=(4, MT, B),
        in_specs=[x_spec, x_spec, w_spec, w_spec],
        out_specs=(o_spec, o_spec),
        compiler_params=_mosaic_params("parallel", "parallel", "parallel"),
    )(xr, xi, wr, wi)


def _prep_spectral_weights(w_raw, Mp):
    """w_raw: (4, Cin, Cout, m1, m2, m3, 2) -> padded real/imag (4, Cin, Cout, Mp)."""
    four, Cin, Cout, m1, m2, m3, _ = w_raw.shape
    M = m1 * m2 * m3
    w = w_raw.reshape(four, Cin, Cout, M, 2)
    pad = ((0, 0), (0, 0), (0, 0), (0, Mp - M))
    return jnp.pad(w[..., 0], pad), jnp.pad(w[..., 1], pad)


# ----------------------------------------------------------------------------
# truncated separable DFT (replaces jnp.fft.rfftn / irfftn) - real MXU matmuls
# ----------------------------------------------------------------------------

def _dft_matrices(X, Y, Z, m1, m2, m3):
    if X < 2 * m1 or Y < 2 * m2 or (Z // 2 + 1) < m3:
        raise ValueError("spectral corner regions overlap / exceed spectrum size")
    def cs(kidx, N):
        ang = 2.0 * np.pi * np.outer(kidx, np.arange(N)) / N
        return np.cos(ang), np.sin(ang)
    kx = np.concatenate([np.arange(m1), np.arange(X - m1, X)])
    ky = np.concatenate([np.arange(m2), np.arange(Y - m2, Y)])
    kz = np.arange(m3)
    Cx, Sx = cs(kx, X)
    Cy, Sy = cs(ky, Y)
    Cz, Sz = cs(kz, Z)
    scale = 1.0 / np.sqrt(X * Y * Z)                        # norm="ortho"
    # irfft one-sided weights: DC (and Nyquist, if present) count once, others twice
    wk = np.full((m3, 1), 2.0)
    wk[0, 0] = 1.0
    if Z % 2 == 0 and m3 == Z // 2 + 1:
        wk[Z // 2, 0] = 1.0
    f32 = lambda a: np.asarray(a, np.float32)
    fwd = (f32(Cx), f32(Sx), f32(Cy), f32(Sy), f32(Cz * scale), f32(Sz * scale))
    inv = (f32(Cx), f32(Sx), f32(Cy), f32(Sy),
           f32(wk * Cz * scale), f32(wk * Sz * scale))
    return fwd, inv


def _cmul_contract(ar, ai, br, bi, eq):
    rr = jnp.einsum(eq, ar, br, precision=_PREC)
    ri = jnp.einsum(eq, ar, bi, precision=_PREC)
    ir = jnp.einsum(eq, ai, br, precision=_PREC)
    ii = jnp.einsum(eq, ai, bi, precision=_PREC)
    return rr - ii, ri + ir


def _truncated_rdft3(x5, fwd):
    """(B,C,X,Y,Z) real -> retained-mode spectrum (B,C,2m1,2m2,m3) as (re, im)."""
    Cx, Sx, Cy, Sy, Cz, Sz = fwd                            # e^{-i t} = cos - i sin
    ar = jnp.einsum('bcxyz,kz->bcxyk', x5, Cz, precision=_PREC)
    ai = jnp.einsum('bcxyz,kz->bcxyk', x5, -Sz, precision=_PREC)
    br, bi = _cmul_contract(ar, ai, Cy, -Sy, 'bcxyk,jy->bcxjk')
    return _cmul_contract(br, bi, Cx, -Sx, 'bcxjk,ix->bcijk')


def _truncated_irdft3(cr, ci, inv):
    """retained-mode spectrum (re, im) -> (B,C,X,Y,Z) real (matches irfftn ortho)."""
    Cx, Sx, Cy, Sy, Czw, Szw = inv                          # e^{+i t} = cos + i sin
    er, ei = _cmul_contract(cr, ci, Cx, Sx, 'bcijk,ix->bcxjk')
    fr, fi = _cmul_contract(er, ei, Cy, Sy, 'bcxjk,jy->bcxyk')
    return (jnp.einsum('bcxyk,kz->bcxyz', fr, Czw, precision=_PREC)
            - jnp.einsum('bcxyk,kz->bcxyz', fi, Szw, precision=_PREC))


def spectral_conv3d(h, w_raw, m1, m2, m3, X, Y, Z, dft_fwd, dft_inv):
    """h: (B, C, S) -> (B, C, S); SpectralConv3d_fast forward (truncated DFT)."""
    B, C, S = h.shape
    Cout = w_raw.shape[2]
    x5 = h.reshape(B, C, X, Y, Z)
    cr, ci = _truncated_rdft3(x5, dft_fwd)                  # (B, C, 2m1, 2m2, m3)

    def corners(t):                                          # weights1..4 order
        return jnp.stack([t[:, :, :m1, :m2], t[:, :, m1:, :m2],
                          t[:, :, :m1, m2:], t[:, :, m1:, m2:]], axis=0)

    M = m1 * m2 * m3
    tM = _choose_mode_tile(M, C, Cout)
    Mp = _round_up(M, tM)
    pad = ((0, 0), (0, 0), (0, 0), (0, Mp - M))
    xr = jnp.pad(corners(cr).reshape(4, B, C, M), pad)
    xi = jnp.pad(corners(ci).reshape(4, B, C, M), pad)

    wr, wi = _prep_spectral_weights(w_raw, Mp)
    o_r, o_i = pallas_spectral_cmul(xr, xi, wr, wi, tM)     # (4, B, Cout, Mp)
    o_r = o_r[..., :M].reshape(4, B, Cout, m1, m2, m3)
    o_i = o_i[..., :M].reshape(4, B, Cout, m1, m2, m3)

    def merge(t):                                            # back to (2m1, 2m2) block
        top = jnp.concatenate([t[0], t[2]], axis=3)
        bot = jnp.concatenate([t[1], t[3]], axis=3)
        return jnp.concatenate([top, bot], axis=2)

    y = _truncated_irdft3(merge(o_r), merge(o_i), dft_inv)
    return y.reshape(B, Cout, S)


# ----------------------------------------------------------------------------
# fused projection tail: fc1 (+ReLU) + fc2 in one kernel
# ----------------------------------------------------------------------------

def _fc_tail_kernel(x_ref, w1_ref, b1_ref, w2_ref, b2_ref, o_ref):
    t = jnp.dot(w1_ref[...], x_ref[...], preferred_element_type=jnp.float32)
    t = jnp.maximum(t + b1_ref[...], 0.0)
    o_ref[...] = jnp.dot(w2_ref[...], t, preferred_element_type=jnp.float32) + b2_ref[...]


def pallas_fc_tail(x, w1, b1, w2, b2):
    """x: (B, C, S) -> (B, 1, S) = fc2(relu(fc1(x)))."""
    B, Cin, S = x.shape
    H = w1.shape[0]
    tS = _spatial_tile(S, TAIL_TILE_CAP)   # smaller tile: (H, tS) intermediate in VMEM
    ST = pl.cdiv(S, tS)
    return pl.pallas_call(
        _fc_tail_kernel,
        out_shape=jax.ShapeDtypeStruct((B, 1, S), jnp.float32),
        grid=(B, ST),
        in_specs=[
            pl.BlockSpec((None, Cin, tS), lambda b_, s: (b_, 0, s)),
            pl.BlockSpec((H, Cin), lambda b_, s: (0, 0)),
            pl.BlockSpec((H, 1), lambda b_, s: (0, 0)),
            pl.BlockSpec((1, H), lambda b_, s: (0, 0)),
            pl.BlockSpec((1, 1), lambda b_, s: (0, 0)),
        ],
        out_specs=pl.BlockSpec((None, 1, tS), lambda b_, s: (b_, 0, s)),
        compiler_params=_mosaic_params("parallel", "parallel"),
    )(x, w1, b1.reshape(H, 1), w2, b2.reshape(1, 1))


# ----------------------------------------------------------------------------
# Net3d forward
# ----------------------------------------------------------------------------

def net3d_forward(params, x, *, modes):
    """x: (B, X, Y, Z, 3) -> (B, X, Y, Z)  (matches Net3d(...).forward(x).squeeze())."""
    B, X, Y, Z, Cin0 = x.shape
    S = X * Y * Z
    dft_fwd, dft_inv = _dft_matrices(X, Y, Z, modes, modes, modes)

    # fc0: lift 3 -> width, channels-first.  One tiny XLA transpose of (B,S,3) keeps
    # the Pallas input block (3, tS) sublane/lane dense (a (tS, 3) block would be a
    # strided 3-lane DMA and a 42x VMEM blow-up).
    x_cf = x.reshape(B, S, Cin0).transpose(0, 2, 1)               # (B, 3, S)
    h = pallas_linear_cf(x_cf, params["fc0_w"], params["fc0_b"])   # (B, width, S)

    for l in range(4):
        x1 = spectral_conv3d(h, params[f"conv{l}_w"], modes, modes, modes,
                             X, Y, Z, dft_fwd, dft_inv)
        h = fused_layer(h, x1, params[f"w{l}_w"], params[f"w{l}_b"],
                        params[f"bn{l}_g"], params[f"bn{l}_b"],
                        apply_relu=(l < 3))

    out = pallas_fc_tail(h, params["fc1_w"], params["fc1_b"],
                         params["fc2_w"], params["fc2_b"])         # (B, 1, S)
    return out.reshape(B, X, Y, Z)


# ----------------------------------------------------------------------------
# Pure-JAX reference (jnp.fft path) - used as a runtime correctness guard
# ----------------------------------------------------------------------------

def _spectral_ref(h, w_raw, m1, m2, m3):
    B, C, X, Y, Z = h.shape
    x_ft = jnp.fft.rfftn(h, axes=(-3, -2, -1), norm="ortho")
    wc = w_raw[..., 0] + 1j * w_raw[..., 1]                  # (4, Cin, Cout, m1, m2, m3)
    cm = lambda a, b: jnp.einsum('bixyz,ioxyz->boxyz', a, b, precision=_PREC)
    out_ft = jnp.zeros((B, C, X, Y, Z // 2 + 1), jnp.complex64)
    out_ft = out_ft.at[:, :, :m1, :m2, :m3].set(cm(x_ft[:, :, :m1, :m2, :m3], wc[0]))
    out_ft = out_ft.at[:, :, X - m1:, :m2, :m3].set(cm(x_ft[:, :, X - m1:, :m2, :m3], wc[1]))
    out_ft = out_ft.at[:, :, :m1, Y - m2:, :m3].set(cm(x_ft[:, :, :m1, Y - m2:, :m3], wc[2]))
    out_ft = out_ft.at[:, :, X - m1:, Y - m2:, :m3].set(cm(x_ft[:, :, X - m1:, Y - m2:, :m3], wc[3]))
    return jnp.fft.irfftn(out_ft, s=(X, Y, Z), axes=(-3, -2, -1), norm="ortho")


def net3d_forward_ref(params, x, *, modes, eps=1e-5):
    B, X, Y, Z, _ = x.shape
    p = params
    bc = lambda v: v[None, :, None, None, None]
    h = jnp.einsum('bxyzc,wc->bwxyz', x, p["fc0_w"], precision=_PREC) + bc(p["fc0_b"])
    for l in range(4):
        x1 = _spectral_ref(h, p[f"conv{l}_w"], modes, modes, modes)
        x2 = jnp.einsum('oc,bcxyz->boxyz', p[f"w{l}_w"], h, precision=_PREC) + bc(p[f"w{l}_b"])
        s = x1 + x2
        mean = s.mean(axis=(0, 2, 3, 4), keepdims=True)
        var = (s * s).mean(axis=(0, 2, 3, 4), keepdims=True) - mean * mean
        s = (s - mean) * jax.lax.rsqrt(var + eps) * bc(p[f"bn{l}_g"]) + bc(p[f"bn{l}_b"])
        h = jnp.maximum(s, 0.0) if l < 3 else s
    t = jnp.einsum('bcxyz,hc->bhxyz', h, p["fc1_w"], precision=_PREC) + bc(p["fc1_b"])
    t = jnp.maximum(t, 0.0)
    o = jnp.einsum('bhxyz,oh->boxyz', t, p["fc2_w"], precision=_PREC) + bc(p["fc2_b"])
    return o[:, 0]


# ----------------------------------------------------------------------------
# Deterministic parameter init (shapes follow SimpleBlock3d.__init__)
# ----------------------------------------------------------------------------

def _uniform(key, shape, bound):
    return jax.random.uniform(key, shape, jnp.float32, -bound, bound)


def init_params(key, width, modes, fc1_hidden=128):
    keys = iter(jax.random.split(key, 64))
    p = {}
    b0 = 1.0 / (3.0 ** 0.5)
    p["fc0_w"] = _uniform(next(keys), (width, 3), b0)            # (out, in)
    p["fc0_b"] = _uniform(next(keys), (width,), b0)
    scale = 1.0 / (width * width)
    bw = 1.0 / (width ** 0.5)
    for l in range(4):
        p[f"conv{l}_w"] = scale * jax.random.uniform(
            next(keys), (4, width, width, modes, modes, modes, 2), jnp.float32)
        p[f"w{l}_w"] = _uniform(next(keys), (width, width), bw)  # (out, in)
        p[f"w{l}_b"] = _uniform(next(keys), (width,), bw)
        p[f"bn{l}_g"] = jnp.ones((width,), jnp.float32)
        p[f"bn{l}_b"] = jnp.zeros((width,), jnp.float32)
    p["fc1_w"] = _uniform(next(keys), (fc1_hidden, width), bw)
    p["fc1_b"] = _uniform(next(keys), (fc1_hidden,), bw)
    b2 = 1.0 / (fc1_hidden ** 0.5)
    p["fc2_w"] = _uniform(next(keys), (1, fc1_hidden), b2)
    p["fc2_b"] = _uniform(next(keys), (1,), b2)
    return p


if __name__ == "__main__":
    width, modes = 8, 3
    B, X, Y, Z = 2, 8, 8, 8

    key = jax.random.PRNGKey(0)
    kp, kx = jax.random.split(key)
    params = init_params(kp, width, modes)
    x = jax.random.normal(kx, (B, X, Y, Z, 3), jnp.float32)

    fwd = jax.jit(functools.partial(net3d_forward, modes=modes))
    out = fwd(params, x)
    jax.block_until_ready(out)

    assert out.shape == (B, X, Y, Z), out.shape
    assert bool(jnp.all(jnp.isfinite(out)))

    # Guard the truncated-DFT / fused-BN rewrite against the jnp.fft reference.
    ref = jax.jit(functools.partial(net3d_forward_ref, modes=modes))(params, x)
    jax.block_until_ready(ref)
    err = float(jnp.max(jnp.abs(out - ref)))
    ref_scale = float(jnp.max(jnp.abs(ref)))
    assert err <= 5e-2 * ref_scale + 5e-3, (err, ref_scale)

    print("KERNEL_OK")
</pallas_src>

<mosaic_0001>
module attributes {stable_mosaic.version = 11 : i64} {
  func.func @_linear_cf_kernel(%arg0: i32, %arg1: i32, %arg2: memref<1x3x512xf32, #tpu.memory_space<vmem>>, %arg3: memref<8x3xf32, #tpu.memory_space<vmem>>, %arg4: memref<8x1xf32, #tpu.memory_space<vmem>>, %arg5: memref<1x8x512xf32, #tpu.memory_space<vmem>>) attributes {dimension_semantics = [#tpu.dimension_semantics<parallel>, #tpu.dimension_semantics<parallel>], iteration_bounds = array<i64: 2, 1>, scalar_prefetch = 0 : i64, scratch_operands = 0 : i64, tpu.core_type = #tpu.core_type<tc>, window_params = [{transform_indices = @transform_0, window_bounds = array<i64: 1, 3, 512>}, {pipeline_mode = #tpu.pipeline_mode<synchronous>, transform_indices = @transform_1, window_bounds = array<i64: 8, 3>}, {pipeline_mode = #tpu.pipeline_mode<synchronous>, transform_indices = @transform_2, window_bounds = array<i64: 8, 1>}, {transform_indices = @transform_3, window_bounds = array<i64: 1, 8, 512>}]} {
    %c0 = arith.constant 0 : index
    %c0_0 = arith.constant 0 : index
    %0 = vector.load %arg3[%c0, %c0_0] : memref<8x3xf32, #tpu.memory_space<vmem>>, vector<8x3xf32>
    %c0_1 = arith.constant 0 : index
    %c0_2 = arith.constant 0 : index
    %c0_3 = arith.constant 0 : index
    %1 = vector.load %arg2[%c0_1, %c0_2, %c0_3] : memref<1x3x512xf32, #tpu.memory_space<vmem>>, vector<1x3x512xf32>
    %2 = vector.shape_cast %1 : vector<1x3x512xf32> to vector<3x512xf32>
    %cst = arith.constant dense<0.000000e+00> : vector<8x512xf32>
    %3 = tpu.matmul %0, %2, %cst {dimension_numbers = #tpu.dot_dimension_numbers<[1], [0], [0], [1], [0, 0, 1, 1], [], []>} : vector<8x3xf32>, vector<3x512xf32>, vector<8x512xf32> -> vector<8x512xf32>
    %c0_4 = arith.constant 0 : index
    %c0_5 = arith.constant 0 : index
    %4 = vector.load %arg4[%c0_4, %c0_5] : memref<8x1xf32, #tpu.memory_space<vmem>>, vector<8x1xf32>
    %5 = vector.broadcast %4 : vector<8x1xf32> to vector<8x512xf32>
    %6 = arith.addf %3, %5 : vector<8x512xf32>
    %c0_6 = arith.constant 0 : index
    %c0_7 = arith.constant 0 : index
    %c0_8 = arith.constant 0 : index
    %7 = vector.load %arg5[%c0_6, %c0_7, %c0_8] : memref<1x8x512xf32, #tpu.memory_space<vmem>>, vector<1x8x512xf32>
    %8 = vector.shape_cast %7 : vector<1x8x512xf32> to vector<8x512xf32>
    %9 = vector.shape_cast %6 : vector<8x512xf32> to vector<1x8x512xf32>
    tpu.vector_store %arg5[%c0_6, %c0_7, %c0_8], %9 {strides = array<i32>} : memref<1x8x512xf32, #tpu.memory_space<vmem>>, vector<1x8x512xf32>,
    return
  }
  func.func @transform_0(%arg0: i32, %arg1: i32) -> (i32, i32, i32) {
    %c0_i32 = arith.constant 0 : i32
    %c0_i32_0 = arith.constant 0 : i32
    return %arg0, %c0_i32, %arg1 : i32, i32, i32
  }
  func.func @transform_1(%arg0: i32, %arg1: i32) -> (i32, i32) {
    %c0_i32 = arith.constant 0 : i32
    %c0_i32_0 = arith.constant 0 : i32
    %c0_i32_1 = arith.constant 0 : i32
    return %c0_i32, %c0_i32_0 : i32, i32
  }
  func.func @transform_2(%arg0: i32, %arg1: i32) -> (i32, i32) {
    %c0_i32 = arith.constant 0 : i32
    %c0_i32_0 = arith.constant 0 : i32
    %c0_i32_1 = arith.constant 0 : i32
    return %c0_i32, %c0_i32_0 : i32, i32
  }
  func.func @transform_3(%arg0: i32, %arg1: i32) -> (i32, i32, i32) {
    %c0_i32 = arith.constant 0 : i32
    %c0_i32_0 = arith.constant 0 : i32
    return %arg0, %c0_i32, %arg1 : i32, i32, i32
  }
}

module attributes {stable_mosaic.version = 11 : i64} {
  func.func @_cmul_kernel(%arg0: i32, %arg1: i32, %arg2: i32, %arg3: memref<1x1x8x128xf32, #tpu.memory_space<vmem>>, %arg4: memref<1x1x8x128xf32, #tpu.memory_space<vmem>>, %arg5: memref<1x8x8x128xf32, #tpu.memory_space<vmem>>, %arg6: memref<1x8x8x128xf32, #tpu.memory_space<vmem>>, %arg7: memref<1x1x8x128xf32, #tpu.memory_space<vmem>>, %arg8: memref<1x1x8x128xf32, #tpu.memory_space<vmem>>) attributes {dimension_semantics = [#tpu.dimension_semantics<parallel>, #tpu.dimension_semantics<parallel>, #tpu.dimension_semantics<parallel>], iteration_bounds = array<i64: 4, 1, 2>, scalar_prefetch = 0 : i64, scratch_operands = 0 : i64, tpu.core_type = #tpu.core_type<tc>, window_params = [{transform_indices = @transform_0, window_bounds = array<i64: 1, 1, 8, 128>}, {transform_indices = @transform_1, window_bounds = array<i64: 1, 1, 8, 128>}, {transform_indices = @transform_2, window_bounds = array<i64: 1, 8, 8, 128>}, {transform_indices = @transform_3, window_bounds = array<i64: 1, 8, 8, 128>}, {transform_indices = @transform_4, window_bounds = array<i64: 1, 1, 8, 128>}, {transform_indices = @transform_5, window_bounds = array<i64: 1, 1, 8, 128>}]} {
    %cst = arith.constant 0.000000e+00 : f32
    %0 = vector.broadcast %cst : f32 to vector<8x128xf32>
    %cst_0 = arith.constant 0.000000e+00 : f32
    %1 = vector.broadcast %cst_0 : f32 to vector<8x128xf32>
    %c0 = arith.constant 0 : index
    %c0_1 = arith.constant 0 : index
    %c0_2 = arith.constant 0 : index
    %c0_3 = arith.constant 0 : index
    %2 = vector.load %arg3[%c0, %c0_1, %c0_2, %c0_3] : memref<1x1x8x128xf32, #tpu.memory_space<vmem>>, vector<1x1x1x128xf32>
    %3 = vector.shape_cast %2 : vector<1x1x1x128xf32> to vector<128xf32>
    %c0_4 = arith.constant 0 : index
    %c0_5 = arith.constant 0 : index
    %c0_6 = arith.constant 0 : index
    %c0_7 = arith.constant 0 : index
    %4 = vector.load %arg4[%c0_4, %c0_5, %c0_6, %c0_7] : memref<1x1x8x128xf32, #tpu.memory_space<vmem>>, vector<1x1x1x128xf32>
    %5 = vector.shape_cast %4 : vector<1x1x1x128xf32> to vector<128xf32>
    %c0_8 = arith.constant 0 : index
    %c0_9 = arith.constant 0 : index
    %c0_10 = arith.constant 0 : index
    %c0_11 = arith.constant 0 : index
    %6 = vector.load %arg5[%c0_8, %c0_9, %c0_10, %c0_11] : memref<1x8x8x128xf32, #tpu.memory_space<vmem>>, vector<1x1x8x128xf32>
    %7 = vector.shape_cast %6 : vector<1x1x8x128xf32> to vector<8x128xf32>
    %c0_12 = arith.constant 0 : index
    %c0_13 = arith.constant 0 : index
    %c0_14 = arith.constant 0 : index
    %c0_15 = arith.constant 0 : index
    %8 = vector.load %arg6[%c0_12, %c0_13, %c0_14, %c0_15] : memref<1x8x8x128xf32, #tpu.memory_space<vmem>>, vector<1x1x8x128xf32>
    %9 = vector.shape_cast %8 : vector<1x1x8x128xf32> to vector<8x128xf32>
    %10 = vector.shape_cast %3 : vector<128xf32> to vector<1x128xf32>
    %11 = vector.broadcast %10 : vector<1x128xf32> to vector<8x128xf32>
    %12 = arith.mulf %11, %7 : vector<8x128xf32>
    %13 = arith.addf %0, %12 : vector<8x128xf32>
    %14 = vector.shape_cast %5 : vector<128xf32> to vector<1x128xf32>
    %15 = vector.broadcast %14 : vector<1x128xf32> to vector<8x128xf32>
    %16 = arith.mulf %15, %9 : vector<8x128xf32>
    %17 = arith.subf %13, %16 : vector<8x128xf32>
    %18 = vector.shape_cast %5 : vector<128xf32> to vector<1x128xf32>
    %19 = vector.broadcast %18 : vector<1x128xf32> to vector<8x128xf32>
    %20 = arith.mulf %19, %7 : vector<8x128xf32>
    %21 = arith.addf %1, %20 : vector<8x128xf32>
    %22 = vector.shape_cast %3 : vector<128xf32> to vector<1x128xf32>
    %23 = vector.broadcast %22 : vector<1x128xf32> to vector<8x128xf32>
    %24 = arith.mulf %23, %9 : vector<8x128xf32>
    %25 = arith.addf %21, %24 : vector<8x128xf32>
    %c0_16 = arith.constant 0 : index
    %c0_17 = arith.constant 0 : index
    %c1 = arith.constant 1 : index
    %c0_18 = arith.constant 0 : index
    %26 = vector.load %arg3[%c0_16, %c0_17, %c1, %c0_18] : memref<1x1x8x128xf32, #tpu.memory_space<vmem>>, vector<1x1x1x128xf32>
    %27 = vector.shape_cast %26 : vector<1x1x1x128xf32> to vector<128xf32>
    %c0_19 = arith.constant 0 : index
    %c0_20 = arith.constant 0 : index
    %c1_21 = arith.constant 1 : index
    %c0_22 = arith.constant 0 : index
    %28 = vector.load %arg4[%c0_19, %c0_20, %c1_21, %c0_22] : memref<1x1x8x128xf32, #tpu.memory_space<vmem>>, vector<1x1x1x128xf32>
    %29 = vector.shape_cast %28 : vector<1x1x1x128xf32> to vector<128xf32>
    %c0_23 = arith.constant 0 : index
    %c1_24 = arith.constant 1 : index
    %c0_25 = arith.constant 0 : index
    %c0_26 = arith.constant 0 : index
    %30 = vector.load %arg5[%c0_23, %c1_24, %c0_25, %c0_26] : memref<1x8x8x128xf32, #tpu.memory_space<vmem>>, vector<1x1x8x128xf32>
    %31 = vector.shape_cast %30 : vector<1x1x8x128xf32> to vector<8x128xf32>
    %c0_27 = arith.constant 0 : index
    %c1_28 = arith.constant 1 : index
    %c0_29 = arith.constant 0 : index
    %c0_30 = arith.constant 0 : index
    %32 = vector.load %arg6[%c0_27, %c1_28, %c0_29, %c0_30] : memref<1x8x8x128xf32, #tpu.memory_space<vmem>>, vector<1x1x8x128xf32>
    %33 = vector.shape_cast %32 : vector<1x1x8x128xf32> to vector<8x128xf32>
    %34 = vector.shape_cast %27 : vector<128xf32> to vector<1x128xf32>
    %35 = vector.broadcast %34 : vector<1x128xf32> to vector<8x128xf32>
    %36 = arith.mulf %35, %31 : vector<8x128xf32>
    %37 = arith.addf %17, %36 : vector<8x128xf32>
    %38 = vector.shape_cast %29 : vector<128xf32> to vector<1x128xf32>
    %39 = vector.broadcast %38 : vector<1x128xf32> to vector<8x128xf32>
    %40 = arith.mulf %39, %33 : vector<8x128xf32>
    %41 = arith.subf %37, %40 : vector<8x128xf32>
    %42 = vector.shape_cast %29 : vector<128xf32> to vector<1x128xf32>
    %43 = vector.broadcast %42 : vector<1x128xf32> to vector<8x128xf32>
    %44 = arith.mulf %43, %31 : vector<8x128xf32>
    %45 = arith.addf %25, %44 : vector<8x128xf32>
    %46 = vector.shape_cast %27 : vector<128xf32> to vector<1x128xf32>
    %47 = vector.broadcast %46 : vector<1x128xf32> to vector<8x128xf32>
    %48 = arith.mulf %47, %33 : vector<8x128xf32>
    %49 = arith.addf %45, %48 : vector<8x128xf32>
    %c0_31 = arith.constant 0 : index
    %c0_32 = arith.constant 0 : index
    %c2 = arith.constant 2 : index
    %c0_33 = arith.constant 0 : index
    %50 = vector.load %arg3[%c0_31, %c0_32, %c2, %c0_33] : memref<1x1x8x128xf32, #tpu.memory_space<vmem>>, vector<1x1x1x128xf32>
    %51 = vector.shape_cast %50 : vector<1x1x1x128xf32> to vector<128xf32>
    %c0_34 = arith.constant 0 : index
    %c0_35 = arith.constant 0 : index
    %c2_36 = arith.constant 2 : index
    %c0_37 = arith.constant 0 : index
    %52 = vector.load %arg4[%c0_34, %c0_35, %c2_36, %c0_37] : memref<1x1x8x128xf32, #tpu.memory_space<vmem>>, vector<1x1x1x128xf32>
    %53 = vector.shape_cast %52 : vector<1x1x1x128xf32> to vector<128xf32>
    %c0_38 = arith.constant 0 : index
    %c2_39 = arith.constant 2 : index
    %c0_40 = arith.constant 0 : index
    %c0_41 = arith.constant 0 : index
    %54 = vector.load %arg5[%c0_38, %c2_39, %c0_40, %c0_41] : memref<1x8x8x128xf32, #tpu.memory_space<vmem>>, vector<1x1x8x128xf32>
    %55 = vector.shape_cast %54 : vector<1x1x8x128xf32> to vector<8x128xf32>
    %c0_42 = arith.constant 0 : index
    %c2_43 = arith.constant 2 : index
    %c0_44 = arith.constant 0 : index
    %c0_45 = arith.constant 0 : index
    %56 = vector.load %arg6[%c0_42, %c2_43, %c0_44, %c0_45] : memref<1x8x8x128xf32, #tpu.memory_space<vmem>>, vector<1x1x8x128xf32>
    %57 = vector.shape_cast %56 : vector<1x1x8x128xf32> to vector<8x128xf32>
    %58 = vector.shape_cast %51 : vector<128xf32> to vector<1x128xf32>
    %59 = vector.broadcast %58 : vector<1x128xf32> to vector<8x128xf32>
    %60 = arith.mulf %59, %55 : vector<8x128xf32>
    %61 = arith.addf %41, %60 : vector<8x128xf32>
    %62 = vector.shape_cast %53 : vector<128xf32> to vector<1x128xf32>
    %63 = vector.broadcast %62 : vector<1x128xf32> to vector<8x128xf32>
    %64 = arith.mulf %63, %57 : vector<8x128xf32>
    %65 = arith.subf %61, %64 : vector<8x128xf32>
    %66 = vector.shape_cast %53 : vector<128xf32> to vector<1x128xf32>
    %67 = vector.broadcast %66 : vector<1x128xf32> to vector<8x128xf32>
    %68 = arith.mulf %67, %55 : vector<8x128xf32>
    %69 = arith.addf %49, %68 : vector<8x128xf32>
    %70 = vector.shape_cast %51 : vector<128xf32> to vector<1x128xf32>
    %71 = vector.broadcast %70 : vector<1x128xf32> to vector<8x128xf32>
    %72 = arith.mulf %71, %57 : vector<8x128xf32>
    %73 = arith.addf %69, %72 : vector<8x128xf32>
    %c0_46 = arith.constant 0 : index
    %c0_47 = arith.constant 0 : index
    %c3 = arith.constant 3 : index
    %c0_48 = arith.constant 0 : index
    %74 = vector.load %arg3[%c0_46, %c0_47, %c3, %c0_48] : memref<1x1x8x128xf32, #tpu.memory_space<vmem>>, vector<1x1x1x128xf32>
    %75 = vector.shape_cast %74 : vector<1x1x1x128xf32> to vector<128xf32>
    %c0_49 = arith.constant 0 : index
    %c0_50 = arith.constant 0 : index
    %c3_51 = arith.constant 3 : index
    %c0_52 = arith.constant 0 : index
    %76 = vector.load %arg4[%c0_49, %c0_50, %c3_51, %c0_52] : memref<1x1x8x128xf32, #tpu.memory_space<vmem>>, vector<1x1x1x128xf32>
    %77 = vector.shape_cast %76 : vector<1x1x1x128xf32> to vector<128xf32>
    %c0_53 = arith.constant 0 : index
    %c3_54 = arith.constant 3 : index
    %c0_55 = arith.constant 0 : index
    %c0_56 = arith.constant 0 : index
    %78 = vector.load %arg5[%c0_53, %c3_54, %c0_55, %c0_56] : memref<1x8x8x128xf32, #tpu.memory_space<vmem>>, vector<1x1x8x128xf32>
    %79 = vector.shape_cast %78 : vector<1x1x8x128xf32> to vector<8x128xf32>
    %c0_57 = arith.constant 0 : index
    %c3_58 = arith.constant 3 : index
    %c0_59 = arith.constant 0 : index
    %c0_60 = arith.constant 0 : index
    %80 = vector.load %arg6[%c0_57, %c3_58, %c0_59, %c0_60] : memref<1x8x8x128xf32, #tpu.memory_space<vmem>>, vector<1x1x8x128xf32>
    %81 = vector.shape_cast %80 : vector<1x1x8x128xf32> to vector<8x128xf32>
    %82 = vector.shape_cast %75 : vector<128xf32> to vector<1x128xf32>
    %83 = vector.broadcast %82 : vector<1x128xf32> to vector<8x128xf32>
    %84 = arith.mulf %83, %79 : vector<8x128xf32>
    %85 = arith.addf %65, %84 : vector<8x128xf32>
    %86 = vector.shape_cast %77 : vector<128xf32> to vector<1x128xf32>
    %87 = vector.broadcast %86 : vector<1x128xf32> to vector<8x128xf32>
    %88 = arith.mulf %87, %81 : vector<8x128xf32>
    %89 = arith.subf %85, %88 : vector<8x128xf32>
    %90 = vector.shape_cast %77 : vector<128xf32> to vector<1x128xf32>
    %91 = vector.broadcast %90 : vector<1x128xf32> to vector<8x128xf32>
    %92 = arith.mulf %91, %79 : vector<8x128xf32>
    %93 = arith.addf %73, %92 : vector<8x128xf32>
    %94 = vector.shape_cast %75 : vector<128xf32> to vector<1x128xf32>
    %95 = vector.broadcast %94 : vector<1x128xf32> to vector<8x128xf32>
    %96 = arith.mulf %95, %81 : vector<8x128xf32>
    %97 = arith.addf %93, %96 : vector<8x128xf32>
    %c0_61 = arith.constant 0 : index
    %c0_62 = arith.constant 0 : index
    %c4 = arith.constant 4 : index
    %c0_63 = arith.constant 0 : index
    %98 = vector.load %arg3[%c0_61, %c0_62, %c4, %c0_63] : memref<1x1x8x128xf32, #tpu.memory_space<vmem>>, vector<1x1x1x128xf32>
    %99 = vector.shape_cast %98 : vector<1x1x1x128xf32> to vector<128xf32>
    %c0_64 = arith.constant 0 : index
    %c0_65 = arith.constant 0 : index
    %c4_66 = arith.constant 4 : index
    %c0_67 = arith.constant 0 : index
    %100 = vector.load %arg4[%c0_64, %c0_65, %c4_66, %c0_67] : memref<1x1x8x128xf32, #tpu.memory_space<vmem>>, vector<1x1x1x128xf32>
    %101 = vector.shape_cast %100 : vector<1x1x1x128xf32> to vector<128xf32>
    %c0_68 = arith.constant 0 : index
    %c4_69 = arith.constant 4 : index
    %c0_70 = arith.constant 0 : index
    %c0_71 = arith.constant 0 : index
    %102 = vector.load %arg5[%c0_68, %c4_69, %c0_70, %c0_71] : memref<1x8x8x128xf32, #tpu.memory_space<vmem>>, vector<1x1x8x128xf32>
    %103 = vector.shape_cast %102 : vector<1x1x8x128xf32> to vector<8x128xf32>
    %c0_72 = arith.constant 0 : index
    %c4_73 = arith.constant 4 : index
    %c0_74 = arith.constant 0 : index
    %c0_75 = arith.constant 0 : index
    %104 = vector.load %arg6[%c0_72, %c4_73, %c0_74, %c0_75] : memref<1x8x8x128xf32, #tpu.memory_space<vmem>>, vector<1x1x8x128xf32>
    %105 = vector.shape_cast %104 : vector<1x1x8x128xf32> to vector<8x128xf32>
    %106 = vector.shape_cast %99 : vector<128xf32> to vector<1x128xf32>
    %107 = vector.broadcast %106 : vector<1x128xf32> to vector<8x128xf32>
    %108 = arith.mulf %107, %103 : vector<8x128xf32>
    %109 = arith.addf %89, %108 : vector<8x128xf32>
    %110 = vector.shape_cast %101 : vector<128xf32> to vector<1x128xf32>
    %111 = vector.broadcast %110 : vector<1x128xf32> to vector<8x128xf32>
    %112 = arith.mulf %111, %105 : vector<8x128xf32>
    %113 = arith.subf %109, %112 : vector<8x128xf32>
    %114 = vector.shape_cast %101 : vector<128xf32> to vector<1x128xf32>
    %115 = vector.broadcast %114 : vector<1x128xf32> to vector<8x128xf32>
    %116 = arith.mulf %115, %103 : vector<8x128xf32>
    %117 = arith.addf %97, %116 : vector<8x128xf32>
    %118 = vector.shape_cast %99 : vector<128xf32> to vector<1x128xf32>
    %119 = vector.broadcast %118 : vector<1x128xf32> to vector<8x128xf32>
    %120 = arith.mulf %119, %105 : vector<8x128xf32>
    %121 = arith.addf %117, %120 : vector<8x128xf32>
    %c0_76 = arith.constant 0 : index
    %c0_77 = arith.constant 0 : index
    %c5 = arith.constant 5 : index
    %c0_78 = arith.constant 0 : index
    %122 = vector.load %arg3[%c0_76, %c0_77, %c5, %c0_78] : memref<1x1x8x128xf32, #tpu.memory_space<vmem>>, vector<1x1x1x128xf32>
    %123 = vector.shape_cast %122 : vector<1x1x1x128xf32> to vector<128xf32>
    %c0_79 = arith.constant 0 : index
    %c0_80 = arith.constant 0 : index
    %c5_81 = arith.constant 5 : index
    %c0_82 = arith.constant 0 : index
    %124 = vector.load %arg4[%c0_79, %c0_80, %c5_81, %c0_82] : memref<1x1x8x128xf32, #tpu.memory_space<vmem>>, vector<1x1x1x128xf32>
    %125 = vector.shape_cast %124 : vector<1x1x1x128xf32> to vector<128xf32>
    %c0_83 = arith.constant 0 : index
    %c5_84 = arith.constant 5 : index
    %c0_85 = arith.constant 0 : index
    %c0_86 = arith.constant 0 : index
    %126 = vector.load %arg5[%c0_83, %c5_84, %c0_85, %c0_86] : memref<1x8x8x128xf32, #tpu.memory_space<vmem>>, vector<1x1x8x128xf32>
    %127 = vector.shape_cast %126 : vector<1x1x8x128xf32> to vector<8x128xf32>
    %c0_87 = arith.constant 0 : index
    %c5_88 = arith.constant 5 : index
    %c0_89 = arith.constant 0 : index
    %c0_90 = arith.constant 0 : index
    %128 = vector.load %arg6[%c0_87, %c5_88, %c0_89, %c0_90] : memref<1x8x8x128xf32, #tpu.memory_space<vmem>>, vector<1x1x8x128xf32>
    %129 = vector.shape_cast %128 : vector<1x1x8x128xf32> to vector<8x128xf32>
    %130 = vector.shape_cast %123 : vector<128xf32> to vector<1x128xf32>
    %131 = vector.broadcast %130 : vector<1x128xf32> to vector<8x128xf32>
    %132 = arith.mulf %131, %127 : vector<8x128xf32>
    %133 = arith.addf %113, %132 : vector<8x128xf32>
    %134 = vector.shape_cast %125 : vector<128xf32> to vector<1x128xf32>
    %135 = vector.broadcast %134 : vector<1x128xf32> to vector<8x128xf32>
    %136 = arith.mulf %135, %129 : vector<8x128xf32>
    %137 = arith.subf %133, %136 : vector<8x128xf32>
    %138 = vector.shape_cast %125 : vector<128xf32> to vector<1x128xf32>
    %139 = vector.broadcast %138 : vector<1x128xf32> to vector<8x128xf32>
    %140 = arith.mulf %139, %127 : vector<8x128xf32>
    %141 = arith.addf %121, %140 : vector<8x128xf32>
    %142 = vector.shape_cast %123 : vector<128xf32> to vector<1x128xf32>
    %143 = vector.broadcast %142 : vector<1x128xf32> to vector<8x128xf32>
    %144 = arith.mulf %143, %129 : vector<8x128xf32>
    %145 = arith.addf %141, %144 : vector<8x128xf32>
    %c0_91 = arith.constant 0 : index
    %c0_92 = arith.constant 0 : index
    %c6 = arith.constant 6 : index
    %c0_93 = arith.constant 0 : index
    %146 = vector.load %arg3[%c0_91, %c0_92, %c6, %c0_93] : memref<1x1x8x128xf32, #tpu.memory_space<vmem>>, vector<1x1x1x128xf32>
    %147 = vector.shape_cast %146 : vector<1x1x1x128xf32> to vector<128xf32>
    %c0_94 = arith.constant 0 : index
    %c0_95 = arith.constant 0 : index
    %c6_96 = arith.constant 6 : index
    %c0_97 = arith.constant 0 : index
    %148 = vector.load %arg4[%c0_94, %c0_95, %c6_96, %c0_97] : memref<1x1x8x128xf32, #tpu.memory_space<vmem>>, vector<1x1x1x128xf32>
    %149 = vector.shape_cast %148 : vector<1x1x1x128xf32> to vector<128xf32>
    %c0_98 = arith.constant 0 : index
    %c6_99 = arith.constant 6 : index
    %c0_100 = arith.constant 0 : index
    %c0_101 = arith.constant 0 : index
    %150 = vector.load %arg5[%c0_98, %c6_99, %c0_100, %c0_101] : memref<1x8x8x128xf32, #tpu.memory_space<vmem>>, vector<1x1x8x128xf32>
    %151 = vector.shape_cast %150 : vector<1x1x8x128xf32> to vector<8x128xf32>
    %c0_102 = arith.constant 0 : index
    %c6_103 = arith.constant 6 : index
    %c0_104 = arith.constant 0 : index
    %c0_105 = arith.constant 0 : index
    %152 = vector.load %arg6[%c0_102, %c6_103, %c0_104, %c0_105] : memref<1x8x8x128xf32, #tpu.memory_space<vmem>>, vector<1x1x8x128xf32>
    %153 = vector.shape_cast %152 : vector<1x1x8x128xf32> to vector<8x128xf32>
    %154 = vector.shape_cast %147 : vector<128xf32> to vector<1x128xf32>
    %155 = vector.broadcast %154 : vector<1x128xf32> to vector<8x128xf32>
    %156 = arith.mulf %155, %151 : vector<8x128xf32>
    %157 = arith.addf %137, %156 : vector<8x128xf32>
    %158 = vector.shape_cast %149 : vector<128xf32> to vector<1x128xf32>
    %159 = vector.broadcast %158 : vector<1x128xf32> to vector<8x128xf32>
    %160 = arith.mulf %159, %153 : vector<8x128xf32>
    %161 = arith.subf %157, %160 : vector<8x128xf32>
    %162 = vector.shape_cast %149 : vector<128xf32> to vector<1x128xf32>
    %163 = vector.broadcast %162 : vector<1x128xf32> to vector<8x128xf32>
    %164 = arith.mulf %163, %151 : vector<8x128xf32>
    %165 = arith.addf %145, %164 : vector<8x128xf32>
    %166 = vector.shape_cast %147 : vector<128xf32> to vector<1x128xf32>
    %167 = vector.broadcast %166 : vector<1x128xf32> to vector<8x128xf32>
    %168 = arith.mulf %167, %153 : vector<8x128xf32>
    %169 = arith.addf %165, %168 : vector<8x128xf32>
    %c0_106 = arith.constant 0 : index
    %c0_107 = arith.constant 0 : index
    %c7 = arith.constant 7 : index
    %c0_108 = arith.constant 0 : index
    %170 = vector.load %arg3[%c0_106, %c0_107, %c7, %c0_108] : memref<1x1x8x128xf32, #tpu.memory_space<vmem>>, vector<1x1x1x128xf32>
    %171 = vector.shape_cast %170 : vector<1x1x1x128xf32> to vector<128xf32>
    %c0_109 = arith.constant 0 : index
    %c0_110 = arith.constant 0 : index
    %c7_111 = arith.constant 7 : index
    %c0_112 = arith.constant 0 : index
    %172 = vector.load %arg4[%c0_109, %c0_110, %c7_111, %c0_112] : memref<1x1x8x128xf32, #tpu.memory_space<vmem>>, vector<1x1x1x128xf32>
    %173 = vector.shape_cast %172 : vector<1x1x1x128xf32> to vector<128xf32>
    %c0_113 = arith.constant 0 : index
    %c7_114 = arith.constant 7 : index
    %c0_115 = arith.constant 0 : index
    %c0_116 = arith.constant 0 : index
    %174 = vector.load %arg5[%c0_113, %c7_114, %c0_115, %c0_116] : memref<1x8x8x128xf32, #tpu.memory_space<vmem>>, vector<1x1x8x128xf32>
    %175 = vector.shape_cast %174 : vector<1x1x8x128xf32> to vector<8x128xf32>
    %c0_117 = arith.constant 0 : index
    %c7_118 = arith.constant 7 : index
    %c0_119 = arith.constant 0 : index
    %c0_120 = arith.constant 0 : index
    %176 = vector.load %arg6[%c0_117, %c7_118, %c0_119, %c0_120] : memref<1x8x8x128xf32, #tpu.memory_space<vmem>>, vector<1x1x8x128xf32>
    %177 = vector.shape_cast %176 : vector<1x1x8x128xf32> to vector<8x128xf32>
    %178 = vector.shape_cast %171 : vector<128xf32> to vector<1x128xf32>
    %179 = vector.broadcast %178 : vector<1x128xf32> to vector<8x128xf32>
    %180 = arith.mulf %179, %175 : vector<8x128xf32>
    %181 = arith.addf %161, %180 : vector<8x128xf32>
    %182 = vector.shape_cast %173 : vector<128xf32> to vector<1x128xf32>
    %183 = vector.broadcast %182 : vector<1x128xf32> to vector<8x128xf32>
    %184 = arith.mulf %183, %177 : vector<8x128xf32>
    %185 = arith.subf %181, %184 : vector<8x128xf32>
    %186 = vector.shape_cast %173 : vector<128xf32> to vector<1x128xf32>
    %187 = vector.broadcast %186 : vector<1x128xf32> to vector<8x128xf32>
    %188 = arith.mulf %187, %175 : vector<8x128xf32>
    %189 = arith.addf %169, %188 : vector<8x128xf32>
    %190 = vector.shape_cast %171 : vector<128xf32> to vector<1x128xf32>
    %191 = vector.broadcast %190 : vector<1x128xf32> to vector<8x128xf32>
    %192 = arith.mulf %191, %177 : vector<8x128xf32>
    %193 = arith.addf %189, %192 : vector<8x128xf32>
    %c0_121 = arith.constant 0 : index
    %c0_122 = arith.constant 0 : index
    %c0_123 = arith.constant 0 : index
    %c0_124 = arith.constant 0 : index
    %194 = vector.load %arg7[%c0_121, %c0_122, %c0_123, %c0_124] : memref<1x1x8x128xf32, #tpu.memory_space<vmem>>, vector<1x1x8x128xf32>
    %195 = vector.shape_cast %194 : vector<1x1x8x128xf32> to vector<8x128xf32>
    %196 = vector.shape_cast %185 : vector<8x128xf32> to vector<1x1x8x128xf32>
    tpu.vector_store %arg7[%c0_121, %c0_122, %c0_123, %c0_124], %196 {strides = array<i32>} : memref<1x1x8x128xf32, #tpu.memory_space<vmem>>, vector<1x1x8x128xf32>,
    %c0_125 = arith.constant 0 : index
    %c0_126 = arith.constant 0 : index
    %c0_127 = arith.constant 0 : index
    %c0_128 = arith.constant 0 : index
    %197 = vector.load %arg8[%c0_125, %c0_126, %c0_127, %c0_128] : memref<1x1x8x128xf32, #tpu.memory_space<vmem>>, vector<1x1x8x128xf32>
    %198 = vector.shape_cast %197 : vector<1x1x8x128xf32> to vector<8x128xf32>
    %199 = vector.shape_cast %193 : vector<8x128xf32> to vector<1x1x8x128xf32>
    tpu.vector_store %arg8[%c0_125, %c0_126, %c0_127, %c0_128], %199 {strides = array<i32>} : memref<1x1x8x128xf32, #tpu.memory_space<vmem>>, vector<1x1x8x128xf32>,
    return
  }
  func.func @transform_0(%arg0: i32, %arg1: i32, %arg2: i32) -> (i32, i32, i32, i32) {
    %c0_i32 = arith.constant 0 : i32
    %c0_i32_0 = arith.constant 0 : i32
    return %arg0, %arg2, %c0_i32, %arg1 : i32, i32, i32, i32
  }
  func.func @transform_1(%arg0: i32, %arg1: i32, %arg2: i32) -> (i32, i32, i32, i32) {
    %c0_i32 = arith.constant 0 : i32
    %c0_i32_0 = arith.constant 0 : i32
    return %arg0, %arg2, %c0_i32, %arg1 : i32, i32, i32, i32
  }
  func.func @transform_2(%arg0: i32, %arg1: i32, %arg2: i32) -> (i32, i32, i32, i32) {
    %c0_i32 = arith.constant 0 : i32
    %c0_i32_0 = arith.constant 0 : i32
    %c0_i32_1 = arith.constant 0 : i32
    return %arg0, %c0_i32, %c0_i32_0, %arg1 : i32, i32, i32, i32
  }
  func.func @transform_3(%arg0: i32, %arg1: i32, %arg2: i32) -> (i32, i32, i32, i32) {
    %c0_i32 = arith.constant 0 : i32
    %c0_i32_0 = arith.constant 0 : i32
    %c0_i32_1 = arith.constant 0 : i32
    return %arg0, %c0_i32, %c0_i32_0, %arg1 : i32, i32, i32, i32
  }
  func.func @transform_4(%arg0: i32, %arg1: i32, %arg2: i32) -> (i32, i32, i32, i32) {
    %c0_i32 = arith.constant 0 : i32
    %c0_i32_0 = arith.constant 0 : i32
    return %arg0, %arg2, %c0_i32, %arg1 : i32, i32, i32, i32
  }
  func.func @transform_5(%arg0: i32, %arg1: i32, %arg2: i32) -> (i32, i32, i32, i32) {
    %c0_i32 = arith.constant 0 : i32
    %c0_i32_0 = arith.constant 0 : i32
    return %arg0, %arg2, %c0_i32, %arg1 : i32, i32, i32, i32
  }
}

module attributes {stable_mosaic.version = 11 : i64} {
  func.func @_conv_add_stats_kernel(%arg0: i32, %arg1: i32, %arg2: memref<1x8x512xf32, #tpu.memory_space<vmem>>, %arg3: memref<1x8x512xf32, #tpu.memory_space<vmem>>, %arg4: memref<8x8xf32, #tpu.memory_space<vmem>>, %arg5: memref<8x1xf32, #tpu.memory_space<vmem>>, %arg6: memref<1x8x512xf32, #tpu.memory_space<vmem>>, %arg7: memref<1x1x8x2xf32, #tpu.memory_space<vmem>>) attributes {dimension_semantics = [#tpu.dimension_semantics<parallel>, #tpu.dimension_semantics<parallel>], iteration_bounds = array<i64: 2, 1>, scalar_prefetch = 0 : i64, scratch_operands = 0 : i64, tpu.core_type = #tpu.core_type<tc>, window_params = [{transform_indices = @transform_0, window_bounds = array<i64: 1, 8, 512>}, {transform_indices = @transform_1, window_bounds = array<i64: 1, 8, 512>}, {pipeline_mode = #tpu.pipeline_mode<synchronous>, transform_indices = @transform_2, window_bounds = array<i64: 8, 8>}, {pipeline_mode = #tpu.pipeline_mode<synchronous>, transform_indices = @transform_3, window_bounds = array<i64: 8, 1>}, {transform_indices = @transform_4, window_bounds = array<i64: 1, 8, 512>}, {transform_indices = @transform_5, window_bounds = array<i64: 1, 1, 8, 2>}]} {
    %c0 = arith.constant 0 : index
    %c0_0 = arith.constant 0 : index
    %0 = vector.load %arg4[%c0, %c0_0] : memref<8x8xf32, #tpu.memory_space<vmem>>, vector<8x8xf32>
    %c0_1 = arith.constant 0 : index
    %c0_2 = arith.constant 0 : index
    %c0_3 = arith.constant 0 : index
    %1 = vector.load %arg2[%c0_1, %c0_2, %c0_3] : memref<1x8x512xf32, #tpu.memory_space<vmem>>, vector<1x8x512xf32>
    %2 = vector.shape_cast %1 : vector<1x8x512xf32> to vector<8x512xf32>
    %cst = arith.constant dense<0.000000e+00> : vector<8x512xf32>
    %3 = tpu.matmul %0, %2, %cst {dimension_numbers = #tpu.dot_dimension_numbers<[1], [0], [0], [1], [0, 0, 1, 1], [], []>} : vector<8x8xf32>, vector<8x512xf32>, vector<8x512xf32> -> vector<8x512xf32>
    %c0_4 = arith.constant 0 : index
    %c0_5 = arith.constant 0 : index
    %4 = vector.load %arg5[%c0_4, %c0_5] : memref<8x1xf32, #tpu.memory_space<vmem>>, vector<8x1xf32>
    %5 = vector.broadcast %4 : vector<8x1xf32> to vector<8x512xf32>
    %6 = arith.addf %3, %5 : vector<8x512xf32>
    %c0_6 = arith.constant 0 : index
    %c0_7 = arith.constant 0 : index
    %c0_8 = arith.constant 0 : index
    %7 = vector.load %arg3[%c0_6, %c0_7, %c0_8] : memref<1x8x512xf32, #tpu.memory_space<vmem>>, vector<1x8x512xf32>
    %8 = vector.shape_cast %7 : vector<1x8x512xf32> to vector<8x512xf32>
    %9 = arith.addf %6, %8 : vector<8x512xf32>
    %c0_9 = arith.constant 0 : index
    %c0_10 = arith.constant 0 : index
    %c0_11 = arith.constant 0 : index
    %10 = vector.load %arg6[%c0_9, %c0_10, %c0_11] : memref<1x8x512xf32, #tpu.memory_space<vmem>>, vector<1x8x512xf32>
    %11 = vector.shape_cast %10 : vector<1x8x512xf32> to vector<8x512xf32>
    %12 = vector.shape_cast %9 : vector<8x512xf32> to vector<1x8x512xf32>
    tpu.vector_store %arg6[%c0_9, %c0_10, %c0_11], %12 {strides = array<i32>} : memref<1x8x512xf32, #tpu.memory_space<vmem>>, vector<1x8x512xf32>,
    %cst_12 = arith.constant dense<0.000000e+00> : vector<8xf32>
    %13 = vector.multi_reduction <add>, %9, %cst_12 [1] : vector<8x512xf32> to vector<8xf32>
    %14 = vector.shape_cast %13 : vector<8xf32> to vector<8x1xf32>
    %15 = arith.mulf %9, %9 : vector<8x512xf32>
    %cst_13 = arith.constant dense<0.000000e+00> : vector<8xf32>
    %16 = vector.multi_reduction <add>, %15, %cst_13 [1] : vector<8x512xf32> to vector<8xf32>
    %17 = vector.shape_cast %16 : vector<8xf32> to vector<8x1xf32>
    %18 = tpu.concatenate %14, %17 in 1 : vector<8x1xf32>, vector<8x1xf32> -> vector<8x2xf32>
    %c0_14 = arith.constant 0 : index
    %c0_15 = arith.constant 0 : index
    %c0_16 = arith.constant 0 : index
    %c0_17 = arith.constant 0 : index
    %19 = vector.load %arg7[%c0_14, %c0_15, %c0_16, %c0_17] : memref<1x1x8x2xf32, #tpu.memory_space<vmem>>, vector<1x1x8x2xf32>
    %20 = vector.shape_cast %19 : vector<1x1x8x2xf32> to vector<8x2xf32>
    %21 = vector.shape_cast %18 : vector<8x2xf32> to vector<1x1x8x2xf32>
    tpu.vector_store %arg7[%c0_14, %c0_15, %c0_16, %c0_17], %21 {strides = array<i32>} : memref<1x1x8x2xf32, #tpu.memory_space<vmem>>, vector<1x1x8x2xf32>,
    return
  }
  func.func @transform_0(%arg0: i32, %arg1: i32) -> (i32, i32, i32) {
    %c0_i32 = arith.constant 0 : i32
    %c0_i32_0 = arith.constant 0 : i32
    return %arg0, %c0_i32, %arg1 : i32, i32, i32
  }
  func.func @transform_1(%arg0: i32, %arg1: i32) -> (i32, i32, i32) {
    %c0_i32 = arith.constant 0 : i32
    %c0_i32_0 = arith.constant 0 : i32
    return %arg0, %c0_i32, %arg1 : i32, i32, i32
  }
  func.func @transform_2(%arg0: i32, %arg1: i32) -> (i32, i32) {
    %c0_i32 = arith.constant 0 : i32
    %c0_i32_0 = arith.constant 0 : i32
    %c0_i32_1 = arith.constant 0 : i32
    return %c0_i32, %c0_i32_0 : i32, i32
  }
  func.func @transform_3(%arg0: i32, %arg1: i32) -> (i32, i32) {
    %c0_i32 = arith.constant 0 : i32
    %c0_i32_0 = arith.constant 0 : i32
    %c0_i32_1 = arith.constant 0 : i32
    return %c0_i32, %c0_i32_0 : i32, i32
  }
  func.func @transform_4(%arg0: i32, %arg1: i32) -> (i32, i32, i32) {
    %c0_i32 = arith.constant 0 : i32
    %c0_i32_0 = arith.constant 0 : i32
    return %arg0, %c0_i32, %arg1 : i32, i32, i32
  }
  func.func @transform_5(%arg0: i32, %arg1: i32) -> (i32, i32, i32, i32) {
    %c0_i32 = arith.constant 0 : i32
    %c0_i32_0 = arith.constant 0 : i32
    %c0_i32_1 = arith.constant 0 : i32
    return %arg0, %arg1, %c0_i32, %c0_i32_0 : i32, i32, i32, i32
  }
}

module attributes {stable_mosaic.version = 11 : i64} {
  func.func @_bn_relu_kernel(%arg0: i32, %arg1: i32, %arg2: memref<1x8x512xf32, #tpu.memory_space<vmem>>, %arg3: memref<8x1xf32, #tpu.memory_space<vmem>>, %arg4: memref<8x1xf32, #tpu.memory_space<vmem>>, %arg5: memref<1x8x512xf32, #tpu.memory_space<vmem>>) attributes {dimension_semantics = [#tpu.dimension_semantics<parallel>, #tpu.dimension_semantics<parallel>], iteration_bounds = array<i64: 2, 1>, scalar_prefetch = 0 : i64, scratch_operands = 0 : i64, tpu.core_type = #tpu.core_type<tc>, window_params = [{transform_indices = @transform_0, window_bounds = array<i64: 1, 8, 512>}, {pipeline_mode = #tpu.pipeline_mode<synchronous>, transform_indices = @transform_1, window_bounds = array<i64: 8, 1>}, {pipeline_mode = #tpu.pipeline_mode<synchronous>, transform_indices = @transform_2, window_bounds = array<i64: 8, 1>}, {transform_indices = @transform_3, window_bounds = array<i64: 1, 8, 512>}]} {
    %c0 = arith.constant 0 : index
    %c0_0 = arith.constant 0 : index
    %c0_1 = arith.constant 0 : index
    %0 = vector.load %arg2[%c0, %c0_0, %c0_1] : memref<1x8x512xf32, #tpu.memory_space<vmem>>, vector<1x8x512xf32>
    %1 = vector.shape_cast %0 : vector<1x8x512xf32> to vector<8x512xf32>
    %c0_2 = arith.constant 0 : index
    %c0_3 = arith.constant 0 : index
    %2 = vector.load %arg3[%c0_2, %c0_3] : memref<8x1xf32, #tpu.memory_space<vmem>>, vector<8x1xf32>
    %3 = vector.broadcast %2 : vector<8x1xf32> to vector<8x512xf32>
    %4 = arith.mulf %1, %3 : vector<8x512xf32>
    %c0_4 = arith.constant 0 : index
    %c0_5 = arith.constant 0 : index
    %5 = vector.load %arg4[%c0_4, %c0_5] : memref<8x1xf32, #tpu.memory_space<vmem>>, vector<8x1xf32>
    %6 = vector.broadcast %5 : vector<8x1xf32> to vector<8x512xf32>
    %7 = arith.addf %4, %6 : vector<8x512xf32>
    %cst = arith.constant 0.000000e+00 : f32
    %8 = vector.broadcast %cst : f32 to vector<8x512xf32>
    %9 = arith.maximumf %7, %8 : vector<8x512xf32>
    %c0_6 = arith.constant 0 : index
    %c0_7 = arith.constant 0 : index
    %c0_8 = arith.constant 0 : index
    %10 = vector.load %arg5[%c0_6, %c0_7, %c0_8] : memref<1x8x512xf32, #tpu.memory_space<vmem>>, vector<1x8x512xf32>
    %11 = vector.shape_cast %10 : vector<1x8x512xf32> to vector<8x512xf32>
    %12 = vector.shape_cast %9 : vector<8x512xf32> to vector<1x8x512xf32>
    tpu.vector_store %arg5[%c0_6, %c0_7, %c0_8], %12 {strides = array<i32>} : memref<1x8x512xf32, #tpu.memory_space<vmem>>, vector<1x8x512xf32>,
    return
  }
  func.func @transform_0(%arg0: i32, %arg1: i32) -> (i32, i32, i32) {
    %c0_i32 = arith.constant 0 : i32
    %c0_i32_0 = arith.constant 0 : i32
    return %arg0, %c0_i32, %arg1 : i32, i32, i32
  }
  func.func @transform_1(%arg0: i32, %arg1: i32) -> (i32, i32) {
    %c0_i32 = arith.constant 0 : i32
    %c0_i32_0 = arith.constant 0 : i32
    %c0_i32_1 = arith.constant 0 : i32
    return %c0_i32, %c0_i32_0 : i32, i32
  }
  func.func @transform_2(%arg0: i32, %arg1: i32) -> (i32, i32) {
    %c0_i32 = arith.constant 0 : i32
    %c0_i32_0 = arith.constant 0 : i32
    %c0_i32_1 = arith.constant 0 : i32
    return %c0_i32, %c0_i32_0 : i32, i32
  }
  func.func @transform_3(%arg0: i32, %arg1: i32) -> (i32, i32, i32) {
    %c0_i32 = arith.constant 0 : i32
    %c0_i32_0 = arith.constant 0 : i32
    return %arg0, %c0_i32, %arg1 : i32, i32, i32
  }
}

module attributes {stable_mosaic.version = 11 : i64} {
  func.func @_bn_relu_kernel(%arg0: i32, %arg1: i32, %arg2: memref<1x8x512xf32, #tpu.memory_space<vmem>>, %arg3: memref<8x1xf32, #tpu.memory_space<vmem>>, %arg4: memref<8x1xf32, #tpu.memory_space<vmem>>, %arg5: memref<1x8x512xf32, #tpu.memory_space<vmem>>) attributes {dimension_semantics = [#tpu.dimension_semantics<parallel>, #tpu.dimension_semantics<parallel>], iteration_bounds = array<i64: 2, 1>, scalar_prefetch = 0 : i64, scratch_operands = 0 : i64, tpu.core_type = #tpu.core_type<tc>, window_params = [{transform_indices = @transform_0, window_bounds = array<i64: 1, 8, 512>}, {pipeline_mode = #tpu.pipeline_mode<synchronous>, transform_indices = @transform_1, window_bounds = array<i64: 8, 1>}, {pipeline_mode = #tpu.pipeline_mode<synchronous>, transform_indices = @transform_2, window_bounds = array<i64: 8, 1>}, {transform_indices = @transform_3, window_bounds = array<i64: 1, 8, 512>}]} {
    %c0 = arith.constant 0 : index
    %c0_0 = arith.constant 0 : index
    %c0_1 = arith.constant 0 : index
    %0 = vector.load %arg2[%c0, %c0_0, %c0_1] : memref<1x8x512xf32, #tpu.memory_space<vmem>>, vector<1x8x512xf32>
    %1 = vector.shape_cast %0 : vector<1x8x512xf32> to vector<8x512xf32>
    %c0_2 = arith.constant 0 : index
    %c0_3 = arith.constant 0 : index
    %2 = vector.load %arg3[%c0_2, %c0_3] : memref<8x1xf32, #tpu.memory_space<vmem>>, vector<8x1xf32>
    %3 = vector.broadcast %2 : vector<8x1xf32> to vector<8x512xf32>
    %4 = arith.mulf %1, %3 : vector<8x512xf32>
    %c0_4 = arith.constant 0 : index
    %c0_5 = arith.constant 0 : index
    %5 = vector.load %arg4[%c0_4, %c0_5] : memref<8x1xf32, #tpu.memory_space<vmem>>, vector<8x1xf32>
    %6 = vector.broadcast %5 : vector<8x1xf32> to vector<8x512xf32>
    %7 = arith.addf %4, %6 : vector<8x512xf32>
    %c0_6 = arith.constant 0 : index
    %c0_7 = arith.constant 0 : index
    %c0_8 = arith.constant 0 : index
    %8 = vector.load %arg5[%c0_6, %c0_7, %c0_8] : memref<1x8x512xf32, #tpu.memory_space<vmem>>, vector<1x8x512xf32>
    %9 = vector.shape_cast %8 : vector<1x8x512xf32> to vector<8x512xf32>
    %10 = vector.shape_cast %7 : vector<8x512xf32> to vector<1x8x512xf32>
    tpu.vector_store %arg5[%c0_6, %c0_7, %c0_8], %10 {strides = array<i32>} : memref<1x8x512xf32, #tpu.memory_space<vmem>>, vector<1x8x512xf32>,
    return
  }
  func.func @transform_0(%arg0: i32, %arg1: i32) -> (i32, i32, i32) {
    %c0_i32 = arith.constant 0 : i32
    %c0_i32_0 = arith.constant 0 : i32
    return %arg0, %c0_i32, %arg1 : i32, i32, i32
  }
  func.func @transform_1(%arg0: i32, %arg1: i32) -> (i32, i32) {
    %c0_i32 = arith.constant 0 : i32
    %c0_i32_0 = arith.constant 0 : i32
    %c0_i32_1 = arith.constant 0 : i32
    return %c0_i32, %c0_i32_0 : i32, i32
  }
  func.func @transform_2(%arg0: i32, %arg1: i32) -> (i32, i32) {
    %c0_i32 = arith.constant 0 : i32
    %c0_i32_0 = arith.constant 0 : i32
    %c0_i32_1 = arith.constant 0 : i32
    return %c0_i32, %c0_i32_0 : i32, i32
  }
  func.func @transform_3(%arg0: i32, %arg1: i32) -> (i32, i32, i32) {
    %c0_i32 = arith.constant 0 : i32
    %c0_i32_0 = arith.constant 0 : i32
    return %arg0, %c0_i32, %arg1 : i32, i32, i32
  }
}

module attributes {stable_mosaic.version = 11 : i64} {
  func.func @_fc_tail_kernel(%arg0: i32, %arg1: i32, %arg2: memref<1x8x512xf32, #tpu.memory_space<vmem>>, %arg3: memref<128x8xf32, #tpu.memory_space<vmem>>, %arg4: memref<128x1xf32, #tpu.memory_space<vmem>>, %arg5: memref<1x128xf32, #tpu.memory_space<vmem>>, %arg6: memref<1x1xf32, #tpu.memory_space<vmem>>, %arg7: memref<1x1x512xf32, #tpu.memory_space<vmem>>) attributes {dimension_semantics = [#tpu.dimension_semantics<parallel>, #tpu.dimension_semantics<parallel>], iteration_bounds = array<i64: 2, 1>, scalar_prefetch = 0 : i64, scratch_operands = 0 : i64, tpu.core_type = #tpu.core_type<tc>, window_params = [{transform_indices = @transform_0, window_bounds = array<i64: 1, 8, 512>}, {pipeline_mode = #tpu.pipeline_mode<synchronous>, transform_indices = @transform_1, window_bounds = array<i64: 128, 8>}, {pipeline_mode = #tpu.pipeline_mode<synchronous>, transform_indices = @transform_2, window_bounds = array<i64: 128, 1>}, {pipeline_mode = #tpu.pipeline_mode<synchronous>, transform_indices = @transform_3, window_bounds = array<i64: 1, 128>}, {pipeline_mode = #tpu.pipeline_mode<synchronous>, transform_indices = @transform_4, window_bounds = array<i64: 1, 1>}, {transform_indices = @transform_5, window_bounds = array<i64: 1, 1, 512>}]} {
    %c0 = arith.constant 0 : index
    %c0_0 = arith.constant 0 : index
    %0 = vector.load %arg3[%c0, %c0_0] : memref<128x8xf32, #tpu.memory_space<vmem>>, vector<128x8xf32>
    %c0_1 = arith.constant 0 : index
    %c0_2 = arith.constant 0 : index
    %c0_3 = arith.constant 0 : index
    %1 = vector.load %arg2[%c0_1, %c0_2, %c0_3] : memref<1x8x512xf32, #tpu.memory_space<vmem>>, vector<1x8x512xf32>
    %2 = vector.shape_cast %1 : vector<1x8x512xf32> to vector<8x512xf32>
    %cst = arith.constant dense<0.000000e+00> : vector<128x512xf32>
    %3 = tpu.matmul %0, %2, %cst {dimension_numbers = #tpu.dot_dimension_numbers<[1], [0], [0], [1], [0, 0, 1, 1], [], []>} : vector<128x8xf32>, vector<8x512xf32>, vector<128x512xf32> -> vector<128x512xf32>
    %c0_4 = arith.constant 0 : index
    %c0_5 = arith.constant 0 : index
    %4 = vector.load %arg4[%c0_4, %c0_5] : memref<128x1xf32, #tpu.memory_space<vmem>>, vector<128x1xf32>
    %5 = vector.broadcast %4 : vector<128x1xf32> to vector<128x512xf32>
    %6 = arith.addf %3, %5 : vector<128x512xf32>
    %cst_6 = arith.constant 0.000000e+00 : f32
    %7 = vector.broadcast %cst_6 : f32 to vector<128x512xf32>
    %8 = arith.maximumf %6, %7 : vector<128x512xf32>
    %c0_7 = arith.constant 0 : index
    %c0_8 = arith.constant 0 : index
    %9 = vector.load %arg5[%c0_7, %c0_8] : memref<1x128xf32, #tpu.memory_space<vmem>>, vector<1x128xf32>
    %cst_9 = arith.constant dense<0.000000e+00> : vector<1x512xf32>
    %10 = tpu.matmul %9, %8, %cst_9 {dimension_numbers = #tpu.dot_dimension_numbers<[1], [0], [0], [1], [0, 0, 1, 1], [], []>} : vector<1x128xf32>, vector<128x512xf32>, vector<1x512xf32> -> vector<1x512xf32>
    %c0_10 = arith.constant 0 : index
    %c0_11 = arith.constant 0 : index
    %11 = vector.load %arg6[%c0_10, %c0_11] : memref<1x1xf32, #tpu.memory_space<vmem>>, vector<1x1xf32>
    %12 = vector.broadcast %11 : vector<1x1xf32> to vector<1x512xf32>
    %13 = arith.addf %10, %12 : vector<1x512xf32>
    %c0_12 = arith.constant 0 : index
    %c0_13 = arith.constant 0 : index
    %c0_14 = arith.constant 0 : index
    %14 = vector.load %arg7[%c0_12, %c0_13, %c0_14] : memref<1x1x512xf32, #tpu.memory_space<vmem>>, vector<1x1x512xf32>
    %15 = vector.shape_cast %14 : vector<1x1x512xf32> to vector<1x512xf32>
    %16 = vector.shape_cast %13 : vector<1x512xf32> to vector<1x1x512xf32>
    tpu.vector_store %arg7[%c0_12, %c0_13, %c0_14], %16 {strides = array<i32>} : memref<1x1x512xf32, #tpu.memory_space<vmem>>, vector<1x1x512xf32>,
    return
  }
  func.func @transform_0(%arg0: i32, %arg1: i32) -> (i32, i32, i32) {
    %c0_i32 = arith.constant 0 : i32
    %c0_i32_0 = arith.constant 0 : i32
    return %arg0, %c0_i32, %arg1 : i32, i32, i32
  }
  func.func @transform_1(%arg0: i32, %arg1: i32) -> (i32, i32) {
    %c0_i32 = arith.constant 0 : i32
    %c0_i32_0 = arith.constant 0 : i32
    %c0_i32_1 = arith.constant 0 : i32
    return %c0_i32, %c0_i32_0 : i32, i32
  }
  func.func @transform_2(%arg0: i32, %arg1: i32) -> (i32, i32) {
    %c0_i32 = arith.constant 0 : i32
    %c0_i32_0 = arith.constant 0 : i32
    %c0_i32_1 = arith.constant 0 : i32
    return %c0_i32, %c0_i32_0 : i32, i32
  }
  func.func @transform_3(%arg0: i32, %arg1: i32) -> (i32, i32) {
    %c0_i32 = arith.constant 0 : i32
    %c0_i32_0 = arith.constant 0 : i32
    %c0_i32_1 = arith.constant 0 : i32
    return %c0_i32, %c0_i32_0 : i32, i32
  }
  func.func @transform_4(%arg0: i32, %arg1: i32) -> (i32, i32) {
    %c0_i32 = arith.constant 0 : i32
    %c0_i32_0 = arith.constant 0 : i32
    %c0_i32_1 = arith.constant 0 : i32
    return %c0_i32, %c0_i32_0 : i32, i32
  }
  func.func @transform_5(%arg0: i32, %arg1: i32) -> (i32, i32, i32) {
    %c0_i32 = arith.constant 0 : i32
    %c0_i32_0 = arith.constant 0 : i32
    return %arg0, %c0_i32, %arg1 : i32, i32, i32
  }
}

</mosaic_0001>

<llo_original>
// kernel: net3d_forward.14
$region0: #{net3d_forward.14}
  #allocation0 [shape = 'u32[]', space=smem, size = 0x4, offset = 0x4, fixed_abs, tag = 'smem constant byte address 0x4 - core index']
  #allocation1 [shape = 'u32[144,128]{1,0:T(1,128)}', space=vmem, size = 0x12000, scoped, tag = 'internal scratch']
  %s0 = inlined_call_operand.vmem [shape: f32[2,3,512], index: 0, kind: input, shape index: {}]
  %s1 = inlined_call_operand.vmem [shape: f32[8,3], index: 1, kind: input, shape index: {}]
  %s2 = inlined_call_operand.vmem [shape: f32[8,1], index: 2, kind: input, shape index: {}]
  %s3 = inlined_call_operand.vmem [shape: f32[2,8,512], index: 3, kind: output, shape index: {}]
  %s4 = sld [smem:[#allocation0]]
  $region45: #{net3d_forward.14} parent=0
    _
  %s6 = ssub.s32 1, %s4
  %s7 = scalar_select 0, %s6, %s4
  loop: start=0, step=1, limit=4
  $region2: #{net3d_forward.14} parent=0 // loop_pre_header
    _
  $region3: #{net3d_forward.14} parent=0 // loop_header
    %s9 = sphi 0, %s13
    %p10 = scmp.ge.s32.totalorder %s9, 4
    %s16 = sphi 0, %s28
    %s17 = sphi 0, %s24
    %s18 = sphi 0, %s16
    %s19 = sphi 0, %s17
    %s20 = sphi 0, %s18
    %s21 = sphi 0, %s19
    %s33 = sphi 0, %s35
    %s36 = sphi 0, %s33
    %s37 = sphi 0, %s36
    %s53 = sphi 0, %s37
    %s57 = sphi 0, %s57
    %s59 = sphi 0, %s57
    %s60 = sphi 0, %s59
    %s74 = sphi 0, %s60
    %s78 = sphi 0, %s78
    %s80 = sphi 0, %s78
    %s81 = sphi 0, %s80
    %s95 = sphi 0, %s81
    %s103 = sphi 0, %s105
    %s106 = sphi 0, %s103
    %s107 = sphi 0, %s106
    %s123 = sphi 0, %s107
  $region4: #{net3d_forward.14} parent=0 // loop_header_branch
    %12 = sbr.rel (%p10) target = $region8
  $region5: #{net3d_forward.14} parent=0 // loop_body
    %s14 = ssub.s32 %s9, 1
    %s15 = ssub.s32 %s9, 2
    %s22 = sadd.s32 1, %s17
    %p23 = scmp.ge.s32.totalorder %s22, 1
    %s24 = scalar_select %p23, 0, %s22
    %s25 = sadd.s32 1, %s16
    %s26 = scalar_select %p23, %s25, %s16
    %p27 = scmp.ge.s32.totalorder %s26, 2
    %s28 = scalar_select %p27, 0, %s26
    %s29 = ssub.s32 %s16, %s28
    %s30 = ssub.s32 %s17, %s24
    %s31 = sor.u32 %s29, %s30
    %p32 = scmp.eq.s32.totalorder %s31, 0
    %s34 = sadd.s32 %s33, 1
    %s35 = scalar_select %p32, %s33, %s34
    %p38 = pneg %p32
    %p39 = scmp.eq.s32.totalorder %s9, 1
    %p40 = por %p38, %p39
    %p41 = scmp.ne.s32.totalorder %s33, %s36
    %p42 = scmp.eq.s32.totalorder %s9, 0
    %p43 = por %p41, %p42
    %p44 = scmp.ne.s32.totalorder %s33, %s36
    %p45 = scmp.eq.s32.totalorder %s14, 1
    %p46 = por %p44, %p45
    %p47 = scmp.ne.s32.totalorder %s36, %s37
    %p48 = scmp.eq.s32.totalorder %s14, 0
    %p49 = por %p47, %p48
    %p50 = scmp.ne.s32.totalorder %s36, %s37
    %p51 = scmp.eq.s32.totalorder %s15, 1
    %p52 = por %p50, %p51
    %p54 = scmp.ne.s32.totalorder %s37, %s53
    %p55 = scmp.eq.s32.totalorder %s15, 0
    %p56 = por %p54, %p55
    %s58 = sadd.s32 %s57, 1
    %p61 = scmp.eq.s32.totalorder %s9, 1
    %p62 = scmp.ne.s32.totalorder %s57, %s59
    %p63 = scmp.eq.s32.totalorder %s9, 0
    %p64 = por %p62, %p63
    %p65 = scmp.ne.s32.totalorder %s57, %s59
    %p66 = scmp.eq.s32.totalorder %s14, 1
    %p67 = por %p65, %p66
    %p68 = scmp.ne.s32.totalorder %s59, %s60
    %p69 = scmp.eq.s32.totalorder %s14, 0
    %p70 = por %p68, %p69
    %p71 = scmp.ne.s32.totalorder %s59, %s60
    %p72 = scmp.eq.s32.totalorder %s15, 1
    %p73 = por %p71, %p72
    %p75 = scmp.ne.s32.totalorder %s60, %s74
    %p76 = scmp.eq.s32.totalorder %s15, 0
    %p77 = por %p75, %p76
    %s79 = sadd.s32 %s78, 1
    %p82 = scmp.eq.s32.totalorder %s9, 1
    %p83 = scmp.ne.s32.totalorder %s78, %s80
    %p84 = scmp.eq.s32.totalorder %s9, 0
    %p85 = por %p83, %p84
    %p86 = scmp.ne.s32.totalorder %s78, %s80
    %p87 = scmp.eq.s32.totalorder %s14, 1
    %p88 = por %p86, %p87
    %p89 = scmp.ne.s32.totalorder %s80, %s81
    %p90 = scmp.eq.s32.totalorder %s14, 0
    %p91 = por %p89, %p90
    %p92 = scmp.ne.s32.totalorder %s80, %s81
    %p93 = scmp.eq.s32.totalorder %s15, 1
    %p94 = por %p92, %p93
    %p96 = scmp.ne.s32.totalorder %s81, %s95
    %p97 = scmp.eq.s32.totalorder %s15, 0
    %p98 = por %p96, %p97
    %s99 = ssub.s32 %s16, %s28
    %s100 = ssub.s32 %s17, %s24
    %s101 = sor.u32 %s99, %s100
    %p102 = scmp.eq.s32.totalorder %s101, 0
    %s104 = sadd.s32 %s103, 1
    %s105 = scalar_select %p102, %s103, %s104
    %p108 = pneg %p102
    %p109 = scmp.eq.s32.totalorder %s9, 1
    %p110 = por %p108, %p109
    %p111 = scmp.ne.s32.totalorder %s103, %s106
    %p112 = scmp.eq.s32.totalorder %s9, 0
    %p113 = por %p111, %p112
    %p114 = scmp.ne.s32.totalorder %s103, %s106
    %p115 = scmp.eq.s32.totalorder %s14, 1
    %p116 = por %p114, %p115
    %p117 = scmp.ne.s32.totalorder %s106, %s107
    %p118 = scmp.eq.s32.totalorder %s14, 0
    %p119 = por %p117, %p118
    %p120 = scmp.ne.s32.totalorder %s106, %s107
    %p121 = scmp.eq.s32.totalorder %s15, 1
    %p122 = por %p120, %p121
    %p124 = scmp.ne.s32.totalorder %s107, %s123
    %p125 = scmp.eq.s32.totalorder %s15, 0
    %p126 = por %p124, %p125
    %p127 = scmp.le.s32.totalorder 1, %s9
    %p128 = scmp.lt.s32.totalorder %s9, 3
    %p129 = pnand %p127, %p128
    %p130 = pneg %p129
    // Predicated region
    $region9: #{net3d_forward.14} parent=5 // pred_check
      _
    $region10: #{net3d_forward.14} parent=5 // pred_check_branch
      %132 = sbr.rel (%p129) target = $region12
    $region11: #{net3d_forward.14} parent=5 // pred_region
      %s133 = ssub.s32 %s9, 1
      // Predicated region
      $region13: #{net3d_forward.14} parent=11 // pred_check
        %p134 = pneg %p70
      $region14: #{net3d_forward.14} parent=11 // pred_check_branch
        %136 = sbr.rel (%p134) target = $region16
      $region15: #{net3d_forward.14} parent=11 // pred_region
        _
      $region16: #{net3d_forward.14} parent=11 // pred_fallthru
        _
      // Predicated region
      $region17: #{net3d_forward.14} parent=11 // pred_check
        %p137 = pneg %p91
      $region18: #{net3d_forward.14} parent=11 // pred_check_branch
        %139 = sbr.rel (%p137) target = $region20
      $region19: #{net3d_forward.14} parent=11 // pred_region
        _
      $region20: #{net3d_forward.14} parent=11 // pred_fallthru
        _
    $region12: #{net3d_forward.14} parent=5 // pred_fallthru
      _
    %p140 = scmp.lt.s32.totalorder %s9, 2
    // Predicated region
    $region21: #{net3d_forward.14} parent=5 // pred_check
      %p141 = pneg %p140
    $region22: #{net3d_forward.14} parent=5 // pred_check_branch
      %143 = sbr.rel (%p141) target = $region24
    $region23: #{net3d_forward.14} parent=5 // pred_region
      // Predicated region
      $region25: #{net3d_forward.14} parent=23 // pred_check
        %p144 = pneg %p43
      $region26: #{net3d_forward.14} parent=23 // pred_check_branch
        %146 = sbr.rel (%p144) target = $region28
      $region27: #{net3d_forward.14} parent=23 // pred_region
        %s147 = smul.u32 4, %s17
        %p148 = scmp.lt.s32.totalorder %s16, 1
        %s149 = scalar_select %p148, %s16, 1
        %p150 = scmp.lt.s32.totalorder %s147, 3
        %s151 = scalar_select %p150, %s147, 3
        %s152 = smul.addr %s149, 4
        %s153 = sadd.s32 %s151, %s152
        %s154 = smul.addr %s153, 4
        %s155 = scalar_lea.vmem %s0, %s154
        %s156 = smul.u32 4, %s17
      $region28: #{net3d_forward.14} parent=23 // pred_fallthru
        _
    $region24: #{net3d_forward.14} parent=5 // pred_fallthru
      _
    %p157 = scmp.le.s32.totalorder 1, %s9
    %p158 = scmp.lt.s32.totalorder %s9, 3
    %p159 = pnand %p157, %p158
    %p160 = pneg %p159
    // Predicated region
    $region29: #{net3d_forward.14} parent=5 // pred_check
      _
    $region30: #{net3d_forward.14} parent=5 // pred_check_branch
      %162 = sbr.rel (%p159) target = $region32
    $region31: #{net3d_forward.14} parent=5 // pred_region
      %s163 = ssub.s32 %s9, 1
      %s164 = smul.u32 4, %s19
      %p165 = scmp.lt.s32.totalorder %s18, 1
      %s166 = scalar_select %p165, %s18, 1
      %p167 = scmp.lt.s32.totalorder %s164, 3
      %s168 = scalar_select %p167, %s164, 3
      %s169 = smul.addr %s166, 4
      %s170 = sadd.s32 %s168, %s169
      %s171 = smul.addr %s170, 4
      %s172 = scalar_lea.vmem %s0, %s171
      %p173 = pneg %p49
      %p174 = pneg %p46
      %p175 = pneg %p70
      %p176 = pneg %p67
      %p177 = pneg %p91
      %p178 = pneg %p88
      %p179 = pneg %p119
      %p180 = pneg %p116
      %s181 = smul.u32 4, %s19
      %p182 = scmp.lt.s32.totalorder %s18, 1
      %s183 = scalar_select %p182, %s18, 1
      %p184 = scmp.lt.s32.totalorder %s181, 3
      %s185 = scalar_select %p184, %s181, 3
      %s186 = smul.addr %s183, 4
      %s187 = sadd.s32 %s185, %s186
      %s188 = smul.addr %s187, 8
      %s189 = scalar_lea.vmem %s3, %s188
      %s190 = smul.u32 4, %s19
      %p191 = scmp.lt.s32.totalorder %s18, 1
      %s192 = scalar_select %p191, %s18, 1
      %p193 = scmp.lt.s32.totalorder %s190, 3
      %s194 = scalar_select %p193, %s190, 3
      %s195 = smul.addr %s192, 4
      %s196 = sadd.s32 %s194, %s195
      %s197 = smul.addr %s196, 4
      %s198 = scalar_lea.vmem %s0, %s197
      %s199 = smul.u32 4, %s19
      %s200 = smul.u32 4, %s19
      %p201 = scmp.lt.s32.totalorder %s18, 1
      %s202 = scalar_select %p201, %s18, 1
      %p203 = scmp.lt.s32.totalorder %s200, 3
      %s204 = scalar_select %p203, %s200, 3
      %s205 = smul.addr %s202, 4
      %s206 = sadd.s32 %s204, %s205
      %s207 = smul.addr %s206, 8
      %s208 = scalar_lea.vmem %s3, %s207
      %s209 = smul.u32 4, %s19
      %v210 = vld [vmem:[%s1] sm:$0xff]
      %v211 = vld [vmem:[%s198] sm:$0x77]
      %v212 = vld [vmem:[%s198 + $0x8] sm:$0x77]
      %v213 = vld [vmem:[%s2] sm:$0xff]
      %215 = vset.pattern.permute.xlu0 0
      %216 = vperm.xlu0 %215, %v213
      %v217 = vpop.permute.xlu0 %216
      %v221 = vcombine.high %v211, %v211
      %v222 = vcombine.high %v212, %v212
      %vm223 = vcmask 23552
      %v225 = vsel %vm223, %v210, 0
      %vm227 = vcmask 1042432
      %v228 = vsel %vm227, %v211, 0
      %v230 = vsel %vm227, %v221, 0
      %v232 = vsel %vm227, %v212, 0
      %v234 = vsel %vm227, %v222, 0
      %236 = vmatprep.subr.mxu0 0.0
      %237 = vmatpush1.msra.mxu0 0.0
      %238 = vmatprep.subr.mxu0 0.0
      %239 = vmatpush1.msra.mxu0 0.0
      %240 = vmatprep.subr.mxu0 0.0
      %241 = vmatpush1.msra.mxu0 0.0
      %242 = vmatprep.subr.mxu0 0.0
      %243 = vmatpush1.msra.mxu0 0.0
      %244 = vmatprep.subr.mxu0 0.0
      %245 = vmatpush1.msra.mxu0 0.0
      %246 = vmatprep.subr.mxu0 0.0
      %247 = vmatpush1.msra.mxu0 0.0
      %248 = vmatprep.subr.mxu0 0.0
      %249 = vmatpush1.msra.mxu0 0.0
      %250 = vmatprep.subr.mxu0 0.0
      %251 = vmatpush1.msra.mxu0 0.0
      %252 = vmatprep.subr.mxu0 0.0
      %253 = vmatpush1.msra.mxu0 0.0
      %254 = vmatprep.subr.mxu0 0.0
      %255 = vmatpush1.msra.mxu0 0.0
      %256 = vmatprep.subr.mxu0 0.0
      %257 = vmatpush1.msra.mxu0 0.0
      %258 = vmatprep.subr.mxu0 0.0
      %259 = vmatpush1.msra.mxu0 0.0
      %260 = vmatprep.subr.mxu0 0.0
      %261 = vmatpush1.msra.mxu0 0.0
      %262 = vmatprep.subr.mxu0 0.0
      %263 = vmatpush1.msra.mxu0 0.0
      %264 = vmatprep.subr.mxu0 0.0
      %265 = vmatpush1.msra.mxu0 0.0
      %266 = vmatprep.subr.mxu0 %v230
      %267 = vmatpush1.msra.mxu0 %v228
      %268 = vmatprep.subr.mxu0 0.0
      %269 = vmatpush2.msra.mxu0 0.0
      %270 = vmatprep.subr.mxu0 0.0
      %271 = vmatpush2.msra.mxu0 0.0
      %272 = vmatprep.subr.mxu0 0.0
      %273 = vmatpush2.msra.mxu0 0.0
      %274 = vmatprep.subr.mxu0 0.0
      %275 = vmatpush2.msra.mxu0 0.0
      %276 = vmatprep.subr.mxu0 0.0
      %277 = vmatpush2.msra.mxu0 0.0
      %278 = vmatprep.subr.mxu0 0.0
      %279 = vmatpush2.msra.mxu0 0.0
      %280 = vmatprep.subr.mxu0 0.0
      %281 = vmatpush2.msra.mxu0 0.0
      %282 = vmatprep.subr.mxu0 0.0
      %283 = vmatpush2.msra.mxu0 0.0
      %284 = vmatprep.subr.mxu0 0.0
      %285 = vmatpush2.msra.mxu0 0.0
      %286 = vmatprep.subr.mxu0 0.0
      %287 = vmatpush2.msra.mxu0 0.0
      %288 = vmatprep.subr.mxu0 0.0
      %289 = vmatpush2.msra.mxu0 0.0
      %290 = vmatprep.subr.mxu0 0.0
      %291 = vmatpush2.msra.mxu0 0.0
      %292 = vmatprep.subr.mxu0 0.0
      %293 = vmatpush2.msra.mxu0 0.0
      %294 = vmatprep.subr.mxu0 0.0
      %295 = vmatpush2.msra.mxu0 0.0
      %296 = vmatprep.subr.mxu0 0.0
      %297 = vmatpush2.msra.mxu0 0.0
      %298 = vmatprep.subr.mxu0 0.0
      %299 = vmatpush2.msra.mxu0 0.0
      %300 = vmatprep.mubr.f32.mxu0 0.0
      %301 = vmatmul.mubr.f32.gmra.mxu0 %v225
      %v302 = vpop.f32.mrf.mxu0
      %v303 = vadd.f32 %v217, %v302
      %v304 = vpop.f32.mrf.mxu0
      %v305 = vadd.f32 %v217, %v304
      %306 = vdwg.mxu0
      %307 = vmatprep.subr.mxu0 0.0
      %308 = vmatpush1.msra.mxu0 0.0
      %309 = vmatprep.subr.mxu0 0.0
      %310 = vmatpush1.msra.mxu0 0.0
      %311 = vmatprep.subr.mxu0 0.0
      %312 = vmatpush1.msra.mxu0 0.0
      %313 = vmatprep.subr.mxu0 0.0
      %314 = vmatpush1.msra.mxu0 0.0
      %315 = vmatprep.subr.mxu0 0.0
      %316 = vmatpush1.msra.mxu0 0.0
      %317 = vmatprep.subr.mxu0 0.0
      %318 = vmatpush1.msra.mxu0 0.0
      %319 = vmatprep.subr.mxu0 0.0
      %320 = vmatpush1.msra.mxu0 0.0
      %321 = vmatprep.subr.mxu0 0.0
      %322 = vmatpush1.msra.mxu0 0.0
      %323 = vmatprep.subr.mxu0 0.0
      %324 = vmatpush1.msra.mxu0 0.0
      %325 = vmatprep.subr.mxu0 0.0
      %326 = vmatpush1.msra.mxu0 0.0
      %327 = vmatprep.subr.mxu0 0.0
      %328 = vmatpush1.msra.mxu0 0.0
      %329 = vmatprep.subr.mxu0 0.0
      %330 = vmatpush1.msra.mxu0 0.0
      %331 = vmatprep.subr.mxu0 0.0
      %332 = vmatpush1.msra.mxu0 0.0
      %333 = vmatprep.subr.mxu0 0.0
      %334 = vmatpush1.msra.mxu0 0.0
      %335 = vmatprep.subr.mxu0 0.0
      %336 = vmatpush1.msra.mxu0 0.0
      %337 = vmatprep.subr.mxu0 %v234
      %338 = vmatpush1.msra.mxu0 %v232
      %339 = vmatprep.subr.mxu0 0.0
      %340 = vmatpush2.msra.mxu0 0.0
      %341 = vmatprep.subr.mxu0 0.0
      %342 = vmatpush2.msra.mxu0 0.0
      %343 = vmatprep.subr.mxu0 0.0
      %344 = vmatpush2.msra.mxu0 0.0
      %345 = vmatprep.subr.mxu0 0.0
      %346 = vmatpush2.msra.mxu0 0.0
      %347 = vmatprep.subr.mxu0 0.0
      %348 = vmatpush2.msra.mxu0 0.0
      %349 = vmatprep.subr.mxu0 0.0
      %350 = vmatpush2.msra.mxu0 0.0
      %351 = vmatprep.subr.mxu0 0.0
      %352 = vmatpush2.msra.mxu0 0.0
      %353 = vmatprep.subr.mxu0 0.0
      %354 = vmatpush2.msra.mxu0 0.0
      %355 = vmatprep.subr.mxu0 0.0
      %356 = vmatpush2.msra.mxu0 0.0
      %357 = vmatprep.subr.mxu0 0.0
      %358 = vmatpush2.msra.mxu0 0.0
      %359 = vmatprep.subr.mxu0 0.0
      %360 = vmatpush2.msra.mxu0 0.0
      %361 = vmatprep.subr.mxu0 0.0
      %362 = vmatpush2.msra.mxu0 0.0
      %363 = vmatprep.subr.mxu0 0.0
      %364 = vmatpush2.msra.mxu0 0.0
      %365 = vmatprep.subr.mxu0 0.0
      %366 = vmatpush2.msra.mxu0 0.0
      %367 = vmatprep.subr.mxu0 0.0
      %368 = vmatpush2.msra.mxu0 0.0
      %369 = vmatprep.subr.mxu0 0.0
      %370 = vmatpush2.msra.mxu0 0.0
      %371 = vmatprep.mubr.f32.mxu0 0.0
      %372 = vmatmul.mubr.f32.gmra.mxu0 %v225
      %v373 = vpop.f32.mrf.mxu0
      %v374 = vadd.f32 %v217, %v373
      %v375 = vpop.f32.mrf.mxu0
      %v376 = vadd.f32 %v217, %v375
      %377 = vdwg.mxu0
      %378 = vst [vmem:[%s208] sm:$0xff] %v303
      %379 = vst [vmem:[%s208 + $0x8] sm:$0xff] %v305
      %380 = vst [vmem:[%s208 + $0x10] sm:$0xff] %v374
      %381 = vst [vmem:[%s208 + $0x18] sm:$0xff] %v376
      %s382 = smul.u32 4, %s19
      %p383 = scmp.lt.s32.totalorder %s18, 1
      %s384 = scalar_select %p383, %s18, 1
      %p385 = scmp.lt.s32.totalorder %s382, 3
      %s386 = scalar_select %p385, %s382, 3
      %s387 = smul.addr %s384, 4
      %s388 = sadd.s32 %s386, %s387
      %s389 = smul.addr %s388, 8
      %s390 = scalar_lea.vmem %s3, %s389
      // Predicated region
      $region33: #{net3d_forward.14} parent=31 // pred_check
        %p391 = pneg %p116
      $region34: #{net3d_forward.14} parent=31 // pred_check_branch
        %393 = sbr.rel (%p391) target = $region36
      $region35: #{net3d_forward.14} parent=31 // pred_region
        %s394 = smul.u32 4, %s19
      $region36: #{net3d_forward.14} parent=31 // pred_fallthru
        _
    $region32: #{net3d_forward.14} parent=5 // pred_fallthru
      _
    %p395 = scmp.le.s32.totalorder 2, %s9
    // Predicated region
    $region37: #{net3d_forward.14} parent=5 // pred_check
      %p396 = pneg %p395
    $region38: #{net3d_forward.14} parent=5 // pred_check_branch
      %398 = sbr.rel (%p396) target = $region40
    $region39: #{net3d_forward.14} parent=5 // pred_region
      %s399 = ssub.s32 %s9, 2
      // Predicated region
      $region41: #{net3d_forward.14} parent=39 // pred_check
        %p400 = pneg %p122
      $region42: #{net3d_forward.14} parent=39 // pred_check_branch
        %402 = sbr.rel (%p400) target = $region44
      $region43: #{net3d_forward.14} parent=39 // pred_region
        %s403 = smul.u32 4, %s21
        %p404 = scmp.lt.s32.totalorder %s20, 1
        %s405 = scalar_select %p404, %s20, 1
        %p406 = scmp.lt.s32.totalorder %s403, 3
        %s407 = scalar_select %p406, %s403, 3
        %s408 = smul.addr %s405, 4
        %s409 = sadd.s32 %s407, %s408
        %s410 = smul.addr %s409, 8
        %s411 = scalar_lea.vmem %s3, %s410
      $region44: #{net3d_forward.14} parent=39 // pred_fallthru
        _
    $region40: #{net3d_forward.14} parent=5 // pred_fallthru
      _
  $region6: #{net3d_forward.14} parent=0 // loop_footer
    %s13 = sadd.s32 1, %s9
  $region7: #{net3d_forward.14} parent=0 // loop_footer_branch
    %8 = sbr.rel target = $region3
  $region8: #{net3d_forward.14} parent=0 // loop_exit
    _

// kernel: net3d_forward.15
$region0: #{net3d_forward.15}
  #allocation0 [shape = 'u32[]', space=smem, size = 0x4, offset = 0x4, fixed_abs, tag = 'smem constant byte address 0x4 - core index']
  #allocation1 [shape = 'u32[144,128]{1,0:T(1,128)}', space=vmem, size = 0x12000, scoped, tag = 'internal scratch']
  %s0 = inlined_call_operand.vmem [shape: f32[4,2,8,128], index: 0, kind: input, shape index: {}]
  %s1 = inlined_call_operand.vmem [shape: f32[4,2,8,128], index: 1, kind: input, shape index: {}]
  %s2 = inlined_call_operand.vmem [shape: f32[4,8,8,128], index: 2, kind: input, shape index: {}]
  %s3 = inlined_call_operand.vmem [shape: f32[4,8,8,128], index: 3, kind: input, shape index: {}]
  %s4 = inlined_call_operand.vmem [shape: f32[4,2,8,128], index: 4, kind: output, shape index: {0}]
  %s5 = inlined_call_operand.vmem [shape: f32[4,2,8,128], index: 5, kind: output, shape index: {1}]
  %6 = xla_tuple %s4, %s5
  %s7 = sld [smem:[#allocation0]]
  $region57: #{net3d_forward.15} parent=0
    _
  %s9 = ssub.s32 1, %s7
  %s10 = scalar_select 0, %s9, %s7
  loop: start=0, step=1, limit=10
  $region2: #{net3d_forward.15} parent=0 // loop_pre_header
    _
  $region3: #{net3d_forward.15} parent=0 // loop_header
    %s12 = sphi 0, %s16
    %p13 = scmp.ge.s32.totalorder %s12, 10
    %s19 = sphi 0, %s38
    %s20 = sphi 0, %s34
    %s21 = sphi 0, %s30
    %s22 = sphi 0, %s19
    %s23 = sphi 0, %s20
    %s24 = sphi 0, %s21
    %s25 = sphi 0, %s22
    %s26 = sphi 0, %s23
    %s27 = sphi 0, %s24
    %s45 = sphi 0, %s47
    %s48 = sphi 0, %s45
    %s49 = sphi 0, %s48
    %s65 = sphi 0, %s49
    %s75 = sphi 0, %s77
    %s78 = sphi 0, %s75
    %s79 = sphi 0, %s78
    %s95 = sphi 0, %s79
    %s103 = sphi 0, %s105
    %s106 = sphi 0, %s103
    %s107 = sphi 0, %s106
    %s123 = sphi 0, %s107
    %s131 = sphi 0, %s133
    %s134 = sphi 0, %s131
    %s135 = sphi 0, %s134
    %s151 = sphi 0, %s135
    %s161 = sphi 0, %s163
    %s164 = sphi 0, %s161
    %s165 = sphi 0, %s164
    %s181 = sphi 0, %s165
    %s191 = sphi 0, %s193
    %s194 = sphi 0, %s191
    %s195 = sphi 0, %s194
    %s211 = sphi 0, %s195
  $region4: #{net3d_forward.15} parent=0 // loop_header_branch
    %15 = sbr.rel (%p13) target = $region8
  $region5: #{net3d_forward.15} parent=0 // loop_body
    %s17 = ssub.s32 %s12, 1
    %s18 = ssub.s32 %s12, 2
    %s28 = sadd.s32 1, %s21
    %p29 = scmp.ge.s32.totalorder %s28, 2
    %s30 = scalar_select %p29, 0, %s28
    %s31 = sadd.s32 1, %s20
    %s32 = scalar_select %p29, %s31, %s20
    %p33 = scmp.ge.s32.totalorder %s32, 1
    %s34 = scalar_select %p33, 0, %s32
    %s35 = sadd.s32 1, %s19
    %s36 = scalar_select %p33, %s35, %s19
    %p37 = scmp.ge.s32.totalorder %s36, 4
    %s38 = scalar_select %p37, 0, %s36
    %s39 = ssub.s32 %s19, %s38
    %s40 = ssub.s32 %s21, %s30
    %s41 = sor.u32 %s39, %s40
    %s42 = ssub.s32 %s20, %s34
    %s43 = sor.u32 %s41, %s42
    %p44 = scmp.eq.s32.totalorder %s43, 0
    %s46 = sadd.s32 %s45, 1
    %s47 = scalar_select %p44, %s45, %s46
    %p50 = pneg %p44
    %p51 = scmp.eq.s32.totalorder %s12, 7
    %p52 = por %p50, %p51
    %p53 = scmp.ne.s32.totalorder %s45, %s48
    %p54 = scmp.eq.s32.totalorder %s12, 0
    %p55 = por %p53, %p54
    %p56 = scmp.ne.s32.totalorder %s45, %s48
    %p57 = scmp.eq.s32.totalorder %s17, 7
    %p58 = por %p56, %p57
    %p59 = scmp.ne.s32.totalorder %s48, %s49
    %p60 = scmp.eq.s32.totalorder %s17, 0
    %p61 = por %p59, %p60
    %p62 = scmp.ne.s32.totalorder %s48, %s49
    %p63 = scmp.eq.s32.totalorder %s18, 7
    %p64 = por %p62, %p63
    %p66 = scmp.ne.s32.totalorder %s49, %s65
    %p67 = scmp.eq.s32.totalorder %s18, 0
    %p68 = por %p66, %p67
    %s69 = ssub.s32 %s19, %s38
    %s70 = ssub.s32 %s21, %s30
    %s71 = sor.u32 %s69, %s70
    %s72 = ssub.s32 %s20, %s34
    %s73 = sor.u32 %s71, %s72
    %p74 = scmp.eq.s32.totalorder %s73, 0
    %s76 = sadd.s32 %s75, 1
    %s77 = scalar_select %p74, %s75, %s76
    %p80 = pneg %p74
    %p81 = scmp.eq.s32.totalorder %s12, 7
    %p82 = por %p80, %p81
    %p83 = scmp.ne.s32.totalorder %s75, %s78
    %p84 = scmp.eq.s32.totalorder %s12, 0
    %p85 = por %p83, %p84
    %p86 = scmp.ne.s32.totalorder %s75, %s78
    %p87 = scmp.eq.s32.totalorder %s17, 7
    %p88 = por %p86, %p87
    %p89 = scmp.ne.s32.totalorder %s78, %s79
    %p90 = scmp.eq.s32.totalorder %s17, 0
    %p91 = por %p89, %p90
    %p92 = scmp.ne.s32.totalorder %s78, %s79
    %p93 = scmp.eq.s32.totalorder %s18, 7
    %p94 = por %p92, %p93
    %p96 = scmp.ne.s32.totalorder %s79, %s95
    %p97 = scmp.eq.s32.totalorder %s18, 0
    %p98 = por %p96, %p97
    %s99 = ssub.s32 %s19, %s38
    %s100 = ssub.s32 %s20, %s34
    %s101 = sor.u32 %s99, %s100
    %p102 = scmp.eq.s32.totalorder %s101, 0
    %s104 = sadd.s32 %s103, 1
    %s105 = scalar_select %p102, %s103, %s104
    %p108 = pneg %p102
    %p109 = scmp.eq.s32.totalorder %s12, 7
    %p110 = por %p108, %p109
    %p111 = scmp.ne.s32.totalorder %s103, %s106
    %p112 = scmp.eq.s32.totalorder %s12, 0
    %p113 = por %p111, %p112
    %p114 = scmp.ne.s32.totalorder %s103, %s106
    %p115 = scmp.eq.s32.totalorder %s17, 7
    %p116 = por %p114, %p115
    %p117 = scmp.ne.s32.totalorder %s106, %s107
    %p118 = scmp.eq.s32.totalorder %s17, 0
    %p119 = por %p117, %p118
    %p120 = scmp.ne.s32.totalorder %s106, %s107
    %p121 = scmp.eq.s32.totalorder %s18, 7
    %p122 = por %p120, %p121
    %p124 = scmp.ne.s32.totalorder %s107, %s123
    %p125 = scmp.eq.s32.totalorder %s18, 0
    %p126 = por %p124, %p125
    %s127 = ssub.s32 %s19, %s38
    %s128 = ssub.s32 %s20, %s34
    %s129 = sor.u32 %s127, %s128
    %p130 = scmp.eq.s32.totalorder %s129, 0
    %s132 = sadd.s32 %s131, 1
    %s133 = scalar_select %p130, %s131, %s132
    %p136 = pneg %p130
    %p137 = scmp.eq.s32.totalorder %s12, 7
    %p138 = por %p136, %p137
    %p139 = scmp.ne.s32.totalorder %s131, %s134
    %p140 = scmp.eq.s32.totalorder %s12, 0
    %p141 = por %p139, %p140
    %p142 = scmp.ne.s32.totalorder %s131, %s134
    %p143 = scmp.eq.s32.totalorder %s17, 7
    %p144 = por %p142, %p143
    %p145 = scmp.ne.s32.totalorder %s134, %s135
    %p146 = scmp.eq.s32.totalorder %s17, 0
    %p147 = por %p145, %p146
    %p148 = scmp.ne.s32.totalorder %s134, %s135
    %p149 = scmp.eq.s32.totalorder %s18, 7
    %p150 = por %p148, %p149
    %p152 = scmp.ne.s32.totalorder %s135, %s151
    %p153 = scmp.eq.s32.totalorder %s18, 0
    %p154 = por %p152, %p153
    %s155 = ssub.s32 %s19, %s38
    %s156 = ssub.s32 %s21, %s30
    %s157 = sor.u32 %s155, %s156
    %s158 = ssub.s32 %s20, %s34
    %s159 = sor.u32 %s157, %s158
    %p160 = scmp.eq.s32.totalorder %s159, 0
    %s162 = sadd.s32 %s161, 1
    %s163 = scalar_select %p160, %s161, %s162
    %p166 = pneg %p160
    %p167 = scmp.eq.s32.totalorder %s12, 7
    %p168 = por %p166, %p167
    %p169 = scmp.ne.s32.totalorder %s161, %s164
    %p170 = scmp.eq.s32.totalorder %s12, 0
    %p171 = por %p169, %p170
    %p172 = scmp.ne.s32.totalorder %s161, %s164
    %p173 = scmp.eq.s32.totalorder %s17, 7
    %p174 = por %p172, %p173
    %p175 = scmp.ne.s32.totalorder %s164, %s165
    %p176 = scmp.eq.s32.totalorder %s17, 0
    %p177 = por %p175, %p176
    %p178 = scmp.ne.s32.totalorder %s164, %s165
    %p179 = scmp.eq.s32.totalorder %s18, 7
    %p180 = por %p178, %p179
    %p182 = scmp.ne.s32.totalorder %s165, %s181
    %p183 = scmp.eq.s32.totalorder %s18, 0
    %p184 = por %p182, %p183
    %s185 = ssub.s32 %s19, %s38
    %s186 = ssub.s32 %s21, %s30
    %s187 = sor.u32 %s185, %s186
    %s188 = ssub.s32 %s20, %s34
    %s189 = sor.u32 %s187, %s188
    %p190 = scmp.eq.s32.totalorder %s189, 0
    %s192 = sadd.s32 %s191, 1
    %s193 = scalar_select %p190, %s191, %s192
    %p196 = pneg %p190
    %p197 = scmp.eq.s32.totalorder %s12, 7
    %p198 = por %p196, %p197
    %p199 = scmp.ne.s32.totalorder %s191, %s194
    %p200 = scmp.eq.s32.totalorder %s12, 0
    %p201 = por %p199, %p200
    %p202 = scmp.ne.s32.totalorder %s191, %s194
    %p203 = scmp.eq.s32.totalorder %s17, 7
    %p204 = por %p202, %p203
    %p205 = scmp.ne.s32.totalorder %s194, %s195
    %p206 = scmp.eq.s32.totalorder %s17, 0
    %p207 = por %p205, %p206
    %p208 = scmp.ne.s32.totalorder %s194, %s195
    %p209 = scmp.eq.s32.totalorder %s18, 7
    %p210 = por %p208, %p209
    %p212 = scmp.ne.s32.totalorder %s195, %s211
    %p213 = scmp.eq.s32.totalorder %s18, 0
    %p214 = por %p212, %p213
    %p215 = scmp.le.s32.totalorder 1, %s12
    %p216 = scmp.lt.s32.totalorder %s12, 9
    %p217 = pnand %p215, %p216
    %p218 = pneg %p217
    // Predicated region
    $region9: #{net3d_forward.15} parent=5 // pred_check
      _
    $region10: #{net3d_forward.15} parent=5 // pred_check_branch
      %220 = sbr.rel (%p217) target = $region12
    $region11: #{net3d_forward.15} parent=5 // pred_region
      %s221 = ssub.s32 %s12, 1
    $region12: #{net3d_forward.15} parent=5 // pred_fallthru
      _
    %p222 = scmp.lt.s32.totalorder %s12, 8
    // Predicated region
    $region13: #{net3d_forward.15} parent=5 // pred_check
      %p223 = pneg %p222
    $region14: #{net3d_forward.15} parent=5 // pred_check_branch
      %225 = sbr.rel (%p223) target = $region16
    $region15: #{net3d_forward.15} parent=5 // pred_region
      // Predicated region
      $region17: #{net3d_forward.15} parent=15 // pred_check
        %p226 = pneg %p55
      $region18: #{net3d_forward.15} parent=15 // pred_check_branch
        %228 = sbr.rel (%p226) target = $region20
      $region19: #{net3d_forward.15} parent=15 // pred_region
        %p229 = scmp.lt.s32.totalorder %s19, 3
        %s230 = scalar_select %p229, %s19, 3
        %p231 = scmp.lt.s32.totalorder %s21, 1
        %s232 = scalar_select %p231, %s21, 1
        %p233 = scmp.lt.s32.totalorder %s20, 0
        %s234 = scalar_select %p233, %s20, 0
        %s235 = sadd.s32 %s234, %s232
        %s236 = smul.addr %s230, 2
        %s237 = sadd.s32 %s235, %s236
        %s238 = smul.addr %s237, 8
        %s239 = scalar_lea.vmem %s0, %s238
      $region20: #{net3d_forward.15} parent=15 // pred_fallthru
        _
      // Predicated region
      $region21: #{net3d_forward.15} parent=15 // pred_check
        %p240 = pneg %p85
      $region22: #{net3d_forward.15} parent=15 // pred_check_branch
        %242 = sbr.rel (%p240) target = $region24
      $region23: #{net3d_forward.15} parent=15 // pred_region
        %p243 = scmp.lt.s32.totalorder %s19, 3
        %s244 = scalar_select %p243, %s19, 3
        %p245 = scmp.lt.s32.totalorder %s21, 1
        %s246 = scalar_select %p245, %s21, 1
        %p247 = scmp.lt.s32.totalorder %s20, 0
        %s248 = scalar_select %p247, %s20, 0
        %s249 = sadd.s32 %s248, %s246
        %s250 = smul.addr %s244, 2
        %s251 = sadd.s32 %s249, %s250
        %s252 = smul.addr %s251, 8
        %s253 = scalar_lea.vmem %s1, %s252
      $region24: #{net3d_forward.15} parent=15 // pred_fallthru
        _
      // Predicated region
      $region25: #{net3d_forward.15} parent=15 // pred_check
        %p254 = pneg %p113
      $region26: #{net3d_forward.15} parent=15 // pred_check_branch
        %256 = sbr.rel (%p254) target = $region28
      $region27: #{net3d_forward.15} parent=15 // pred_region
        %p257 = scmp.lt.s32.totalorder %s19, 3
        %s258 = scalar_select %p257, %s19, 3
        %p259 = scmp.lt.s32.totalorder %s20, 0
        %s260 = scalar_select %p259, %s20, 0
        %s261 = smul.addr %s258, 8
        %s262 = sadd.s32 %s260, %s261
        %s263 = smul.addr %s262, 8
        %s264 = scalar_lea.vmem %s2, %s263
      $region28: #{net3d_forward.15} parent=15 // pred_fallthru
        _
      // Predicated region
      $region29: #{net3d_forward.15} parent=15 // pred_check
        %p265 = pneg %p141
      $region30: #{net3d_forward.15} parent=15 // pred_check_branch
        %267 = sbr.rel (%p265) target = $region32
      $region31: #{net3d_forward.15} parent=15 // pred_region
        %p268 = scmp.lt.s32.totalorder %s19, 3
        %s269 = scalar_select %p268, %s19, 3
        %p270 = scmp.lt.s32.totalorder %s20, 0
        %s271 = scalar_select %p270, %s20, 0
        %s272 = smul.addr %s269, 8
        %s273 = sadd.s32 %s271, %s272
        %s274 = smul.addr %s273, 8
        %s275 = scalar_lea.vmem %s3, %s274
      $region32: #{net3d_forward.15} parent=15 // pred_fallthru
        _
    $region16: #{net3d_forward.15} parent=5 // pred_fallthru
      _
    %p276 = scmp.le.s32.totalorder 1, %s12
    %p277 = scmp.lt.s32.totalorder %s12, 9
    %p278 = pnand %p276, %p277
    %p279 = pneg %p278
    // Predicated region
    $region33: #{net3d_forward.15} parent=5 // pred_check
      _
    $region34: #{net3d_forward.15} parent=5 // pred_check_branch
      %281 = sbr.rel (%p278) target = $region36
    $region35: #{net3d_forward.15} parent=5 // pred_region
      %s282 = ssub.s32 %s12, 1
      %p283 = scmp.lt.s32.totalorder %s22, 3
      %s284 = scalar_select %p283, %s22, 3
      %p285 = scmp.lt.s32.totalorder %s24, 1
      %s286 = scalar_select %p285, %s24, 1
      %p287 = scmp.lt.s32.totalorder %s23, 0
      %s288 = scalar_select %p287, %s23, 0
      %s289 = sadd.s32 %s288, %s286
      %s290 = smul.addr %s284, 2
      %s291 = sadd.s32 %s289, %s290
      %s292 = smul.addr %s291, 8
      %s293 = scalar_lea.vmem %s0, %s292
      %p294 = pneg %p61
      %p295 = pneg %p58
      %p296 = scmp.lt.s32.totalorder %s22, 3
      %s297 = scalar_select %p296, %s22, 3
      %p298 = scmp.lt.s32.totalorder %s24, 1
      %s299 = scalar_select %p298, %s24, 1
      %p300 = scmp.lt.s32.totalorder %s23, 0
      %s301 = scalar_select %p300, %s23, 0
      %s302 = sadd.s32 %s301, %s299
      %s303 = smul.addr %s297, 2
      %s304 = sadd.s32 %s302, %s303
      %s305 = smul.addr %s304, 8
      %s306 = scalar_lea.vmem %s1, %s305
      %p307 = pneg %p91
      %p308 = pneg %p88
      %p309 = scmp.lt.s32.totalorder %s22, 3
      %s310 = scalar_select %p309, %s22, 3
      %p311 = scmp.lt.s32.totalorder %s23, 0
      %s312 = scalar_select %p311, %s23, 0
      %s313 = smul.addr %s310, 8
      %s314 = sadd.s32 %s312, %s313
      %s315 = smul.addr %s314, 8
      %s316 = scalar_lea.vmem %s2, %s315
      %p317 = pneg %p119
      %p318 = pneg %p116
      %p319 = scmp.lt.s32.totalorder %s22, 3
      %s320 = scalar_select %p319, %s22, 3
      %p321 = scmp.lt.s32.totalorder %s23, 0
      %s322 = scalar_select %p321, %s23, 0
      %s323 = smul.addr %s320, 8
      %s324 = sadd.s32 %s322, %s323
      %s325 = smul.addr %s324, 8
      %s326 = scalar_lea.vmem %s3, %s325
      %p327 = pneg %p147
      %p328 = pneg %p144
      %p329 = pneg %p177
      %p330 = pneg %p174
      %p331 = scmp.lt.s32.totalorder %s22, 3
      %s332 = scalar_select %p331, %s22, 3
      %p333 = scmp.lt.s32.totalorder %s24, 1
      %s334 = scalar_select %p333, %s24, 1
      %p335 = scmp.lt.s32.totalorder %s23, 0
      %s336 = scalar_select %p335, %s23, 0
      %s337 = sadd.s32 %s336, %s334
      %s338 = smul.addr %s332, 2
      %s339 = sadd.s32 %s337, %s338
      %s340 = smul.addr %s339, 8
      %s341 = scalar_lea.vmem %s4, %s340
      %p342 = pneg %p207
      %p343 = pneg %p204
      %p344 = scmp.lt.s32.totalorder %s22, 3
      %s345 = scalar_select %p344, %s22, 3
      %p346 = scmp.lt.s32.totalorder %s24, 1
      %s347 = scalar_select %p346, %s24, 1
      %p348 = scmp.lt.s32.totalorder %s23, 0
      %s349 = scalar_select %p348, %s23, 0
      %s350 = sadd.s32 %s349, %s347
      %s351 = smul.addr %s345, 2
      %s352 = sadd.s32 %s350, %s351
      %s353 = smul.addr %s352, 8
      %s354 = scalar_lea.vmem %s5, %s353
      %p355 = scmp.lt.s32.totalorder %s22, 3
      %s356 = scalar_select %p355, %s22, 3
      %p357 = scmp.lt.s32.totalorder %s24, 1
      %s358 = scalar_select %p357, %s24, 1
      %p359 = scmp.lt.s32.totalorder %s23, 0
      %s360 = scalar_select %p359, %s23, 0
      %s361 = sadd.s32 %s360, %s358
      %s362 = smul.addr %s356, 2
      %s363 = sadd.s32 %s361, %s362
      %s364 = smul.addr %s363, 8
      %s365 = scalar_lea.vmem %s0, %s364
      %p366 = scmp.lt.s32.totalorder %s22, 3
      %s367 = scalar_select %p366, %s22, 3
      %p368 = scmp.lt.s32.totalorder %s24, 1
      %s369 = scalar_select %p368, %s24, 1
      %p370 = scmp.lt.s32.totalorder %s23, 0
      %s371 = scalar_select %p370, %s23, 0
      %s372 = sadd.s32 %s371, %s369
      %s373 = smul.addr %s367, 2
      %s374 = sadd.s32 %s372, %s373
      %s375 = smul.addr %s374, 8
      %s376 = scalar_lea.vmem %s1, %s375
      %p377 = scmp.lt.s32.totalorder %s22, 3
      %s378 = scalar_select %p377, %s22, 3
      %p379 = scmp.lt.s32.totalorder %s23, 0
      %s380 = scalar_select %p379, %s23, 0
      %s381 = smul.addr %s378, 8
      %s382 = sadd.s32 %s380, %s381
      %s383 = smul.addr %s382, 8
      %s384 = scalar_lea.vmem %s2, %s383
      %p385 = scmp.lt.s32.totalorder %s22, 3
      %s386 = scalar_select %p385, %s22, 3
      %p387 = scmp.lt.s32.totalorder %s23, 0
      %s388 = scalar_select %p387, %s23, 0
      %s389 = smul.addr %s386, 8
      %s390 = sadd.s32 %s388, %s389
      %s391 = smul.addr %s390, 8
      %s392 = scalar_lea.vmem %s3, %s391
      %p393 = scmp.lt.s32.totalorder %s22, 3
      %s394 = scalar_select %p393, %s22, 3
      %p395 = scmp.lt.s32.totalorder %s24, 1
      %s396 = scalar_select %p395, %s24, 1
      %p397 = scmp.lt.s32.totalorder %s23, 0
      %s398 = scalar_select %p397, %s23, 0
      %s399 = sadd.s32 %s398, %s396
      %s400 = smul.addr %s394, 2
      %s401 = sadd.s32 %s399, %s400
      %s402 = smul.addr %s401, 8
      %s403 = scalar_lea.vmem %s4, %s402
      %p404 = scmp.lt.s32.totalorder %s22, 3
      %s405 = scalar_select %p404, %s22, 3
      %p406 = scmp.lt.s32.totalorder %s24, 1
      %s407 = scalar_select %p406, %s24, 1
      %p408 = scmp.lt.s32.totalorder %s23, 0
      %s409 = scalar_select %p408, %s23, 0
      %s410 = sadd.s32 %s409, %s407
      %s411 = smul.addr %s405, 2
      %s412 = sadd.s32 %s410, %s411
      %s413 = smul.addr %s412, 8
      %s414 = scalar_lea.vmem %s5, %s413
      %v415 = vld [vmem:[%s365] sm:$0x1]
      %v416 = vld [vmem:[%s376] sm:$0x1]
      %v417 = vld [vmem:[%s384] sm:$0xff]
      %v418 = vld [vmem:[%s392] sm:$0xff]
      %v419 = vlaneseq
      %v420 = vshrl.u32 %v419, 7
      %v421 = vsub.s32 0, %v420
      %v422 = vrot.slane %v415, %v421
      %v423 = vmul.f32 %v422, %v417
      %v424 = vadd.f32 %v423, 0.0
      %v425 = vlaneseq
      %v426 = vshrl.u32 %v425, 7
      %v427 = vsub.s32 0, %v426
      %v428 = vrot.slane %v416, %v427
      %v429 = vmul.f32 %v428, %v418
      %v430 = vsub.f32 %v424, %v429
      %v431 = vmul.f32 %v428, %v417
      %v432 = vadd.f32 %v431, 0.0
      %v433 = vmul.f32 %v422, %v418
      %v434 = vadd.f32 %v432, %v433
      %v435 = vld [vmem:[%s365 + $0x1] sm:$0x1]
      %v436 = vld [vmem:[%s376 + $0x1] sm:$0x1]
      %s437 = scalar_lea.vmem %s384, 8
      %v438 = vld [vmem:[%s437] sm:$0xff]
      %s439 = scalar_lea.vmem %s392, 8
      %v440 = vld [vmem:[%s439] sm:$0xff]
      %v441 = vlaneseq
      %v442 = vshrl.u32 %v441, 7
      %v443 = vsub.s32 0, %v442
      %v444 = vrot.slane %v435, %v443
      %v445 = vmul.f32 %v444, %v438
      %v446 = vadd.f32 %v430, %v445
      %v447 = vlaneseq
      %v448 = vshrl.u32 %v447, 7
      %v449 = vsub.s32 0, %v448
      %v450 = vrot.slane %v436, %v449
      %v451 = vmul.f32 %v450, %v440
      %v452 = vsub.f32 %v446, %v451
      %v453 = vmul.f32 %v450, %v438
      %v454 = vadd.f32 %v434, %v453
      %v455 = vmul.f32 %v444, %v440
      %v456 = vadd.f32 %v454, %v455
      %v457 = vld [vmem:[%s365 + $0x2] sm:$0x1]
      %v458 = vld [vmem:[%s376 + $0x2] sm:$0x1]
      %s459 = scalar_lea.vmem %s384, 16
      %v460 = vld [vmem:[%s459] sm:$0xff]
      %s461 = scalar_lea.vmem %s392, 16
      %v462 = vld [vmem:[%s461] sm:$0xff]
      %v463 = vlaneseq
      %v464 = vshrl.u32 %v463, 7
      %v465 = vsub.s32 0, %v464
      %v466 = vrot.slane %v457, %v465
      %v467 = vmul.f32 %v466, %v460
      %v468 = vadd.f32 %v452, %v467
      %v469 = vlaneseq
      %v470 = vshrl.u32 %v469, 7
      %v471 = vsub.s32 0, %v470
      %v472 = vrot.slane %v458, %v471
      %v473 = vmul.f32 %v472, %v462
      %v474 = vsub.f32 %v468, %v473
      %v475 = vmul.f32 %v472, %v460
      %v476 = vadd.f32 %v456, %v475
      %v477 = vmul.f32 %v466, %v462
      %v478 = vadd.f32 %v476, %v477
      %v479 = vld [vmem:[%s365 + $0x3] sm:$0x1]
      %v480 = vld [vmem:[%s376 + $0x3] sm:$0x1]
      %s481 = scalar_lea.vmem %s384, 24
      %v482 = vld [vmem:[%s481] sm:$0xff]
      %s483 = scalar_lea.vmem %s392, 24
      %v484 = vld [vmem:[%s483] sm:$0xff]
      %v485 = vlaneseq
      %v486 = vshrl.u32 %v485, 7
      %v487 = vsub.s32 0, %v486
      %v488 = vrot.slane %v479, %v487
      %v489 = vmul.f32 %v488, %v482
      %v490 = vadd.f32 %v474, %v489
      %v491 = vlaneseq
      %v492 = vshrl.u32 %v491, 7
      %v493 = vsub.s32 0, %v492
      %v494 = vrot.slane %v480, %v493
      %v495 = vmul.f32 %v494, %v484
      %v496 = vsub.f32 %v490, %v495
      %v497 = vmul.f32 %v494, %v482
      %v498 = vadd.f32 %v478, %v497
      %v499 = vmul.f32 %v488, %v484
      %v500 = vadd.f32 %v498, %v499
      %v501 = vld [vmem:[%s365 + $0x4] sm:$0x1]
      %v502 = vld [vmem:[%s376 + $0x4] sm:$0x1]
      %s503 = scalar_lea.vmem %s384, 32
      %v504 = vld [vmem:[%s503] sm:$0xff]
      %s505 = scalar_lea.vmem %s392, 32
      %v506 = vld [vmem:[%s505] sm:$0xff]
      %v507 = vlaneseq
      %v508 = vshrl.u32 %v507, 7
      %v509 = vsub.s32 0, %v508
      %v510 = vrot.slane %v501, %v509
      %v511 = vmul.f32 %v510, %v504
      %v512 = vadd.f32 %v496, %v511
      %v513 = vlaneseq
      %v514 = vshrl.u32 %v513, 7
      %v515 = vsub.s32 0, %v514
      %v516 = vrot.slane %v502, %v515
      %v517 = vmul.f32 %v516, %v506
      %v518 = vsub.f32 %v512, %v517
      %v519 = vmul.f32 %v516, %v504
      %v520 = vadd.f32 %v500, %v519
      %v521 = vmul.f32 %v510, %v506
      %v522 = vadd.f32 %v520, %v521
      %v523 = vld [vmem:[%s365 + $0x5] sm:$0x1]
      %v524 = vld [vmem:[%s376 + $0x5] sm:$0x1]
      %s525 = scalar_lea.vmem %s384, 40
      %v526 = vld [vmem:[%s525] sm:$0xff]
      %s527 = scalar_lea.vmem %s392, 40
      %v528 = vld [vmem:[%s527] sm:$0xff]
      %v529 = vlaneseq
      %v530 = vshrl.u32 %v529, 7
      %v531 = vsub.s32 0, %v530
      %v532 = vrot.slane %v523, %v531
      %v533 = vmul.f32 %v532, %v526
      %v534 = vadd.f32 %v518, %v533
      %v535 = vlaneseq
      %v536 = vshrl.u32 %v535, 7
      %v537 = vsub.s32 0, %v536
      %v538 = vrot.slane %v524, %v537
      %v539 = vmul.f32 %v538, %v528
      %v540 = vsub.f32 %v534, %v539
      %v541 = vmul.f32 %v538, %v526
      %v542 = vadd.f32 %v522, %v541
      %v543 = vmul.f32 %v532, %v528
      %v544 = vadd.f32 %v542, %v543
      %v545 = vld [vmem:[%s365 + $0x6] sm:$0x1]
      %v546 = vld [vmem:[%s376 + $0x6] sm:$0x1]
      %s547 = scalar_lea.vmem %s384, 48
      %v548 = vld [vmem:[%s547] sm:$0xff]
      %s549 = scalar_lea.vmem %s392, 48
      %v550 = vld [vmem:[%s549] sm:$0xff]
      %v551 = vlaneseq
      %v552 = vshrl.u32 %v551, 7
      %v553 = vsub.s32 0, %v552
      %v554 = vrot.slane %v545, %v553
      %v555 = vmul.f32 %v554, %v548
      %v556 = vadd.f32 %v540, %v555
      %v557 = vlaneseq
      %v558 = vshrl.u32 %v557, 7
      %v559 = vsub.s32 0, %v558
      %v560 = vrot.slane %v546, %v559
      %v561 = vmul.f32 %v560, %v550
      %v562 = vsub.f32 %v556, %v561
      %v563 = vmul.f32 %v560, %v548
      %v564 = vadd.f32 %v544, %v563
      %v565 = vmul.f32 %v554, %v550
      %v566 = vadd.f32 %v564, %v565
      %v567 = vld [vmem:[%s365 + $0x7] sm:$0x1]
      %v568 = vld [vmem:[%s376 + $0x7] sm:$0x1]
      %s569 = scalar_lea.vmem %s384, 56
      %v570 = vld [vmem:[%s569] sm:$0xff]
      %s571 = scalar_lea.vmem %s392, 56
      %v572 = vld [vmem:[%s571] sm:$0xff]
      %v573 = vlaneseq
      %v574 = vshrl.u32 %v573, 7
      %v575 = vsub.s32 0, %v574
      %v576 = vrot.slane %v567, %v575
      %v577 = vmul.f32 %v576, %v570
      %v578 = vadd.f32 %v562, %v577
      %v579 = vlaneseq
      %v580 = vshrl.u32 %v579, 7
      %v581 = vsub.s32 0, %v580
      %v582 = vrot.slane %v568, %v581
      %v583 = vmul.f32 %v582, %v572
      %v584 = vsub.f32 %v578, %v583
      %v585 = vmul.f32 %v582, %v570
      %v586 = vadd.f32 %v566, %v585
      %v587 = vmul.f32 %v576, %v572
      %v588 = vadd.f32 %v586, %v587
      %589 = vst [vmem:[%s403] sm:$0xff] %v584
      %590 = vst [vmem:[%s414] sm:$0xff] %v588
      %p591 = scmp.lt.s32.totalorder %s22, 3
      %s592 = scalar_select %p591, %s22, 3
      %p593 = scmp.lt.s32.totalorder %s24, 1
      %s594 = scalar_select %p593, %s24, 1
      %p595 = scmp.lt.s32.totalorder %s23, 0
      %s596 = scalar_select %p595, %s23, 0
      %s597 = sadd.s32 %s596, %s594
      %s598 = smul.addr %s592, 2
      %s599 = sadd.s32 %s597, %s598
      %s600 = smul.addr %s599, 8
      %s601 = scalar_lea.vmem %s4, %s600
      %p602 = scmp.lt.s32.totalorder %s22, 3
      %s603 = scalar_select %p602, %s22, 3
      %p604 = scmp.lt.s32.totalorder %s24, 1
      %s605 = scalar_select %p604, %s24, 1
      %p606 = scmp.lt.s32.totalorder %s23, 0
      %s607 = scalar_select %p606, %s23, 0
      %s608 = sadd.s32 %s607, %s605
      %s609 = smul.addr %s603, 2
      %s610 = sadd.s32 %s608, %s609
      %s611 = smul.addr %s610, 8
      %s612 = scalar_lea.vmem %s5, %s611
      // Predicated region
      $region37: #{net3d_forward.15} parent=35 // pred_check
        %p613 = pneg %p174
      $region38: #{net3d_forward.15} parent=35 // pred_check_branch
        %615 = sbr.rel (%p613) target = $region40
      $region39: #{net3d_forward.15} parent=35 // pred_region
        _
      $region40: #{net3d_forward.15} parent=35 // pred_fallthru
        _
      // Predicated region
      $region41: #{net3d_forward.15} parent=35 // pred_check
        %p616 = pneg %p204
      $region42: #{net3d_forward.15} parent=35 // pred_check_branch
        %618 = sbr.rel (%p616) target = $region44
      $region43: #{net3d_forward.15} parent=35 // pred_region
        _
      $region44: #{net3d_forward.15} parent=35 // pred_fallthru
        _
    $region36: #{net3d_forward.15} parent=5 // pred_fallthru
      _
    %p619 = scmp.le.s32.totalorder 2, %s12
    // Predicated region
    $region45: #{net3d_forward.15} parent=5 // pred_check
      %p620 = pneg %p619
    $region46: #{net3d_forward.15} parent=5 // pred_check_branch
      %622 = sbr.rel (%p620) target = $region48
    $region47: #{net3d_forward.15} parent=5 // pred_region
      %s623 = ssub.s32 %s12, 2
      // Predicated region
      $region49: #{net3d_forward.15} parent=47 // pred_check
        %p624 = pneg %p180
      $region50: #{net3d_forward.15} parent=47 // pred_check_branch
        %626 = sbr.rel (%p624) target = $region52
      $region51: #{net3d_forward.15} parent=47 // pred_region
        %p627 = scmp.lt.s32.totalorder %s25, 3
        %s628 = scalar_select %p627, %s25, 3
        %p629 = scmp.lt.s32.totalorder %s27, 1
        %s630 = scalar_select %p629, %s27, 1
        %p631 = scmp.lt.s32.totalorder %s26, 0
        %s632 = scalar_select %p631, %s26, 0
        %s633 = sadd.s32 %s632, %s630
        %s634 = smul.addr %s628, 2
        %s635 = sadd.s32 %s633, %s634
        %s636 = smul.addr %s635, 8
        %s637 = scalar_lea.vmem %s4, %s636
      $region52: #{net3d_forward.15} parent=47 // pred_fallthru
        _
      // Predicated region
      $region53: #{net3d_forward.15} parent=47 // pred_check
        %p638 = pneg %p210
      $region54: #{net3d_forward.15} parent=47 // pred_check_branch
        %640 = sbr.rel (%p638) target = $region56
      $region55: #{net3d_forward.15} parent=47 // pred_region
        %p641 = scmp.lt.s32.totalorder %s25, 3
        %s642 = scalar_select %p641, %s25, 3
        %p643 = scmp.lt.s32.totalorder %s27, 1
        %s644 = scalar_select %p643, %s27, 1
        %p645 = scmp.lt.s32.totalorder %s26, 0
        %s646 = scalar_select %p645, %s26, 0
        %s647 = sadd.s32 %s646, %s644
        %s648 = smul.addr %s642, 2
        %s649 = sadd.s32 %s647, %s648
        %s650 = smul.addr %s649, 8
        %s651 = scalar_lea.vmem %s5, %s650
      $region56: #{net3d_forward.15} parent=47 // pred_fallthru
        _
    $region48: #{net3d_forward.15} parent=5 // pred_fallthru
      _
  $region6: #{net3d_forward.15} parent=0 // loop_footer
    %s16 = sadd.s32 1, %s12
  $region7: #{net3d_forward.15} parent=0 // loop_footer_branch
    %11 = sbr.rel target = $region3
  $region8: #{net3d_forward.15} parent=0 // loop_exit
    _

// kernel: net3d_forward.16
$region0: #{net3d_forward.16}
  #allocation0 [shape = 'u32[]', space=smem, size = 0x4, offset = 0x4, fixed_abs, tag = 'smem constant byte address 0x4 - core index']
  #allocation1 [shape = 'u32[144,128]{1,0:T(1,128)}', space=vmem, size = 0x12000, scoped, tag = 'internal scratch']
  %s0 = inlined_call_operand.vmem [shape: f32[2,8,512], index: 0, kind: input, shape index: {}]
  %s1 = inlined_call_operand.vmem [shape: f32[2,8,512], index: 1, kind: input, shape index: {}]
  %s2 = inlined_call_operand.vmem [shape: f32[8,8], index: 2, kind: input, shape index: {}]
  %s3 = inlined_call_operand.vmem [shape: f32[8,1], index: 3, kind: input, shape index: {}]
  %s4 = inlined_call_operand.vmem [shape: f32[2,8,512], index: 4, kind: output, shape index: {0}]
  %s5 = inlined_call_operand.vmem [shape: f32[2,1,8,2], index: 5, kind: output, shape index: {1}]
  %6 = xla_tuple %s4, %s5
  %s7 = sld [smem:[#allocation0]]
  $region57: #{net3d_forward.16} parent=0
    _
  %s9 = ssub.s32 1, %s7
  %s10 = scalar_select 0, %s9, %s7
  loop: start=0, step=1, limit=4
  $region2: #{net3d_forward.16} parent=0 // loop_pre_header
    _
  $region3: #{net3d_forward.16} parent=0 // loop_header
    %s12 = sphi 0, %s16
    %p13 = scmp.ge.s32.totalorder %s12, 4
    %s19 = sphi 0, %s31
    %s20 = sphi 0, %s27
    %s21 = sphi 0, %s19
    %s22 = sphi 0, %s20
    %s23 = sphi 0, %s21
    %s24 = sphi 0, %s22
    %s36 = sphi 0, %s38
    %s39 = sphi 0, %s36
    %s40 = sphi 0, %s39
    %s56 = sphi 0, %s40
    %s64 = sphi 0, %s66
    %s67 = sphi 0, %s64
    %s68 = sphi 0, %s67
    %s84 = sphi 0, %s68
    %s88 = sphi 0, %s88
    %s90 = sphi 0, %s88
    %s91 = sphi 0, %s90
    %s105 = sphi 0, %s91
    %s109 = sphi 0, %s109
    %s111 = sphi 0, %s109
    %s112 = sphi 0, %s111
    %s126 = sphi 0, %s112
    %s134 = sphi 0, %s136
    %s137 = sphi 0, %s134
    %s138 = sphi 0, %s137
    %s154 = sphi 0, %s138
    %s162 = sphi 0, %s164
    %s165 = sphi 0, %s162
    %s166 = sphi 0, %s165
    %s182 = sphi 0, %s166
  $region4: #{net3d_forward.16} parent=0 // loop_header_branch
    %15 = sbr.rel (%p13) target = $region8
  $region5: #{net3d_forward.16} parent=0 // loop_body
    %s17 = ssub.s32 %s12, 1
    %s18 = ssub.s32 %s12, 2
    %s25 = sadd.s32 1, %s20
    %p26 = scmp.ge.s32.totalorder %s25, 1
    %s27 = scalar_select %p26, 0, %s25
    %s28 = sadd.s32 1, %s19
    %s29 = scalar_select %p26, %s28, %s19
    %p30 = scmp.ge.s32.totalorder %s29, 2
    %s31 = scalar_select %p30, 0, %s29
    %s32 = ssub.s32 %s19, %s31
    %s33 = ssub.s32 %s20, %s27
    %s34 = sor.u32 %s32, %s33
    %p35 = scmp.eq.s32.totalorder %s34, 0
    %s37 = sadd.s32 %s36, 1
    %s38 = scalar_select %p35, %s36, %s37
    %p41 = pneg %p35
    %p42 = scmp.eq.s32.totalorder %s12, 1
    %p43 = por %p41, %p42
    %p44 = scmp.ne.s32.totalorder %s36, %s39
    %p45 = scmp.eq.s32.totalorder %s12, 0
    %p46 = por %p44, %p45
    %p47 = scmp.ne.s32.totalorder %s36, %s39
    %p48 = scmp.eq.s32.totalorder %s17, 1
    %p49 = por %p47, %p48
    %p50 = scmp.ne.s32.totalorder %s39, %s40
    %p51 = scmp.eq.s32.totalorder %s17, 0
    %p52 = por %p50, %p51
    %p53 = scmp.ne.s32.totalorder %s39, %s40
    %p54 = scmp.eq.s32.totalorder %s18, 1
    %p55 = por %p53, %p54
    %p57 = scmp.ne.s32.totalorder %s40, %s56
    %p58 = scmp.eq.s32.totalorder %s18, 0
    %p59 = por %p57, %p58
    %s60 = ssub.s32 %s19, %s31
    %s61 = ssub.s32 %s20, %s27
    %s62 = sor.u32 %s60, %s61
    %p63 = scmp.eq.s32.totalorder %s62, 0
    %s65 = sadd.s32 %s64, 1
    %s66 = scalar_select %p63, %s64, %s65
    %p69 = pneg %p63
    %p70 = scmp.eq.s32.totalorder %s12, 1
    %p71 = por %p69, %p70
    %p72 = scmp.ne.s32.totalorder %s64, %s67
    %p73 = scmp.eq.s32.totalorder %s12, 0
    %p74 = por %p72, %p73
    %p75 = scmp.ne.s32.totalorder %s64, %s67
    %p76 = scmp.eq.s32.totalorder %s17, 1
    %p77 = por %p75, %p76
    %p78 = scmp.ne.s32.totalorder %s67, %s68
    %p79 = scmp.eq.s32.totalorder %s17, 0
    %p80 = por %p78, %p79
    %p81 = scmp.ne.s32.totalorder %s67, %s68
    %p82 = scmp.eq.s32.totalorder %s18, 1
    %p83 = por %p81, %p82
    %p85 = scmp.ne.s32.totalorder %s68, %s84
    %p86 = scmp.eq.s32.totalorder %s18, 0
    %p87 = por %p85, %p86
    %s89 = sadd.s32 %s88, 1
    %p92 = scmp.eq.s32.totalorder %s12, 1
    %p93 = scmp.ne.s32.totalorder %s88, %s90
    %p94 = scmp.eq.s32.totalorder %s12, 0
    %p95 = por %p93, %p94
    %p96 = scmp.ne.s32.totalorder %s88, %s90
    %p97 = scmp.eq.s32.totalorder %s17, 1
    %p98 = por %p96, %p97
    %p99 = scmp.ne.s32.totalorder %s90, %s91
    %p100 = scmp.eq.s32.totalorder %s17, 0
    %p101 = por %p99, %p100
    %p102 = scmp.ne.s32.totalorder %s90, %s91
    %p103 = scmp.eq.s32.totalorder %s18, 1
    %p104 = por %p102, %p103
    %p106 = scmp.ne.s32.totalorder %s91, %s105
    %p107 = scmp.eq.s32.totalorder %s18, 0
    %p108 = por %p106, %p107
    %s110 = sadd.s32 %s109, 1
    %p113 = scmp.eq.s32.totalorder %s12, 1
    %p114 = scmp.ne.s32.totalorder %s109, %s111
    %p115 = scmp.eq.s32.totalorder %s12, 0
    %p116 = por %p114, %p115
    %p117 = scmp.ne.s32.totalorder %s109, %s111
    %p118 = scmp.eq.s32.totalorder %s17, 1
    %p119 = por %p117, %p118
    %p120 = scmp.ne.s32.totalorder %s111, %s112
    %p121 = scmp.eq.s32.totalorder %s17, 0
    %p122 = por %p120, %p121
    %p123 = scmp.ne.s32.totalorder %s111, %s112
    %p124 = scmp.eq.s32.totalorder %s18, 1
    %p125 = por %p123, %p124
    %p127 = scmp.ne.s32.totalorder %s112, %s126
    %p128 = scmp.eq.s32.totalorder %s18, 0
    %p129 = por %p127, %p128
    %s130 = ssub.s32 %s19, %s31
    %s131 = ssub.s32 %s20, %s27
    %s132 = sor.u32 %s130, %s131
    %p133 = scmp.eq.s32.totalorder %s132, 0
    %s135 = sadd.s32 %s134, 1
    %s136 = scalar_select %p133, %s134, %s135
    %p139 = pneg %p133
    %p140 = scmp.eq.s32.totalorder %s12, 1
    %p141 = por %p139, %p140
    %p142 = scmp.ne.s32.totalorder %s134, %s137
    %p143 = scmp.eq.s32.totalorder %s12, 0
    %p144 = por %p142, %p143
    %p145 = scmp.ne.s32.totalorder %s134, %s137
    %p146 = scmp.eq.s32.totalorder %s17, 1
    %p147 = por %p145, %p146
    %p148 = scmp.ne.s32.totalorder %s137, %s138
    %p149 = scmp.eq.s32.totalorder %s17, 0
    %p150 = por %p148, %p149
    %p151 = scmp.ne.s32.totalorder %s137, %s138
    %p152 = scmp.eq.s32.totalorder %s18, 1
    %p153 = por %p151, %p152
    %p155 = scmp.ne.s32.totalorder %s138, %s154
    %p156 = scmp.eq.s32.totalorder %s18, 0
    %p157 = por %p155, %p156
    %s158 = ssub.s32 %s19, %s31
    %s159 = ssub.s32 %s20, %s27
    %s160 = sor.u32 %s158, %s159
    %p161 = scmp.eq.s32.totalorder %s160, 0
    %s163 = sadd.s32 %s162, 1
    %s164 = scalar_select %p161, %s162, %s163
    %p167 = pneg %p161
    %p168 = scmp.eq.s32.totalorder %s12, 1
    %p169 = por %p167, %p168
    %p170 = scmp.ne.s32.totalorder %s162, %s165
    %p171 = scmp.eq.s32.totalorder %s12, 0
    %p172 = por %p170, %p171
    %p173 = scmp.ne.s32.totalorder %s162, %s165
    %p174 = scmp.eq.s32.totalorder %s17, 1
    %p175 = por %p173, %p174
    %p176 = scmp.ne.s32.totalorder %s165, %s166
    %p177 = scmp.eq.s32.totalorder %s17, 0
    %p178 = por %p176, %p177
    %p179 = scmp.ne.s32.totalorder %s165, %s166
    %p180 = scmp.eq.s32.totalorder %s18, 1
    %p181 = por %p179, %p180
    %p183 = scmp.ne.s32.totalorder %s166, %s182
    %p184 = scmp.eq.s32.totalorder %s18, 0
    %p185 = por %p183, %p184
    %p186 = scmp.le.s32.totalorder 1, %s12
    %p187 = scmp.lt.s32.totalorder %s12, 3
    %p188 = pnand %p186, %p187
    %p189 = pneg %p188
    // Predicated region
    $region9: #{net3d_forward.16} parent=5 // pred_check
      _
    $region10: #{net3d_forward.16} parent=5 // pred_check_branch
      %191 = sbr.rel (%p188) target = $region12
    $region11: #{net3d_forward.16} parent=5 // pred_region
      %s192 = ssub.s32 %s12, 1
      // Predicated region
      $region13: #{net3d_forward.16} parent=11 // pred_check
        %p193 = pneg %p101
      $region14: #{net3d_forward.16} parent=11 // pred_check_branch
        %195 = sbr.rel (%p193) target = $region16
      $region15: #{net3d_forward.16} parent=11 // pred_region
        _
      $region16: #{net3d_forward.16} parent=11 // pred_fallthru
        _
      // Predicated region
      $region17: #{net3d_forward.16} parent=11 // pred_check
        %p196 = pneg %p122
      $region18: #{net3d_forward.16} parent=11 // pred_check_branch
        %198 = sbr.rel (%p196) target = $region20
      $region19: #{net3d_forward.16} parent=11 // pred_region
        _
      $region20: #{net3d_forward.16} parent=11 // pred_fallthru
        _
    $region12: #{net3d_forward.16} parent=5 // pred_fallthru
      _
    %p199 = scmp.lt.s32.totalorder %s12, 2
    // Predicated region
    $region21: #{net3d_forward.16} parent=5 // pred_check
      %p200 = pneg %p199
    $region22: #{net3d_forward.16} parent=5 // pred_check_branch
      %202 = sbr.rel (%p200) target = $region24
    $region23: #{net3d_forward.16} parent=5 // pred_region
      // Predicated region
      $region25: #{net3d_forward.16} parent=23 // pred_check
        %p203 = pneg %p46
      $region26: #{net3d_forward.16} parent=23 // pred_check_branch
        %205 = sbr.rel (%p203) target = $region28
      $region27: #{net3d_forward.16} parent=23 // pred_region
        %s206 = smul.u32 4, %s20
        %p207 = scmp.lt.s32.totalorder %s19, 1
        %s208 = scalar_select %p207, %s19, 1
        %p209 = scmp.lt.s32.totalorder %s206, 3
        %s210 = scalar_select %p209, %s206, 3
        %s211 = smul.addr %s208, 4
        %s212 = sadd.s32 %s210, %s211
        %s213 = smul.addr %s212, 8
        %s214 = scalar_lea.vmem %s0, %s213
        %s215 = smul.u32 4, %s20
      $region28: #{net3d_forward.16} parent=23 // pred_fallthru
        _
      // Predicated region
      $region29: #{net3d_forward.16} parent=23 // pred_check
        %p216 = pneg %p74
      $region30: #{net3d_forward.16} parent=23 // pred_check_branch
        %218 = sbr.rel (%p216) target = $region32
      $region31: #{net3d_forward.16} parent=23 // pred_region
        %s219 = smul.u32 4, %s20
        %p220 = scmp.lt.s32.totalorder %s19, 1
        %s221 = scalar_select %p220, %s19, 1
        %p222 = scmp.lt.s32.totalorder %s219, 3
        %s223 = scalar_select %p222, %s219, 3
        %s224 = smul.addr %s221, 4
        %s225 = sadd.s32 %s223, %s224
        %s226 = smul.addr %s225, 8
        %s227 = scalar_lea.vmem %s1, %s226
        %s228 = smul.u32 4, %s20
      $region32: #{net3d_forward.16} parent=23 // pred_fallthru
        _
    $region24: #{net3d_forward.16} parent=5 // pred_fallthru
      _
    %p229 = scmp.le.s32.totalorder 1, %s12
    %p230 = scmp.lt.s32.totalorder %s12, 3
    %p231 = pnand %p229, %p230
    %p232 = pneg %p231
    // Predicated region
    $region33: #{net3d_forward.16} parent=5 // pred_check
      _
    $region34: #{net3d_forward.16} parent=5 // pred_check_branch
      %234 = sbr.rel (%p231) target = $region36
    $region35: #{net3d_forward.16} parent=5 // pred_region
      %s235 = ssub.s32 %s12, 1
      %s236 = smul.u32 4, %s22
      %p237 = scmp.lt.s32.totalorder %s21, 1
      %s238 = scalar_select %p237, %s21, 1
      %p239 = scmp.lt.s32.totalorder %s236, 3
      %s240 = scalar_select %p239, %s236, 3
      %s241 = smul.addr %s238, 4
      %s242 = sadd.s32 %s240, %s241
      %s243 = smul.addr %s242, 8
      %s244 = scalar_lea.vmem %s0, %s243
      %p245 = pneg %p52
      %p246 = pneg %p49
      %s247 = smul.u32 4, %s22
      %p248 = scmp.lt.s32.totalorder %s21, 1
      %s249 = scalar_select %p248, %s21, 1
      %p250 = scmp.lt.s32.totalorder %s247, 3
      %s251 = scalar_select %p250, %s247, 3
      %s252 = smul.addr %s249, 4
      %s253 = sadd.s32 %s251, %s252
      %s254 = smul.addr %s253, 8
      %s255 = scalar_lea.vmem %s1, %s254
      %p256 = pneg %p80
      %p257 = pneg %p77
      %p258 = pneg %p101
      %p259 = pneg %p98
      %p260 = pneg %p122
      %p261 = pneg %p119
      %p262 = pneg %p150
      %p263 = pneg %p147
      %s264 = smul.u32 4, %s22
      %p265 = scmp.lt.s32.totalorder %s21, 1
      %s266 = scalar_select %p265, %s21, 1
      %p267 = scmp.lt.s32.totalorder %s264, 3
      %s268 = scalar_select %p267, %s264, 3
      %s269 = smul.addr %s266, 4
      %s270 = sadd.s32 %s268, %s269
      %s271 = smul.addr %s270, 8
      %s272 = scalar_lea.vmem %s4, %s271
      %p273 = pneg %p178
      %p274 = pneg %p175
      %p275 = scmp.lt.s32.totalorder %s21, 1
      %s276 = scalar_select %p275, %s21, 1
      %p277 = scmp.lt.s32.totalorder %s22, 0
      %s278 = scalar_select %p277, %s22, 0
      %s279 = sadd.s32 %s278, %s276
      %s280 = smul.addr %s279, 8
      %s281 = scalar_lea.vmem %s5, %s280
      %s282 = smul.u32 4, %s22
      %p283 = scmp.lt.s32.totalorder %s21, 1
      %s284 = scalar_select %p283, %s21, 1
      %p285 = scmp.lt.s32.totalorder %s282, 3
      %s286 = scalar_select %p285, %s282, 3
      %s287 = smul.addr %s284, 4
      %s288 = sadd.s32 %s286, %s287
      %s289 = smul.addr %s288, 8
      %s290 = scalar_lea.vmem %s0, %s289
      %s291 = smul.u32 4, %s22
      %s292 = smul.u32 4, %s22
      %p293 = scmp.lt.s32.totalorder %s21, 1
      %s294 = scalar_select %p293, %s21, 1
      %p295 = scmp.lt.s32.totalorder %s292, 3
      %s296 = scalar_select %p295, %s292, 3
      %s297 = smul.addr %s294, 4
      %s298 = sadd.s32 %s296, %s297
      %s299 = smul.addr %s298, 8
      %s300 = scalar_lea.vmem %s1, %s299
      %s301 = smul.u32 4, %s22
      %s302 = smul.u32 4, %s22
      %p303 = scmp.lt.s32.totalorder %s21, 1
      %s304 = scalar_select %p303, %s21, 1
      %p305 = scmp.lt.s32.totalorder %s302, 3
      %s306 = scalar_select %p305, %s302, 3
      %s307 = smul.addr %s304, 4
      %s308 = sadd.s32 %s306, %s307
      %s309 = smul.addr %s308, 8
      %s310 = scalar_lea.vmem %s4, %s309
      %s311 = smul.u32 4, %s22
      %p312 = scmp.lt.s32.totalorder %s21, 1
      %s313 = scalar_select %p312, %s21, 1
      %p314 = scmp.lt.s32.totalorder %s22, 0
      %s315 = scalar_select %p314, %s22, 0
      %s316 = sadd.s32 %s315, %s313
      %s317 = smul.addr %s316, 8
      %s318 = scalar_lea.vmem %s5, %s317
      %v319 = vld [vmem:[%s2] sm:$0xff]
      %v320 = vld [vmem:[%s290] sm:$0xff]
      %v321 = vld [vmem:[%s290 + $0x8] sm:$0xff]
      %v322 = vld [vmem:[%s290 + $0x10] sm:$0xff]
      %v323 = vld [vmem:[%s290 + $0x18] sm:$0xff]
      %v324 = vld [vmem:[%s3] sm:$0xff]
      %326 = vset.pattern.permute.xlu0 0
      %327 = vperm.xlu0 %326, %v324
      %v328 = vpop.permute.xlu0 %327
      %vm330 = vcmask 64512
      %v332 = vsel %vm330, %v319, 0
      %334 = vmatprep.subr.mxu0 0.0
      %335 = vmatpush1.msra.mxu0 0.0
      %336 = vmatprep.subr.mxu0 0.0
      %337 = vmatpush1.msra.mxu0 0.0
      %338 = vmatprep.subr.mxu0 0.0
      %339 = vmatpush1.msra.mxu0 0.0
      %340 = vmatprep.subr.mxu0 0.0
      %341 = vmatpush1.msra.mxu0 0.0
      %342 = vmatprep.subr.mxu0 0.0
      %343 = vmatpush1.msra.mxu0 0.0
      %344 = vmatprep.subr.mxu0 0.0
      %345 = vmatpush1.msra.mxu0 0.0
      %346 = vmatprep.subr.mxu0 0.0
      %347 = vmatpush1.msra.mxu0 0.0
      %348 = vmatprep.subr.mxu0 0.0
      %349 = vmatpush1.msra.mxu0 0.0
      %350 = vmatprep.subr.mxu0 0.0
      %351 = vmatpush1.msra.mxu0 0.0
      %352 = vmatprep.subr.mxu0 0.0
      %353 = vmatpush1.msra.mxu0 0.0
      %354 = vmatprep.subr.mxu0 0.0
      %355 = vmatpush1.msra.mxu0 0.0
      %356 = vmatprep.subr.mxu0 0.0
      %357 = vmatpush1.msra.mxu0 0.0
      %358 = vmatprep.subr.mxu0 0.0
      %359 = vmatpush1.msra.mxu0 0.0
      %360 = vmatprep.subr.mxu0 0.0
      %361 = vmatpush1.msra.mxu0 0.0
      %362 = vmatprep.subr.mxu0 0.0
      %363 = vmatpush1.msra.mxu0 0.0
      %364 = vmatprep.subr.mxu0 %v321
      %365 = vmatpush1.msra.mxu0 %v320
      %366 = vmatprep.subr.mxu0 0.0
      %367 = vmatpush2.msra.mxu0 0.0
      %368 = vmatprep.subr.mxu0 0.0
      %369 = vmatpush2.msra.mxu0 0.0
      %370 = vmatprep.subr.mxu0 0.0
      %371 = vmatpush2.msra.mxu0 0.0
      %372 = vmatprep.subr.mxu0 0.0
      %373 = vmatpush2.msra.mxu0 0.0
      %374 = vmatprep.subr.mxu0 0.0
      %375 = vmatpush2.msra.mxu0 0.0
      %376 = vmatprep.subr.mxu0 0.0
      %377 = vmatpush2.msra.mxu0 0.0
      %378 = vmatprep.subr.mxu0 0.0
      %379 = vmatpush2.msra.mxu0 0.0
      %380 = vmatprep.subr.mxu0 0.0
      %381 = vmatpush2.msra.mxu0 0.0
      %382 = vmatprep.subr.mxu0 0.0
      %383 = vmatpush2.msra.mxu0 0.0
      %384 = vmatprep.subr.mxu0 0.0
      %385 = vmatpush2.msra.mxu0 0.0
      %386 = vmatprep.subr.mxu0 0.0
      %387 = vmatpush2.msra.mxu0 0.0
      %388 = vmatprep.subr.mxu0 0.0
      %389 = vmatpush2.msra.mxu0 0.0
      %390 = vmatprep.subr.mxu0 0.0
      %391 = vmatpush2.msra.mxu0 0.0
      %392 = vmatprep.subr.mxu0 0.0
      %393 = vmatpush2.msra.mxu0 0.0
      %394 = vmatprep.subr.mxu0 0.0
      %395 = vmatpush2.msra.mxu0 0.0
      %396 = vmatprep.subr.mxu0 0.0
      %397 = vmatpush2.msra.mxu0 0.0
      %398 = vmatprep.mubr.f32.mxu0 0.0
      %399 = vmatmul.mubr.f32.gmra.mxu0 %v332
      %v400 = vpop.f32.mrf.mxu0
      %v401 = vadd.f32 %v328, %v400
      %v402 = vpop.f32.mrf.mxu0
      %v403 = vadd.f32 %v328, %v402
      %404 = vdwg.mxu0
      %405 = vmatprep.subr.mxu0 0.0
      %406 = vmatpush1.msra.mxu0 0.0
      %407 = vmatprep.subr.mxu0 0.0
      %408 = vmatpush1.msra.mxu0 0.0
      %409 = vmatprep.subr.mxu0 0.0
      %410 = vmatpush1.msra.mxu0 0.0
      %411 = vmatprep.subr.mxu0 0.0
      %412 = vmatpush1.msra.mxu0 0.0
      %413 = vmatprep.subr.mxu0 0.0
      %414 = vmatpush1.msra.mxu0 0.0
      %415 = vmatprep.subr.mxu0 0.0
      %416 = vmatpush1.msra.mxu0 0.0
      %417 = vmatprep.subr.mxu0 0.0
      %418 = vmatpush1.msra.mxu0 0.0
      %419 = vmatprep.subr.mxu0 0.0
      %420 = vmatpush1.msra.mxu0 0.0
      %421 = vmatprep.subr.mxu0 0.0
      %422 = vmatpush1.msra.mxu0 0.0
      %423 = vmatprep.subr.mxu0 0.0
      %424 = vmatpush1.msra.mxu0 0.0
      %425 = vmatprep.subr.mxu0 0.0
      %426 = vmatpush1.msra.mxu0 0.0
      %427 = vmatprep.subr.mxu0 0.0
      %428 = vmatpush1.msra.mxu0 0.0
      %429 = vmatprep.subr.mxu0 0.0
      %430 = vmatpush1.msra.mxu0 0.0
      %431 = vmatprep.subr.mxu0 0.0
      %432 = vmatpush1.msra.mxu0 0.0
      %433 = vmatprep.subr.mxu0 0.0
      %434 = vmatpush1.msra.mxu0 0.0
      %435 = vmatprep.subr.mxu0 %v323
      %436 = vmatpush1.msra.mxu0 %v322
      %437 = vmatprep.subr.mxu0 0.0
      %438 = vmatpush2.msra.mxu0 0.0
      %439 = vmatprep.subr.mxu0 0.0
      %440 = vmatpush2.msra.mxu0 0.0
      %441 = vmatprep.subr.mxu0 0.0
      %442 = vmatpush2.msra.mxu0 0.0
      %443 = vmatprep.subr.mxu0 0.0
      %444 = vmatpush2.msra.mxu0 0.0
      %445 = vmatprep.subr.mxu0 0.0
      %446 = vmatpush2.msra.mxu0 0.0
      %447 = vmatprep.subr.mxu0 0.0
      %448 = vmatpush2.msra.mxu0 0.0
      %449 = vmatprep.subr.mxu0 0.0
      %450 = vmatpush2.msra.mxu0 0.0
      %451 = vmatprep.subr.mxu0 0.0
      %452 = vmatpush2.msra.mxu0 0.0
      %453 = vmatprep.subr.mxu0 0.0
      %454 = vmatpush2.msra.mxu0 0.0
      %455 = vmatprep.subr.mxu0 0.0
      %456 = vmatpush2.msra.mxu0 0.0
      %457 = vmatprep.subr.mxu0 0.0
      %458 = vmatpush2.msra.mxu0 0.0
      %459 = vmatprep.subr.mxu0 0.0
      %460 = vmatpush2.msra.mxu0 0.0
      %461 = vmatprep.subr.mxu0 0.0
      %462 = vmatpush2.msra.mxu0 0.0
      %463 = vmatprep.subr.mxu0 0.0
      %464 = vmatpush2.msra.mxu0 0.0
      %465 = vmatprep.subr.mxu0 0.0
      %466 = vmatpush2.msra.mxu0 0.0
      %467 = vmatprep.subr.mxu0 0.0
      %468 = vmatpush2.msra.mxu0 0.0
      %469 = vmatprep.mubr.f32.mxu0 0.0
      %470 = vmatmul.mubr.f32.gmra.mxu0 %v332
      %v471 = vpop.f32.mrf.mxu0
      %v472 = vadd.f32 %v328, %v471
      %v473 = vpop.f32.mrf.mxu0
      %v474 = vadd.f32 %v328, %v473
      %475 = vdwg.mxu0
      %v476 = vld [vmem:[%s300] sm:$0xff]
      %v477 = vld [vmem:[%s300 + $0x8] sm:$0xff]
      %v478 = vld [vmem:[%s300 + $0x10] sm:$0xff]
      %v479 = vld [vmem:[%s300 + $0x18] sm:$0xff]
      %v480 = vadd.f32 %v401, %v476
      %v481 = vadd.f32 %v403, %v477
      %v482 = vadd.f32 %v472, %v478
      %v483 = vadd.f32 %v474, %v479
      %484 = vst [vmem:[%s310] sm:$0xff] %v480
      %485 = vst [vmem:[%s310 + $0x8] sm:$0xff] %v481
      %486 = vst [vmem:[%s310 + $0x10] sm:$0xff] %v482
      %487 = vst [vmem:[%s310 + $0x18] sm:$0xff] %v483
      %v488 = vadd.f32 %v480, %v481
      %v489 = vadd.f32 %v488, %v482
      %v490 = vadd.f32 %v489, %v483
      %491 = vadd.xlane.f32.xlu0 %v490
      %v492 = vpop.xlane.xlu0 %491
      %v493 = vmul.f32 %v480, %v480
      %v494 = vmul.f32 %v481, %v481
      %v495 = vmul.f32 %v482, %v482
      %v496 = vmul.f32 %v483, %v483
      %v497 = vadd.f32 %v493, %v494
      %v498 = vadd.f32 %v497, %v495
      %v499 = vadd.f32 %v498, %v496
      %500 = vadd.xlane.f32.xlu0 %v499
      %v501 = vpop.xlane.xlu0 %500
      %vm502 = vcmask 7168
      %v503 = vsel %vm502, %v492, %v501
      %vm504 = vcmask 15360
      %505 = vst.msk [vmem:[%s318] sm:$0xff] %vm504, %v503
      %s506 = smul.u32 4, %s22
      %p507 = scmp.lt.s32.totalorder %s21, 1
      %s508 = scalar_select %p507, %s21, 1
      %p509 = scmp.lt.s32.totalorder %s506, 3
      %s510 = scalar_select %p509, %s506, 3
      %s511 = smul.addr %s508, 4
      %s512 = sadd.s32 %s510, %s511
      %s513 = smul.addr %s512, 8
      %s514 = scalar_lea.vmem %s4, %s513
      %p515 = scmp.lt.s32.totalorder %s21, 1
      %s516 = scalar_select %p515, %s21, 1
      %p517 = scmp.lt.s32.totalorder %s22, 0
      %s518 = scalar_select %p517, %s22, 0
      %s519 = sadd.s32 %s518, %s516
      %s520 = smul.addr %s519, 8
      %s521 = scalar_lea.vmem %s5, %s520
      // Predicated region
      $region37: #{net3d_forward.16} parent=35 // pred_check
        %p522 = pneg %p147
      $region38: #{net3d_forward.16} parent=35 // pred_check_branch
        %524 = sbr.rel (%p522) target = $region40
      $region39: #{net3d_forward.16} parent=35 // pred_region
        %s525 = smul.u32 4, %s22
      $region40: #{net3d_forward.16} parent=35 // pred_fallthru
        _
      // Predicated region
      $region41: #{net3d_forward.16} parent=35 // pred_check
        %p526 = pneg %p175
      $region42: #{net3d_forward.16} parent=35 // pred_check_branch
        %528 = sbr.rel (%p526) target = $region44
      $region43: #{net3d_forward.16} parent=35 // pred_region
        _
      $region44: #{net3d_forward.16} parent=35 // pred_fallthru
        _
    $region36: #{net3d_forward.16} parent=5 // pred_fallthru
      _
    %p529 = scmp.le.s32.totalorder 2, %s12
    // Predicated region
    $region45: #{net3d_forward.16} parent=5 // pred_check
      %p530 = pneg %p529
    $region46: #{net3d_forward.16} parent=5 // pred_check_branch
      %532 = sbr.rel (%p530) target = $region48
    $region47: #{net3d_forward.16} parent=5 // pred_region
      %s533 = ssub.s32 %s12, 2
      // Predicated region
      $region49: #{net3d_forward.16} parent=47 // pred_check
        %p534 = pneg %p153
      $region50: #{net3d_forward.16} parent=47 // pred_check_branch
        %536 = sbr.rel (%p534) target = $region52
      $region51: #{net3d_forward.16} parent=47 // pred_region
        %s537 = smul.u32 4, %s24
        %p538 = scmp.lt.s32.totalorder %s23, 1
        %s539 = scalar_select %p538, %s23, 1
        %p540 = scmp.lt.s32.totalorder %s537, 3
        %s541 = scalar_select %p540, %s537, 3
        %s542 = smul.addr %s539, 4
        %s543 = sadd.s32 %s541, %s542
        %s544 = smul.addr %s543, 8
        %s545 = scalar_lea.vmem %s4, %s544
      $region52: #{net3d_forward.16} parent=47 // pred_fallthru
        _
      // Predicated region
      $region53: #{net3d_forward.16} parent=47 // pred_check
        %p546 = pneg %p181
      $region54: #{net3d_forward.16} parent=47 // pred_check_branch
        %548 = sbr.rel (%p546) target = $region56
      $region55: #{net3d_forward.16} parent=47 // pred_region
        %p549 = scmp.lt.s32.totalorder %s23, 1
        %s550 = scalar_select %p549, %s23, 1
        %p551 = scmp.lt.s32.totalorder %s24, 0
        %s552 = scalar_select %p551, %s24, 0
        %s553 = sadd.s32 %s552, %s550
        %s554 = smul.addr %s553, 8
        %s555 = scalar_lea.vmem %s5, %s554
      $region56: #{net3d_forward.16} parent=47 // pred_fallthru
        _
    $region48: #{net3d_forward.16} parent=5 // pred_fallthru
      _
  $region6: #{net3d_forward.16} parent=0 // loop_footer
    %s16 = sadd.s32 1, %s12
  $region7: #{net3d_forward.16} parent=0 // loop_footer_branch
    %11 = sbr.rel target = $region3
  $region8: #{net3d_forward.16} parent=0 // loop_exit
    _

// kernel: net3d_forward.17
$region0: #{net3d_forward.17}
  #allocation0 [shape = 'u32[]', space=smem, size = 0x4, offset = 0x4, fixed_abs, tag = 'smem constant byte address 0x4 - core index']
  #allocation1 [shape = 'u32[144,128]{1,0:T(1,128)}', space=vmem, size = 0x12000, scoped, tag = 'internal scratch']
  %s0 = inlined_call_operand.vmem [shape: f32[2,8,512], index: 0, kind: input, shape index: {}, may-alias: {0,3}]
  %s1 = inlined_call_operand.vmem [shape: f32[8,1], index: 1, kind: input, shape index: {}]
  %s2 = inlined_call_operand.vmem [shape: f32[8,1], index: 2, kind: input, shape index: {}]
  %s3 = inlined_call_operand.vmem [shape: f32[2,8,512], index: 3, kind: output, shape index: {}, may-alias: {0,3}]
  %s4 = sld [smem:[#allocation0]]
  $region45: #{net3d_forward.17} parent=0
    _
  %s6 = ssub.s32 1, %s4
  %s7 = scalar_select 0, %s6, %s4
  loop: start=0, step=1, limit=4
  $region2: #{net3d_forward.17} parent=0 // loop_pre_header
    _
  $region3: #{net3d_forward.17} parent=0 // loop_header
    %s9 = sphi 0, %s13
    %p10 = scmp.ge.s32.totalorder %s9, 4
    %s16 = sphi 0, %s28
    %s17 = sphi 0, %s24
    %s18 = sphi 0, %s16
    %s19 = sphi 0, %s17
    %s20 = sphi 0, %s18
    %s21 = sphi 0, %s19
    %s33 = sphi 0, %s35
    %s36 = sphi 0, %s33
    %s37 = sphi 0, %s36
    %s53 = sphi 0, %s37
    %s57 = sphi 0, %s57
    %s59 = sphi 0, %s57
    %s60 = sphi 0, %s59
    %s74 = sphi 0, %s60
    %s78 = sphi 0, %s78
    %s80 = sphi 0, %s78
    %s81 = sphi 0, %s80
    %s95 = sphi 0, %s81
    %s103 = sphi 0, %s105
    %s106 = sphi 0, %s103
    %s107 = sphi 0, %s106
    %s123 = sphi 0, %s107
  $region4: #{net3d_forward.17} parent=0 // loop_header_branch
    %12 = sbr.rel (%p10) target = $region8
  $region5: #{net3d_forward.17} parent=0 // loop_body
    %s14 = ssub.s32 %s9, 1
    %s15 = ssub.s32 %s9, 2
    %s22 = sadd.s32 1, %s17
    %p23 = scmp.ge.s32.totalorder %s22, 1
    %s24 = scalar_select %p23, 0, %s22
    %s25 = sadd.s32 1, %s16
    %s26 = scalar_select %p23, %s25, %s16
    %p27 = scmp.ge.s32.totalorder %s26, 2
    %s28 = scalar_select %p27, 0, %s26
    %s29 = ssub.s32 %s16, %s28
    %s30 = ssub.s32 %s17, %s24
    %s31 = sor.u32 %s29, %s30
    %p32 = scmp.eq.s32.totalorder %s31, 0
    %s34 = sadd.s32 %s33, 1
    %s35 = scalar_select %p32, %s33, %s34
    %p38 = pneg %p32
    %p39 = scmp.eq.s32.totalorder %s9, 1
    %p40 = por %p38, %p39
    %p41 = scmp.ne.s32.totalorder %s33, %s36
    %p42 = scmp.eq.s32.totalorder %s9, 0
    %p43 = por %p41, %p42
    %p44 = scmp.ne.s32.totalorder %s33, %s36
    %p45 = scmp.eq.s32.totalorder %s14, 1
    %p46 = por %p44, %p45
    %p47 = scmp.ne.s32.totalorder %s36, %s37
    %p48 = scmp.eq.s32.totalorder %s14, 0
    %p49 = por %p47, %p48
    %p50 = scmp.ne.s32.totalorder %s36, %s37
    %p51 = scmp.eq.s32.totalorder %s15, 1
    %p52 = por %p50, %p51
    %p54 = scmp.ne.s32.totalorder %s37, %s53
    %p55 = scmp.eq.s32.totalorder %s15, 0
    %p56 = por %p54, %p55
    %s58 = sadd.s32 %s57, 1
    %p61 = scmp.eq.s32.totalorder %s9, 1
    %p62 = scmp.ne.s32.totalorder %s57, %s59
    %p63 = scmp.eq.s32.totalorder %s9, 0
    %p64 = por %p62, %p63
    %p65 = scmp.ne.s32.totalorder %s57, %s59
    %p66 = scmp.eq.s32.totalorder %s14, 1
    %p67 = por %p65, %p66
    %p68 = scmp.ne.s32.totalorder %s59, %s60
    %p69 = scmp.eq.s32.totalorder %s14, 0
    %p70 = por %p68, %p69
    %p71 = scmp.ne.s32.totalorder %s59, %s60
    %p72 = scmp.eq.s32.totalorder %s15, 1
    %p73 = por %p71, %p72
    %p75 = scmp.ne.s32.totalorder %s60, %s74
    %p76 = scmp.eq.s32.totalorder %s15, 0
    %p77 = por %p75, %p76
    %s79 = sadd.s32 %s78, 1
    %p82 = scmp.eq.s32.totalorder %s9, 1
    %p83 = scmp.ne.s32.totalorder %s78, %s80
    %p84 = scmp.eq.s32.totalorder %s9, 0
    %p85 = por %p83, %p84
    %p86 = scmp.ne.s32.totalorder %s78, %s80
    %p87 = scmp.eq.s32.totalorder %s14, 1
    %p88 = por %p86, %p87
    %p89 = scmp.ne.s32.totalorder %s80, %s81
    %p90 = scmp.eq.s32.totalorder %s14, 0
    %p91 = por %p89, %p90
    %p92 = scmp.ne.s32.totalorder %s80, %s81
    %p93 = scmp.eq.s32.totalorder %s15, 1
    %p94 = por %p92, %p93
    %p96 = scmp.ne.s32.totalorder %s81, %s95
    %p97 = scmp.eq.s32.totalorder %s15, 0
    %p98 = por %p96, %p97
    %s99 = ssub.s32 %s16, %s28
    %s100 = ssub.s32 %s17, %s24
    %s101 = sor.u32 %s99, %s100
    %p102 = scmp.eq.s32.totalorder %s101, 0
    %s104 = sadd.s32 %s103, 1
    %s105 = scalar_select %p102, %s103, %s104
    %p108 = pneg %p102
    %p109 = scmp.eq.s32.totalorder %s9, 1
    %p110 = por %p108, %p109
    %p111 = scmp.ne.s32.totalorder %s103, %s106
    %p112 = scmp.eq.s32.totalorder %s9, 0
    %p113 = por %p111, %p112
    %p114 = scmp.ne.s32.totalorder %s103, %s106
    %p115 = scmp.eq.s32.totalorder %s14, 1
    %p116 = por %p114, %p115
    %p117 = scmp.ne.s32.totalorder %s106, %s107
    %p118 = scmp.eq.s32.totalorder %s14, 0
    %p119 = por %p117, %p118
    %p120 = scmp.ne.s32.totalorder %s106, %s107
    %p121 = scmp.eq.s32.totalorder %s15, 1
    %p122 = por %p120, %p121
    %p124 = scmp.ne.s32.totalorder %s107, %s123
    %p125 = scmp.eq.s32.totalorder %s15, 0
    %p126 = por %p124, %p125
    %p127 = scmp.le.s32.totalorder 1, %s9
    %p128 = scmp.lt.s32.totalorder %s9, 3
    %p129 = pnand %p127, %p128
    %p130 = pneg %p129
    // Predicated region
    $region9: #{net3d_forward.17} parent=5 // pred_check
      _
    $region10: #{net3d_forward.17} parent=5 // pred_check_branch
      %132 = sbr.rel (%p129) target = $region12
    $region11: #{net3d_forward.17} parent=5 // pred_region
      %s133 = ssub.s32 %s9, 1
      // Predicated region
      $region13: #{net3d_forward.17} parent=11 // pred_check
        %p134 = pneg %p70
      $region14: #{net3d_forward.17} parent=11 // pred_check_branch
        %136 = sbr.rel (%p134) target = $region16
      $region15: #{net3d_forward.17} parent=11 // pred_region
        _
      $region16: #{net3d_forward.17} parent=11 // pred_fallthru
        _
      // Predicated region
      $region17: #{net3d_forward.17} parent=11 // pred_check
        %p137 = pneg %p91
      $region18: #{net3d_forward.17} parent=11 // pred_check_branch
        %139 = sbr.rel (%p137) target = $region20
      $region19: #{net3d_forward.17} parent=11 // pred_region
        _
      $region20: #{net3d_forward.17} parent=11 // pred_fallthru
        _
    $region12: #{net3d_forward.17} parent=5 // pred_fallthru
      _
    %p140 = scmp.lt.s32.totalorder %s9, 2
    // Predicated region
    $region21: #{net3d_forward.17} parent=5 // pred_check
      %p141 = pneg %p140
    $region22: #{net3d_forward.17} parent=5 // pred_check_branch
      %143 = sbr.rel (%p141) target = $region24
    $region23: #{net3d_forward.17} parent=5 // pred_region
      // Predicated region
      $region25: #{net3d_forward.17} parent=23 // pred_check
        %p144 = pneg %p43
      $region26: #{net3d_forward.17} parent=23 // pred_check_branch
        %146 = sbr.rel (%p144) target = $region28
      $region27: #{net3d_forward.17} parent=23 // pred_region
        %s147 = smul.u32 4, %s17
        %p148 = scmp.lt.s32.totalorder %s16, 1
        %s149 = scalar_select %p148, %s16, 1
        %p150 = scmp.lt.s32.totalorder %s147, 3
        %s151 = scalar_select %p150, %s147, 3
        %s152 = smul.addr %s149, 4
        %s153 = sadd.s32 %s151, %s152
        %s154 = smul.addr %s153, 8
        %s155 = scalar_lea.vmem %s0, %s154
        %s156 = smul.u32 4, %s17
      $region28: #{net3d_forward.17} parent=23 // pred_fallthru
        _
    $region24: #{net3d_forward.17} parent=5 // pred_fallthru
      _
    %p157 = scmp.le.s32.totalorder 1, %s9
    %p158 = scmp.lt.s32.totalorder %s9, 3
    %p159 = pnand %p157, %p158
    %p160 = pneg %p159
    // Predicated region
    $region29: #{net3d_forward.17} parent=5 // pred_check
      _
    $region30: #{net3d_forward.17} parent=5 // pred_check_branch
      %162 = sbr.rel (%p159) target = $region32
    $region31: #{net3d_forward.17} parent=5 // pred_region
      %s163 = ssub.s32 %s9, 1
      %s164 = smul.u32 4, %s19
      %p165 = scmp.lt.s32.totalorder %s18, 1
      %s166 = scalar_select %p165, %s18, 1
      %p167 = scmp.lt.s32.totalorder %s164, 3
      %s168 = scalar_select %p167, %s164, 3
      %s169 = smul.addr %s166, 4
      %s170 = sadd.s32 %s168, %s169
      %s171 = smul.addr %s170, 8
      %s172 = scalar_lea.vmem %s0, %s171
      %p173 = pneg %p49
      %p174 = pneg %p46
      %p175 = pneg %p70
      %p176 = pneg %p67
      %p177 = pneg %p91
      %p178 = pneg %p88
      %p179 = pneg %p119
      %p180 = pneg %p116
      %s181 = smul.u32 4, %s19
      %p182 = scmp.lt.s32.totalorder %s18, 1
      %s183 = scalar_select %p182, %s18, 1
      %p184 = scmp.lt.s32.totalorder %s181, 3
      %s185 = scalar_select %p184, %s181, 3
      %s186 = smul.addr %s183, 4
      %s187 = sadd.s32 %s185, %s186
      %s188 = smul.addr %s187, 8
      %s189 = scalar_lea.vmem %s3, %s188
      %s190 = smul.u32 4, %s19
      %p191 = scmp.lt.s32.totalorder %s18, 1
      %s192 = scalar_select %p191, %s18, 1
      %p193 = scmp.lt.s32.totalorder %s190, 3
      %s194 = scalar_select %p193, %s190, 3
      %s195 = smul.addr %s192, 4
      %s196 = sadd.s32 %s194, %s195
      %s197 = smul.addr %s196, 8
      %s198 = scalar_lea.vmem %s0, %s197
      %s199 = smul.u32 4, %s19
      %s200 = smul.u32 4, %s19
      %p201 = scmp.lt.s32.totalorder %s18, 1
      %s202 = scalar_select %p201, %s18, 1
      %p203 = scmp.lt.s32.totalorder %s200, 3
      %s204 = scalar_select %p203, %s200, 3
      %s205 = smul.addr %s202, 4
      %s206 = sadd.s32 %s204, %s205
      %s207 = smul.addr %s206, 8
      %s208 = scalar_lea.vmem %s3, %s207
      %s209 = smul.u32 4, %s19
      %v210 = vld [vmem:[%s198] sm:$0xff]
      %v211 = vld [vmem:[%s198 + $0x8] sm:$0xff]
      %v212 = vld [vmem:[%s198 + $0x10] sm:$0xff]
      %v213 = vld [vmem:[%s198 + $0x18] sm:$0xff]
      %v214 = vld [vmem:[%s1] sm:$0xff]
      %216 = vset.pattern.permute.xlu0 0
      %217 = vperm.xlu0 %216, %v214
      %v218 = vpop.permute.xlu0 %217
      %v220 = vmul.f32 %v210, %v218
      %v221 = vmul.f32 %v211, %v218
      %v222 = vmul.f32 %v212, %v218
      %v223 = vmul.f32 %v213, %v218
      %v224 = vld [vmem:[%s2] sm:$0xff]
      %226 = vset.pattern.permute.xlu0 0
      %227 = vperm.xlu0 %226, %v224
      %v228 = vpop.permute.xlu0 %227
      %v230 = vadd.f32 %v220, %v228
      %v231 = vadd.f32 %v221, %v228
      %v232 = vadd.f32 %v222, %v228
      %v233 = vadd.f32 %v223, %v228
      %v234 = vmax.f32 %v230, 0.0
      %v235 = vmax.f32 %v231, 0.0
      %v236 = vmax.f32 %v232, 0.0
      %v237 = vmax.f32 %v233, 0.0
      %238 = vst [vmem:[%s208] sm:$0xff] %v234
      %239 = vst [vmem:[%s208 + $0x8] sm:$0xff] %v235
      %240 = vst [vmem:[%s208 + $0x10] sm:$0xff] %v236
      %241 = vst [vmem:[%s208 + $0x18] sm:$0xff] %v237
      %s242 = smul.u32 4, %s19
      %p243 = scmp.lt.s32.totalorder %s18, 1
      %s244 = scalar_select %p243, %s18, 1
      %p245 = scmp.lt.s32.totalorder %s242, 3
      %s246 = scalar_select %p245, %s242, 3
      %s247 = smul.addr %s244, 4
      %s248 = sadd.s32 %s246, %s247
      %s249 = smul.addr %s248, 8
      %s250 = scalar_lea.vmem %s3, %s249
      // Predicated region
      $region33: #{net3d_forward.17} parent=31 // pred_check
        %p251 = pneg %p116
      $region34: #{net3d_forward.17} parent=31 // pred_check_branch
        %253 = sbr.rel (%p251) target = $region36
      $region35: #{net3d_forward.17} parent=31 // pred_region
        %s254 = smul.u32 4, %s19
      $region36: #{net3d_forward.17} parent=31 // pred_fallthru
        _
    $region32: #{net3d_forward.17} parent=5 // pred_fallthru
      _
    %p255 = scmp.le.s32.totalorder 2, %s9
    // Predicated region
    $region37: #{net3d_forward.17} parent=5 // pred_check
      %p256 = pneg %p255
    $region38: #{net3d_forward.17} parent=5 // pred_check_branch
      %258 = sbr.rel (%p256) target = $region40
    $region39: #{net3d_forward.17} parent=5 // pred_region
      %s259 = ssub.s32 %s9, 2
      // Predicated region
      $region41: #{net3d_forward.17} parent=39 // pred_check
        %p260 = pneg %p122
      $region42: #{net3d_forward.17} parent=39 // pred_check_branch
        %262 = sbr.rel (%p260) target = $region44
      $region43: #{net3d_forward.17} parent=39 // pred_region
        %s263 = smul.u32 4, %s21
        %p264 = scmp.lt.s32.totalorder %s20, 1
        %s265 = scalar_select %p264, %s20, 1
        %p266 = scmp.lt.s32.totalorder %s263, 3
        %s267 = scalar_select %p266, %s263, 3
        %s268 = smul.addr %s265, 4
        %s269 = sadd.s32 %s267, %s268
        %s270 = smul.addr %s269, 8
        %s271 = scalar_lea.vmem %s3, %s270
      $region44: #{net3d_forward.17} parent=39 // pred_fallthru
        _
    $region40: #{net3d_forward.17} parent=5 // pred_fallthru
      _
  $region6: #{net3d_forward.17} parent=0 // loop_footer
    %s13 = sadd.s32 1, %s9
  $region7: #{net3d_forward.17} parent=0 // loop_footer_branch
    %8 = sbr.rel target = $region3
  $region8: #{net3d_forward.17} parent=0 // loop_exit
    _

// kernel: net3d_forward.26
$region0: #{net3d_forward.26}
  #allocation0 [shape = 'u32[]', space=smem, size = 0x4, offset = 0x4, fixed_abs, tag = 'smem constant byte address 0x4 - core index']
  #allocation1 [shape = 'u32[144,128]{1,0:T(1,128)}', space=vmem, size = 0x12000, scoped, tag = 'internal scratch']
  %s0 = inlined_call_operand.vmem [shape: f32[2,8,512], index: 0, kind: input, shape index: {}, may-alias: {0,3}]
  %s1 = inlined_call_operand.vmem [shape: f32[8,1], index: 1, kind: input, shape index: {}]
  %s2 = inlined_call_operand.vmem [shape: f32[8,1], index: 2, kind: input, shape index: {}]
  %s3 = inlined_call_operand.vmem [shape: f32[2,8,512], index: 3, kind: output, shape index: {}, may-alias: {0,3}]
  %s4 = sld [smem:[#allocation0]]
  $region45: #{net3d_forward.26} parent=0
    _
  %s6 = ssub.s32 1, %s4
  %s7 = scalar_select 0, %s6, %s4
  loop: start=0, step=1, limit=4
  $region2: #{net3d_forward.26} parent=0 // loop_pre_header
    _
  $region3: #{net3d_forward.26} parent=0 // loop_header
    %s9 = sphi 0, %s13
    %p10 = scmp.ge.s32.totalorder %s9, 4
    %s16 = sphi 0, %s28
    %s17 = sphi 0, %s24
    %s18 = sphi 0, %s16
    %s19 = sphi 0, %s17
    %s20 = sphi 0, %s18
    %s21 = sphi 0, %s19
    %s33 = sphi 0, %s35
    %s36 = sphi 0, %s33
    %s37 = sphi 0, %s36
    %s53 = sphi 0, %s37
    %s57 = sphi 0, %s57
    %s59 = sphi 0, %s57
    %s60 = sphi 0, %s59
    %s74 = sphi 0, %s60
    %s78 = sphi 0, %s78
    %s80 = sphi 0, %s78
    %s81 = sphi 0, %s80
    %s95 = sphi 0, %s81
    %s103 = sphi 0, %s105
    %s106 = sphi 0, %s103
    %s107 = sphi 0, %s106
    %s123 = sphi 0, %s107
  $region4: #{net3d_forward.26} parent=0 // loop_header_branch
    %12 = sbr.rel (%p10) target = $region8
  $region5: #{net3d_forward.26} parent=0 // loop_body
    %s14 = ssub.s32 %s9, 1
    %s15 = ssub.s32 %s9, 2
    %s22 = sadd.s32 1, %s17
    %p23 = scmp.ge.s32.totalorder %s22, 1
    %s24 = scalar_select %p23, 0, %s22
    %s25 = sadd.s32 1, %s16
    %s26 = scalar_select %p23, %s25, %s16
    %p27 = scmp.ge.s32.totalorder %s26, 2
    %s28 = scalar_select %p27, 0, %s26
    %s29 = ssub.s32 %s16, %s28
    %s30 = ssub.s32 %s17, %s24
    %s31 = sor.u32 %s29, %s30
    %p32 = scmp.eq.s32.totalorder %s31, 0
    %s34 = sadd.s32 %s33, 1
    %s35 = scalar_select %p32, %s33, %s34
    %p38 = pneg %p32
    %p39 = scmp.eq.s32.totalorder %s9, 1
    %p40 = por %p38, %p39
    %p41 = scmp.ne.s32.totalorder %s33, %s36
    %p42 = scmp.eq.s32.totalorder %s9, 0
    %p43 = por %p41, %p42
    %p44 = scmp.ne.s32.totalorder %s33, %s36
    %p45 = scmp.eq.s32.totalorder %s14, 1
    %p46 = por %p44, %p45
    %p47 = scmp.ne.s32.totalorder %s36, %s37
    %p48 = scmp.eq.s32.totalorder %s14, 0
    %p49 = por %p47, %p48
    %p50 = scmp.ne.s32.totalorder %s36, %s37
    %p51 = scmp.eq.s32.totalorder %s15, 1
    %p52 = por %p50, %p51
    %p54 = scmp.ne.s32.totalorder %s37, %s53
    %p55 = scmp.eq.s32.totalorder %s15, 0
    %p56 = por %p54, %p55
    %s58 = sadd.s32 %s57, 1
    %p61 = scmp.eq.s32.totalorder %s9, 1
    %p62 = scmp.ne.s32.totalorder %s57, %s59
    %p63 = scmp.eq.s32.totalorder %s9, 0
    %p64 = por %p62, %p63
    %p65 = scmp.ne.s32.totalorder %s57, %s59
    %p66 = scmp.eq.s32.totalorder %s14, 1
    %p67 = por %p65, %p66
    %p68 = scmp.ne.s32.totalorder %s59, %s60
    %p69 = scmp.eq.s32.totalorder %s14, 0
    %p70 = por %p68, %p69
    %p71 = scmp.ne.s32.totalorder %s59, %s60
    %p72 = scmp.eq.s32.totalorder %s15, 1
    %p73 = por %p71, %p72
    %p75 = scmp.ne.s32.totalorder %s60, %s74
    %p76 = scmp.eq.s32.totalorder %s15, 0
    %p77 = por %p75, %p76
    %s79 = sadd.s32 %s78, 1
    %p82 = scmp.eq.s32.totalorder %s9, 1
    %p83 = scmp.ne.s32.totalorder %s78, %s80
    %p84 = scmp.eq.s32.totalorder %s9, 0
    %p85 = por %p83, %p84
    %p86 = scmp.ne.s32.totalorder %s78, %s80
    %p87 = scmp.eq.s32.totalorder %s14, 1
    %p88 = por %p86, %p87
    %p89 = scmp.ne.s32.totalorder %s80, %s81
    %p90 = scmp.eq.s32.totalorder %s14, 0
    %p91 = por %p89, %p90
    %p92 = scmp.ne.s32.totalorder %s80, %s81
    %p93 = scmp.eq.s32.totalorder %s15, 1
    %p94 = por %p92, %p93
    %p96 = scmp.ne.s32.totalorder %s81, %s95
    %p97 = scmp.eq.s32.totalorder %s15, 0
    %p98 = por %p96, %p97
    %s99 = ssub.s32 %s16, %s28
    %s100 = ssub.s32 %s17, %s24
    %s101 = sor.u32 %s99, %s100
    %p102 = scmp.eq.s32.totalorder %s101, 0
    %s104 = sadd.s32 %s103, 1
    %s105 = scalar_select %p102, %s103, %s104
    %p108 = pneg %p102
    %p109 = scmp.eq.s32.totalorder %s9, 1
    %p110 = por %p108, %p109
    %p111 = scmp.ne.s32.totalorder %s103, %s106
    %p112 = scmp.eq.s32.totalorder %s9, 0
    %p113 = por %p111, %p112
    %p114 = scmp.ne.s32.totalorder %s103, %s106
    %p115 = scmp.eq.s32.totalorder %s14, 1
    %p116 = por %p114, %p115
    %p117 = scmp.ne.s32.totalorder %s106, %s107
    %p118 = scmp.eq.s32.totalorder %s14, 0
    %p119 = por %p117, %p118
    %p120 = scmp.ne.s32.totalorder %s106, %s107
    %p121 = scmp.eq.s32.totalorder %s15, 1
    %p122 = por %p120, %p121
    %p124 = scmp.ne.s32.totalorder %s107, %s123
    %p125 = scmp.eq.s32.totalorder %s15, 0
    %p126 = por %p124, %p125
    %p127 = scmp.le.s32.totalorder 1, %s9
    %p128 = scmp.lt.s32.totalorder %s9, 3
    %p129 = pnand %p127, %p128
    %p130 = pneg %p129
    // Predicated region
    $region9: #{net3d_forward.26} parent=5 // pred_check
      _
    $region10: #{net3d_forward.26} parent=5 // pred_check_branch
      %132 = sbr.rel (%p129) target = $region12
    $region11: #{net3d_forward.26} parent=5 // pred_region
      %s133 = ssub.s32 %s9, 1
      // Predicated region
      $region13: #{net3d_forward.26} parent=11 // pred_check
        %p134 = pneg %p70
      $region14: #{net3d_forward.26} parent=11 // pred_check_branch
        %136 = sbr.rel (%p134) target = $region16
      $region15: #{net3d_forward.26} parent=11 // pred_region
        _
      $region16: #{net3d_forward.26} parent=11 // pred_fallthru
        _
      // Predicated region
      $region17: #{net3d_forward.26} parent=11 // pred_check
        %p137 = pneg %p91
      $region18: #{net3d_forward.26} parent=11 // pred_check_branch
        %139 = sbr.rel (%p137) target = $region20
      $region19: #{net3d_forward.26} parent=11 // pred_region
        _
      $region20: #{net3d_forward.26} parent=11 // pred_fallthru
        _
    $region12: #{net3d_forward.26} parent=5 // pred_fallthru
      _
    %p140 = scmp.lt.s32.totalorder %s9, 2
    // Predicated region
    $region21: #{net3d_forward.26} parent=5 // pred_check
      %p141 = pneg %p140
    $region22: #{net3d_forward.26} parent=5 // pred_check_branch
      %143 = sbr.rel (%p141) target = $region24
    $region23: #{net3d_forward.26} parent=5 // pred_region
      // Predicated region
      $region25: #{net3d_forward.26} parent=23 // pred_check
        %p144 = pneg %p43
      $region26: #{net3d_forward.26} parent=23 // pred_check_branch
        %146 = sbr.rel (%p144) target = $region28
      $region27: #{net3d_forward.26} parent=23 // pred_region
        %s147 = smul.u32 4, %s17
        %p148 = scmp.lt.s32.totalorder %s16, 1
        %s149 = scalar_select %p148, %s16, 1
        %p150 = scmp.lt.s32.totalorder %s147, 3
        %s151 = scalar_select %p150, %s147, 3
        %s152 = smul.addr %s149, 4
        %s153 = sadd.s32 %s151, %s152
        %s154 = smul.addr %s153, 8
        %s155 = scalar_lea.vmem %s0, %s154
        %s156 = smul.u32 4, %s17
      $region28: #{net3d_forward.26} parent=23 // pred_fallthru
        _
    $region24: #{net3d_forward.26} parent=5 // pred_fallthru
      _
    %p157 = scmp.le.s32.totalorder 1, %s9
    %p158 = scmp.lt.s32.totalorder %s9, 3
    %p159 = pnand %p157, %p158
    %p160 = pneg %p159
    // Predicated region
    $region29: #{net3d_forward.26} parent=5 // pred_check
      _
    $region30: #{net3d_forward.26} parent=5 // pred_check_branch
      %162 = sbr.rel (%p159) target = $region32
    $region31: #{net3d_forward.26} parent=5 // pred_region
      %s163 = ssub.s32 %s9, 1
      %s164 = smul.u32 4, %s19
      %p165 = scmp.lt.s32.totalorder %s18, 1
      %s166 = scalar_select %p165, %s18, 1
      %p167 = scmp.lt.s32.totalorder %s164, 3
      %s168 = scalar_select %p167, %s164, 3
      %s169 = smul.addr %s166, 4
      %s170 = sadd.s32 %s168, %s169
      %s171 = smul.addr %s170, 8
      %s172 = scalar_lea.vmem %s0, %s171
      %p173 = pneg %p49
      %p174 = pneg %p46
      %p175 = pneg %p70
      %p176 = pneg %p67
      %p177 = pneg %p91
      %p178 = pneg %p88
      %p179 = pneg %p119
      %p180 = pneg %p116
      %s181 = smul.u32 4, %s19
      %p182 = scmp.lt.s32.totalorder %s18, 1
      %s183 = scalar_select %p182, %s18, 1
      %p184 = scmp.lt.s32.totalorder %s181, 3
      %s185 = scalar_select %p184, %s181, 3
      %s186 = smul.addr %s183, 4
      %s187 = sadd.s32 %s185, %s186
      %s188 = smul.addr %s187, 8
      %s189 = scalar_lea.vmem %s3, %s188
      %s190 = smul.u32 4, %s19
      %p191 = scmp.lt.s32.totalorder %s18, 1
      %s192 = scalar_select %p191, %s18, 1
      %p193 = scmp.lt.s32.totalorder %s190, 3
      %s194 = scalar_select %p193, %s190, 3
      %s195 = smul.addr %s192, 4
      %s196 = sadd.s32 %s194, %s195
      %s197 = smul.addr %s196, 8
      %s198 = scalar_lea.vmem %s0, %s197
      %s199 = smul.u32 4, %s19
      %s200 = smul.u32 4, %s19
      %p201 = scmp.lt.s32.totalorder %s18, 1
      %s202 = scalar_select %p201, %s18, 1
      %p203 = scmp.lt.s32.totalorder %s200, 3
      %s204 = scalar_select %p203, %s200, 3
      %s205 = smul.addr %s202, 4
      %s206 = sadd.s32 %s204, %s205
      %s207 = smul.addr %s206, 8
      %s208 = scalar_lea.vmem %s3, %s207
      %s209 = smul.u32 4, %s19
      %v210 = vld [vmem:[%s198] sm:$0xff]
      %v211 = vld [vmem:[%s198 + $0x8] sm:$0xff]
      %v212 = vld [vmem:[%s198 + $0x10] sm:$0xff]
      %v213 = vld [vmem:[%s198 + $0x18] sm:$0xff]
      %v214 = vld [vmem:[%s1] sm:$0xff]
      %216 = vset.pattern.permute.xlu0 0
      %217 = vperm.xlu0 %216, %v214
      %v218 = vpop.permute.xlu0 %217
      %v220 = vmul.f32 %v210, %v218
      %v221 = vmul.f32 %v211, %v218
      %v222 = vmul.f32 %v212, %v218
      %v223 = vmul.f32 %v213, %v218
      %v224 = vld [vmem:[%s2] sm:$0xff]
      %226 = vset.pattern.permute.xlu0 0
      %227 = vperm.xlu0 %226, %v224
      %v228 = vpop.permute.xlu0 %227
      %v230 = vadd.f32 %v220, %v228
      %v231 = vadd.f32 %v221, %v228
      %v232 = vadd.f32 %v222, %v228
      %v233 = vadd.f32 %v223, %v228
      %234 = vst [vmem:[%s208] sm:$0xff] %v230
      %235 = vst [vmem:[%s208 + $0x8] sm:$0xff] %v231
      %236 = vst [vmem:[%s208 + $0x10] sm:$0xff] %v232
      %237 = vst [vmem:[%s208 + $0x18] sm:$0xff] %v233
      %s238 = smul.u32 4, %s19
      %p239 = scmp.lt.s32.totalorder %s18, 1
      %s240 = scalar_select %p239, %s18, 1
      %p241 = scmp.lt.s32.totalorder %s238, 3
      %s242 = scalar_select %p241, %s238, 3
      %s243 = smul.addr %s240, 4
      %s244 = sadd.s32 %s242, %s243
      %s245 = smul.addr %s244, 8
      %s246 = scalar_lea.vmem %s3, %s245
      // Predicated region
      $region33: #{net3d_forward.26} parent=31 // pred_check
        %p247 = pneg %p116
      $region34: #{net3d_forward.26} parent=31 // pred_check_branch
        %249 = sbr.rel (%p247) target = $region36
      $region35: #{net3d_forward.26} parent=31 // pred_region
        %s250 = smul.u32 4, %s19
      $region36: #{net3d_forward.26} parent=31 // pred_fallthru
        _
    $region32: #{net3d_forward.26} parent=5 // pred_fallthru
      _
    %p251 = scmp.le.s32.totalorder 2, %s9
    // Predicated region
    $region37: #{net3d_forward.26} parent=5 // pred_check
      %p252 = pneg %p251
    $region38: #{net3d_forward.26} parent=5 // pred_check_branch
      %254 = sbr.rel (%p252) target = $region40
    $region39: #{net3d_forward.26} parent=5 // pred_region
      %s255 = ssub.s32 %s9, 2
      // Predicated region
      $region41: #{net3d_forward.26} parent=39 // pred_check
        %p256 = pneg %p122
      $region42: #{net3d_forward.26} parent=39 // pred_check_branch
        %258 = sbr.rel (%p256) target = $region44
      $region43: #{net3d_forward.26} parent=39 // pred_region
        %s259 = smul.u32 4, %s21
        %p260 = scmp.lt.s32.totalorder %s20, 1
        %s261 = scalar_select %p260, %s20, 1
        %p262 = scmp.lt.s32.totalorder %s259, 3
        %s263 = scalar_select %p262, %s259, 3
        %s264 = smul.addr %s261, 4
        %s265 = sadd.s32 %s263, %s264
        %s266 = smul.addr %s265, 8
        %s267 = scalar_lea.vmem %s3, %s266
      $region44: #{net3d_forward.26} parent=39 // pred_fallthru
        _
    $region40: #{net3d_forward.26} parent=5 // pred_fallthru
      _
  $region6: #{net3d_forward.26} parent=0 // loop_footer
    %s13 = sadd.s32 1, %s9
  $region7: #{net3d_forward.26} parent=0 // loop_footer_branch
    %8 = sbr.rel target = $region3
  $region8: #{net3d_forward.26} parent=0 // loop_exit
    _

// kernel: net3d_forward.27
$region0: #{net3d_forward.27}
  #allocation0 [shape = 'u32[]', space=smem, size = 0x4, offset = 0x4, fixed_abs, tag = 'smem constant byte address 0x4 - core index']
  #allocation1 [shape = 'u32[144,128]{1,0:T(1,128)}', space=vmem, size = 0x12000, scoped, tag = 'internal scratch']
  #allocation2 [shape = 'f32[1,1]{1,0:T(1,128)S(1)}', space=vmem, size = 0x200, scoped, tag = 'scoped memory for net3d_forward.27']
  %s0 = inlined_call_operand.vmem [shape: f32[2,8,512], index: 0, kind: input, shape index: {}]
  %s1 = inlined_call_operand.vmem [shape: f32[128,8], index: 1, kind: input, shape index: {}]
  %s2 = inlined_call_operand.vmem [shape: f32[128,1], index: 2, kind: input, shape index: {}]
  %s3 = inlined_call_operand.vmem [shape: f32[1,128], index: 3, kind: input, shape index: {}]
  %s4 = inlined_call_operand.<no memory space> [shape: f32[1,1], index: 4, kind: input, shape index: {}]
  %s5 = inlined_call_operand.vmem [shape: f32[2,1,512], index: 5, kind: output, shape index: {}]
  %s6 = sld [smem:[#allocation0]]
  $region53: #{net3d_forward.27} parent=0
    _
  %s8 = ssub.s32 1, %s6
  %s9 = scalar_select 0, %s8, %s6
  %v10 = vstv %s4
  %11 = vst [vmem:[#allocation2] sm:$0x1] %v10
  loop: start=0, step=1, limit=4
  $region2: #{net3d_forward.27} parent=0 // loop_pre_header
    _
  $region3: #{net3d_forward.27} parent=0 // loop_header
    %s13 = sphi 0, %s17
    %p14 = scmp.ge.s32.totalorder %s13, 4
    %s20 = sphi 0, %s32
    %s21 = sphi 0, %s28
    %s22 = sphi 0, %s20
    %s23 = sphi 0, %s21
    %s24 = sphi 0, %s22
    %s25 = sphi 0, %s23
    %s37 = sphi 0, %s39
    %s40 = sphi 0, %s37
    %s41 = sphi 0, %s40
    %s57 = sphi 0, %s41
    %s61 = sphi 0, %s61
    %s63 = sphi 0, %s61
    %s64 = sphi 0, %s63
    %s78 = sphi 0, %s64
    %s82 = sphi 0, %s82
    %s84 = sphi 0, %s82
    %s85 = sphi 0, %s84
    %s99 = sphi 0, %s85
    %s103 = sphi 0, %s103
    %s105 = sphi 0, %s103
    %s106 = sphi 0, %s105
    %s120 = sphi 0, %s106
    %s124 = sphi 0, %s124
    %s126 = sphi 0, %s124
    %s127 = sphi 0, %s126
    %s141 = sphi 0, %s127
    %s149 = sphi 0, %s151
    %s152 = sphi 0, %s149
    %s153 = sphi 0, %s152
    %s169 = sphi 0, %s153
  $region4: #{net3d_forward.27} parent=0 // loop_header_branch
    %16 = sbr.rel (%p14) target = $region8
  $region5: #{net3d_forward.27} parent=0 // loop_body
    %s18 = ssub.s32 %s13, 1
    %s19 = ssub.s32 %s13, 2
    %s26 = sadd.s32 1, %s21
    %p27 = scmp.ge.s32.totalorder %s26, 1
    %s28 = scalar_select %p27, 0, %s26
    %s29 = sadd.s32 1, %s20
    %s30 = scalar_select %p27, %s29, %s20
    %p31 = scmp.ge.s32.totalorder %s30, 2
    %s32 = scalar_select %p31, 0, %s30
    %s33 = ssub.s32 %s20, %s32
    %s34 = ssub.s32 %s21, %s28
    %s35 = sor.u32 %s33, %s34
    %p36 = scmp.eq.s32.totalorder %s35, 0
    %s38 = sadd.s32 %s37, 1
    %s39 = scalar_select %p36, %s37, %s38
    %p42 = pneg %p36
    %p43 = scmp.eq.s32.totalorder %s13, 1
    %p44 = por %p42, %p43
    %p45 = scmp.ne.s32.totalorder %s37, %s40
    %p46 = scmp.eq.s32.totalorder %s13, 0
    %p47 = por %p45, %p46
    %p48 = scmp.ne.s32.totalorder %s37, %s40
    %p49 = scmp.eq.s32.totalorder %s18, 1
    %p50 = por %p48, %p49
    %p51 = scmp.ne.s32.totalorder %s40, %s41
    %p52 = scmp.eq.s32.totalorder %s18, 0
    %p53 = por %p51, %p52
    %p54 = scmp.ne.s32.totalorder %s40, %s41
    %p55 = scmp.eq.s32.totalorder %s19, 1
    %p56 = por %p54, %p55
    %p58 = scmp.ne.s32.totalorder %s41, %s57
    %p59 = scmp.eq.s32.totalorder %s19, 0
    %p60 = por %p58, %p59
    %s62 = sadd.s32 %s61, 1
    %p65 = scmp.eq.s32.totalorder %s13, 1
    %p66 = scmp.ne.s32.totalorder %s61, %s63
    %p67 = scmp.eq.s32.totalorder %s13, 0
    %p68 = por %p66, %p67
    %p69 = scmp.ne.s32.totalorder %s61, %s63
    %p70 = scmp.eq.s32.totalorder %s18, 1
    %p71 = por %p69, %p70
    %p72 = scmp.ne.s32.totalorder %s63, %s64
    %p73 = scmp.eq.s32.totalorder %s18, 0
    %p74 = por %p72, %p73
    %p75 = scmp.ne.s32.totalorder %s63, %s64
    %p76 = scmp.eq.s32.totalorder %s19, 1
    %p77 = por %p75, %p76
    %p79 = scmp.ne.s32.totalorder %s64, %s78
    %p80 = scmp.eq.s32.totalorder %s19, 0
    %p81 = por %p79, %p80
    %s83 = sadd.s32 %s82, 1
    %p86 = scmp.eq.s32.totalorder %s13, 1
    %p87 = scmp.ne.s32.totalorder %s82, %s84
    %p88 = scmp.eq.s32.totalorder %s13, 0
    %p89 = por %p87, %p88
    %p90 = scmp.ne.s32.totalorder %s82, %s84
    %p91 = scmp.eq.s32.totalorder %s18, 1
    %p92 = por %p90, %p91
    %p93 = scmp.ne.s32.totalorder %s84, %s85
    %p94 = scmp.eq.s32.totalorder %s18, 0
    %p95 = por %p93, %p94
    %p96 = scmp.ne.s32.totalorder %s84, %s85
    %p97 = scmp.eq.s32.totalorder %s19, 1
    %p98 = por %p96, %p97
    %p100 = scmp.ne.s32.totalorder %s85, %s99
    %p101 = scmp.eq.s32.totalorder %s19, 0
    %p102 = por %p100, %p101
    %s104 = sadd.s32 %s103, 1
    %p107 = scmp.eq.s32.totalorder %s13, 1
    %p108 = scmp.ne.s32.totalorder %s103, %s105
    %p109 = scmp.eq.s32.totalorder %s13, 0
    %p110 = por %p108, %p109
    %p111 = scmp.ne.s32.totalorder %s103, %s105
    %p112 = scmp.eq.s32.totalorder %s18, 1
    %p113 = por %p111, %p112
    %p114 = scmp.ne.s32.totalorder %s105, %s106
    %p115 = scmp.eq.s32.totalorder %s18, 0
    %p116 = por %p114, %p115
    %p117 = scmp.ne.s32.totalorder %s105, %s106
    %p118 = scmp.eq.s32.totalorder %s19, 1
    %p119 = por %p117, %p118
    %p121 = scmp.ne.s32.totalorder %s106, %s120
    %p122 = scmp.eq.s32.totalorder %s19, 0
    %p123 = por %p121, %p122
    %s125 = sadd.s32 %s124, 1
    %p128 = scmp.eq.s32.totalorder %s13, 1
    %p129 = scmp.ne.s32.totalorder %s124, %s126
    %p130 = scmp.eq.s32.totalorder %s13, 0
    %p131 = por %p129, %p130
    %p132 = scmp.ne.s32.totalorder %s124, %s126
    %p133 = scmp.eq.s32.totalorder %s18, 1
    %p134 = por %p132, %p133
    %p135 = scmp.ne.s32.totalorder %s126, %s127
    %p136 = scmp.eq.s32.totalorder %s18, 0
    %p137 = por %p135, %p136
    %p138 = scmp.ne.s32.totalorder %s126, %s127
    %p139 = scmp.eq.s32.totalorder %s19, 1
    %p140 = por %p138, %p139
    %p142 = scmp.ne.s32.totalorder %s127, %s141
    %p143 = scmp.eq.s32.totalorder %s19, 0
    %p144 = por %p142, %p143
    %s145 = ssub.s32 %s20, %s32
    %s146 = ssub.s32 %s21, %s28
    %s147 = sor.u32 %s145, %s146
    %p148 = scmp.eq.s32.totalorder %s147, 0
    %s150 = sadd.s32 %s149, 1
    %s151 = scalar_select %p148, %s149, %s150
    %p154 = pneg %p148
    %p155 = scmp.eq.s32.totalorder %s13, 1
    %p156 = por %p154, %p155
    %p157 = scmp.ne.s32.totalorder %s149, %s152
    %p158 = scmp.eq.s32.totalorder %s13, 0
    %p159 = por %p157, %p158
    %p160 = scmp.ne.s32.totalorder %s149, %s152
    %p161 = scmp.eq.s32.totalorder %s18, 1
    %p162 = por %p160, %p161
    %p163 = scmp.ne.s32.totalorder %s152, %s153
    %p164 = scmp.eq.s32.totalorder %s18, 0
    %p165 = por %p163, %p164
    %p166 = scmp.ne.s32.totalorder %s152, %s153
    %p167 = scmp.eq.s32.totalorder %s19, 1
    %p168 = por %p166, %p167
    %p170 = scmp.ne.s32.totalorder %s153, %s169
    %p171 = scmp.eq.s32.totalorder %s19, 0
    %p172 = por %p170, %p171
    %p173 = scmp.le.s32.totalorder 1, %s13
    %p174 = scmp.lt.s32.totalorder %s13, 3
    %p175 = pnand %p173, %p174
    %p176 = pneg %p175
    // Predicated region
    $region9: #{net3d_forward.27} parent=5 // pred_check
      _
    $region10: #{net3d_forward.27} parent=5 // pred_check_branch
      %178 = sbr.rel (%p175) target = $region12
    $region11: #{net3d_forward.27} parent=5 // pred_region
      %s179 = ssub.s32 %s13, 1
      // Predicated region
      $region13: #{net3d_forward.27} parent=11 // pred_check
        %p180 = pneg %p74
      $region14: #{net3d_forward.27} parent=11 // pred_check_branch
        %182 = sbr.rel (%p180) target = $region16
      $region15: #{net3d_forward.27} parent=11 // pred_region
        _
      $region16: #{net3d_forward.27} parent=11 // pred_fallthru
        _
      // Predicated region
      $region17: #{net3d_forward.27} parent=11 // pred_check
        %p183 = pneg %p95
      $region18: #{net3d_forward.27} parent=11 // pred_check_branch
        %185 = sbr.rel (%p183) target = $region20
      $region19: #{net3d_forward.27} parent=11 // pred_region
        _
      $region20: #{net3d_forward.27} parent=11 // pred_fallthru
        _
      // Predicated region
      $region21: #{net3d_forward.27} parent=11 // pred_check
        %p186 = pneg %p116
      $region22: #{net3d_forward.27} parent=11 // pred_check_branch
        %188 = sbr.rel (%p186) target = $region24
      $region23: #{net3d_forward.27} parent=11 // pred_region
        _
      $region24: #{net3d_forward.27} parent=11 // pred_fallthru
        _
      // Predicated region
      $region25: #{net3d_forward.27} parent=11 // pred_check
        %p189 = pneg %p137
      $region26: #{net3d_forward.27} parent=11 // pred_check_branch
        %191 = sbr.rel (%p189) target = $region28
      $region27: #{net3d_forward.27} parent=11 // pred_region
        _
      $region28: #{net3d_forward.27} parent=11 // pred_fallthru
        _
    $region12: #{net3d_forward.27} parent=5 // pred_fallthru
      _
    %p192 = scmp.lt.s32.totalorder %s13, 2
    // Predicated region
    $region29: #{net3d_forward.27} parent=5 // pred_check
      %p193 = pneg %p192
    $region30: #{net3d_forward.27} parent=5 // pred_check_branch
      %195 = sbr.rel (%p193) target = $region32
    $region31: #{net3d_forward.27} parent=5 // pred_region
      // Predicated region
      $region33: #{net3d_forward.27} parent=31 // pred_check
        %p196 = pneg %p47
      $region34: #{net3d_forward.27} parent=31 // pred_check_branch
        %198 = sbr.rel (%p196) target = $region36
      $region35: #{net3d_forward.27} parent=31 // pred_region
        %s199 = smul.u32 4, %s21
        %p200 = scmp.lt.s32.totalorder %s20, 1
        %s201 = scalar_select %p200, %s20, 1
        %p202 = scmp.lt.s32.totalorder %s199, 3
        %s203 = scalar_select %p202, %s199, 3
        %s204 = smul.addr %s201, 4
        %s205 = sadd.s32 %s203, %s204
        %s206 = smul.addr %s205, 8
        %s207 = scalar_lea.vmem %s0, %s206
        %s208 = smul.u32 4, %s21
      $region36: #{net3d_forward.27} parent=31 // pred_fallthru
        _
    $region32: #{net3d_forward.27} parent=5 // pred_fallthru
      _
    %p209 = scmp.le.s32.totalorder 1, %s13
    %p210 = scmp.lt.s32.totalorder %s13, 3
    %p211 = pnand %p209, %p210
    %p212 = pneg %p211
    // Predicated region
    $region37: #{net3d_forward.27} parent=5 // pred_check
      _
    $region38: #{net3d_forward.27} parent=5 // pred_check_branch
      %214 = sbr.rel (%p211) target = $region40
    $region39: #{net3d_forward.27} parent=5 // pred_region
      %s215 = ssub.s32 %s13, 1
      %s216 = smul.u32 4, %s23
      %p217 = scmp.lt.s32.totalorder %s22, 1
      %s218 = scalar_select %p217, %s22, 1
      %p219 = scmp.lt.s32.totalorder %s216, 3
      %s220 = scalar_select %p219, %s216, 3
      %s221 = smul.addr %s218, 4
      %s222 = sadd.s32 %s220, %s221
      %s223 = smul.addr %s222, 8
      %s224 = scalar_lea.vmem %s0, %s223
      %p225 = pneg %p53
      %p226 = pneg %p50
      %p227 = pneg %p74
      %p228 = pneg %p71
      %p229 = pneg %p95
      %p230 = pneg %p92
      %p231 = pneg %p116
      %p232 = pneg %p113
      %p233 = pneg %p137
      %p234 = pneg %p134
      %p235 = pneg %p165
      %p236 = pneg %p162
      %s237 = smul.u32 4, %s23
      %p238 = scmp.lt.s32.totalorder %s22, 1
      %s239 = scalar_select %p238, %s22, 1
      %p240 = scmp.lt.s32.totalorder %s237, 3
      %s241 = scalar_select %p240, %s237, 3
      %s242 = smul.addr %s239, 4
      %s243 = sadd.s32 %s241, %s242
      %s244 = scalar_lea.vmem %s5, %s243
      %s245 = smul.u32 4, %s23
      %p246 = scmp.lt.s32.totalorder %s22, 1
      %s247 = scalar_select %p246, %s22, 1
      %p248 = scmp.lt.s32.totalorder %s245, 3
      %s249 = scalar_select %p248, %s245, 3
      %s250 = smul.addr %s247, 4
      %s251 = sadd.s32 %s249, %s250
      %s252 = smul.addr %s251, 8
      %s253 = scalar_lea.vmem %s0, %s252
      %s254 = smul.u32 4, %s23
      %s255 = smul.u32 4, %s23
      %p256 = scmp.lt.s32.totalorder %s22, 1
      %s257 = scalar_select %p256, %s22, 1
      %p258 = scmp.lt.s32.totalorder %s255, 3
      %s259 = scalar_select %p258, %s255, 3
      %s260 = smul.addr %s257, 4
      %s261 = sadd.s32 %s259, %s260
      %s262 = scalar_lea.vmem %s5, %s261
      %s263 = smul.u32 4, %s23
      %v264 = vld [vmem:[%s1] sm:$0xff]
      %v265 = vld [vmem:[%s1 + $0x8] sm:$0xff]
      %v266 = vld [vmem:[%s1 + $0x10] sm:$0xff]
      %v267 = vld [vmem:[%s1 + $0x18] sm:$0xff]
      %v268 = vld [vmem:[%s1 + $0x20] sm:$0xff]
      %v269 = vld [vmem:[%s1 + $0x28] sm:$0xff]
      %v270 = vld [vmem:[%s1 + $0x30] sm:$0xff]
      %v271 = vld [vmem:[%s1 + $0x38] sm:$0xff]
      %v272 = vld [vmem:[%s1 + $0x40] sm:$0xff]
      %v273 = vld [vmem:[%s1 + $0x48] sm:$0xff]
      %v274 = vld [vmem:[%s1 + $0x50] sm:$0xff]
      %v275 = vld [vmem:[%s1 + $0x58] sm:$0xff]
      %v276 = vld [vmem:[%s1 + $0x60] sm:$0xff]
      %v277 = vld [vmem:[%s1 + $0x68] sm:$0xff]
      %v278 = vld [vmem:[%s1 + $0x70] sm:$0xff]
      %v279 = vld [vmem:[%s1 + $0x78] sm:$0xff]
      %v280 = vld [vmem:[%s253] sm:$0xff]
      %v281 = vld [vmem:[%s253 + $0x8] sm:$0xff]
      %v282 = vld [vmem:[%s253 + $0x10] sm:$0xff]
      %v283 = vld [vmem:[%s253 + $0x18] sm:$0xff]
      %v284 = vld [vmem:[%s2] sm:$0xff]
      %v285 = vld [vmem:[%s2 + $0x8] sm:$0xff]
      %v286 = vld [vmem:[%s2 + $0x10] sm:$0xff]
      %v287 = vld [vmem:[%s2 + $0x18] sm:$0xff]
      %v288 = vld [vmem:[%s2 + $0x20] sm:$0xff]
      %v289 = vld [vmem:[%s2 + $0x28] sm:$0xff]
      %v290 = vld [vmem:[%s2 + $0x30] sm:$0xff]
      %v291 = vld [vmem:[%s2 + $0x38] sm:$0xff]
      %v292 = vld [vmem:[%s2 + $0x40] sm:$0xff]
      %v293 = vld [vmem:[%s2 + $0x48] sm:$0xff]
      %v294 = vld [vmem:[%s2 + $0x50] sm:$0xff]
      %v295 = vld [vmem:[%s2 + $0x58] sm:$0xff]
      %v296 = vld [vmem:[%s2 + $0x60] sm:$0xff]
      %v297 = vld [vmem:[%s2 + $0x68] sm:$0xff]
      %v298 = vld [vmem:[%s2 + $0x70] sm:$0xff]
      %v299 = vld [vmem:[%s2 + $0x78] sm:$0xff]
      %301 = vset.pattern.permute.xlu0 0
      %302 = vperm.xlu0 %301, %v284
      %v303 = vpop.permute.xlu0 %302
      %306 = vset.pattern.permute.xlu0 0
      %307 = vperm.xlu0 %306, %v285
      %v308 = vpop.permute.xlu0 %307
      %311 = vset.pattern.permute.xlu0 0
      %312 = vperm.xlu0 %311, %v286
      %v313 = vpop.permute.xlu0 %312
      %316 = vset.pattern.permute.xlu0 0
      %317 = vperm.xlu0 %316, %v287
      %v318 = vpop.permute.xlu0 %317
      %321 = vset.pattern.permute.xlu0 0
      %322 = vperm.xlu0 %321, %v288
      %v323 = vpop.permute.xlu0 %322
      %326 = vset.pattern.permute.xlu0 0
      %327 = vperm.xlu0 %326, %v289
      %v328 = vpop.permute.xlu0 %327
      %331 = vset.pattern.permute.xlu0 0
      %332 = vperm.xlu0 %331, %v290
      %v333 = vpop.permute.xlu0 %332
      %336 = vset.pattern.permute.xlu0 0
      %337 = vperm.xlu0 %336, %v291
      %v338 = vpop.permute.xlu0 %337
      %341 = vset.pattern.permute.xlu0 0
      %342 = vperm.xlu0 %341, %v292
      %v343 = vpop.permute.xlu0 %342
      %346 = vset.pattern.permute.xlu0 0
      %347 = vperm.xlu0 %346, %v293
      %v348 = vpop.permute.xlu0 %347
      %351 = vset.pattern.permute.xlu0 0
      %352 = vperm.xlu0 %351, %v294
      %v353 = vpop.permute.xlu0 %352
      %356 = vset.pattern.permute.xlu0 0
      %357 = vperm.xlu0 %356, %v295
      %v358 = vpop.permute.xlu0 %357
      %361 = vset.pattern.permute.xlu0 0
      %362 = vperm.xlu0 %361, %v296
      %v363 = vpop.permute.xlu0 %362
      %366 = vset.pattern.permute.xlu0 0
      %367 = vperm.xlu0 %366, %v297
      %v368 = vpop.permute.xlu0 %367
      %371 = vset.pattern.permute.xlu0 0
      %372 = vperm.xlu0 %371, %v298
      %v373 = vpop.permute.xlu0 %372
      %376 = vset.pattern.permute.xlu0 0
      %377 = vperm.xlu0 %376, %v299
      %v378 = vpop.permute.xlu0 %377
      %vm380 = vcmask 64512
      %v382 = vsel %vm380, %v264, 0
      %v385 = vsel %vm380, %v265, 0
      %v388 = vsel %vm380, %v266, 0
      %v391 = vsel %vm380, %v267, 0
      %v394 = vsel %vm380, %v268, 0
      %v397 = vsel %vm380, %v269, 0
      %v400 = vsel %vm380, %v270, 0
      %v403 = vsel %vm380, %v271, 0
      %v406 = vsel %vm380, %v272, 0
      %v409 = vsel %vm380, %v273, 0
      %v412 = vsel %vm380, %v274, 0
      %v415 = vsel %vm380, %v275, 0
      %v418 = vsel %vm380, %v276, 0
      %v421 = vsel %vm380, %v277, 0
      %v424 = vsel %vm380, %v278, 0
      %v427 = vsel %vm380, %v279, 0
      %429 = vmatprep.subr.mxu0 0.0
      %430 = vmatpush1.msra.mxu0 0.0
      %431 = vmatprep.subr.mxu0 0.0
      %432 = vmatpush1.msra.mxu0 0.0
      %433 = vmatprep.subr.mxu0 0.0
      %434 = vmatpush1.msra.mxu0 0.0
      %435 = vmatprep.subr.mxu0 0.0
      %436 = vmatpush1.msra.mxu0 0.0
      %437 = vmatprep.subr.mxu0 0.0
      %438 = vmatpush1.msra.mxu0 0.0
      %439 = vmatprep.subr.mxu0 0.0
      %440 = vmatpush1.msra.mxu0 0.0
      %441 = vmatprep.subr.mxu0 0.0
      %442 = vmatpush1.msra.mxu0 0.0
      %443 = vmatprep.subr.mxu0 0.0
      %444 = vmatpush1.msra.mxu0 0.0
      %445 = vmatprep.subr.mxu0 0.0
      %446 = vmatpush1.msra.mxu0 0.0
      %447 = vmatprep.subr.mxu0 0.0
      %448 = vmatpush1.msra.mxu0 0.0
      %449 = vmatprep.subr.mxu0 0.0
      %450 = vmatpush1.msra.mxu0 0.0
      %451 = vmatprep.subr.mxu0 0.0
      %452 = vmatpush1.msra.mxu0 0.0
      %453 = vmatprep.subr.mxu0 0.0
      %454 = vmatpush1.msra.mxu0 0.0
      %455 = vmatprep.subr.mxu0 0.0
      %456 = vmatpush1.msra.mxu0 0.0
      %457 = vmatprep.subr.mxu0 0.0
      %458 = vmatpush1.msra.mxu0 0.0
      %459 = vmatprep.subr.mxu0 %v281
      %460 = vmatpush1.msra.mxu0 %v280
      %461 = vmatprep.subr.mxu0 0.0
      %462 = vmatpush2.msra.mxu0 0.0
      %463 = vmatprep.subr.mxu0 0.0
      %464 = vmatpush2.msra.mxu0 0.0
      %465 = vmatprep.subr.mxu0 0.0
      %466 = vmatpush2.msra.mxu0 0.0
      %467 = vmatprep.subr.mxu0 0.0
      %468 = vmatpush2.msra.mxu0 0.0
      %469 = vmatprep.subr.mxu0 0.0
      %470 = vmatpush2.msra.mxu0 0.0
      %471 = vmatprep.subr.mxu0 0.0
      %472 = vmatpush2.msra.mxu0 0.0
      %473 = vmatprep.subr.mxu0 0.0
      %474 = vmatpush2.msra.mxu0 0.0
      %475 = vmatprep.subr.mxu0 0.0
      %476 = vmatpush2.msra.mxu0 0.0
      %477 = vmatprep.subr.mxu0 0.0
      %478 = vmatpush2.msra.mxu0 0.0
      %479 = vmatprep.subr.mxu0 0.0
      %480 = vmatpush2.msra.mxu0 0.0
      %481 = vmatprep.subr.mxu0 0.0
      %482 = vmatpush2.msra.mxu0 0.0
      %483 = vmatprep.subr.mxu0 0.0
      %484 = vmatpush2.msra.mxu0 0.0
      %485 = vmatprep.subr.mxu0 0.0
      %486 = vmatpush2.msra.mxu0 0.0
      %487 = vmatprep.subr.mxu0 0.0
      %488 = vmatpush2.msra.mxu0 0.0
      %489 = vmatprep.subr.mxu0 0.0
      %490 = vmatpush2.msra.mxu0 0.0
      %491 = vmatprep.subr.mxu0 0.0
      %492 = vmatpush2.msra.mxu0 0.0
      %493 = vmatprep.mubr.f32.mxu0 0.0
      %494 = vmatmul.mubr.f32.gmra.mxu0 %v382
      %v495 = vpop.f32.mrf.mxu0
      %v496 = vadd.f32 %v303, %v495
      %v497 = vpop.f32.mrf.mxu0
      %v498 = vadd.f32 %v303, %v497
      %499 = vmatprep.mubr.f32.mxu0 0.0
      %500 = vmatmul.mubr.f32.gmra.mxu0 %v385
      %v501 = vpop.f32.mrf.mxu0
      %v502 = vadd.f32 %v308, %v501
      %v503 = vpop.f32.mrf.mxu0
      %v504 = vadd.f32 %v308, %v503
      %505 = vmatprep.mubr.f32.mxu0 0.0
      %506 = vmatmul.mubr.f32.gmra.mxu0 %v388
      %v507 = vpop.f32.mrf.mxu0
      %v508 = vadd.f32 %v313, %v507
      %v509 = vpop.f32.mrf.mxu0
      %v510 = vadd.f32 %v313, %v509
      %511 = vmatprep.mubr.f32.mxu0 0.0
      %512 = vmatmul.mubr.f32.gmra.mxu0 %v391
      %v513 = vpop.f32.mrf.mxu0
      %v514 = vadd.f32 %v318, %v513
      %v515 = vpop.f32.mrf.mxu0
      %v516 = vadd.f32 %v318, %v515
      %517 = vmatprep.mubr.f32.mxu0 0.0
      %518 = vmatmul.mubr.f32.gmra.mxu0 %v394
      %v519 = vpop.f32.mrf.mxu0
      %v520 = vadd.f32 %v323, %v519
      %v521 = vpop.f32.mrf.mxu0
      %v522 = vadd.f32 %v323, %v521
      %523 = vmatprep.mubr.f32.mxu0 0.0
      %524 = vmatmul.mubr.f32.gmra.mxu0 %v397
      %v525 = vpop.f32.mrf.mxu0
      %v526 = vadd.f32 %v328, %v525
      %v527 = vpop.f32.mrf.mxu0
      %v528 = vadd.f32 %v328, %v527
      %529 = vmatprep.mubr.f32.mxu0 0.0
      %530 = vmatmul.mubr.f32.gmra.mxu0 %v400
      %v531 = vpop.f32.mrf.mxu0
      %v532 = vadd.f32 %v333, %v531
      %v533 = vpop.f32.mrf.mxu0
      %v534 = vadd.f32 %v333, %v533
      %535 = vmatprep.mubr.f32.mxu0 0.0
      %536 = vmatmul.mubr.f32.gmra.mxu0 %v403
      %v537 = vpop.f32.mrf.mxu0
      %v538 = vadd.f32 %v338, %v537
      %v539 = vpop.f32.mrf.mxu0
      %v540 = vadd.f32 %v338, %v539
      %541 = vmatprep.mubr.f32.mxu0 0.0
      %542 = vmatmul.mubr.f32.gmra.mxu0 %v406
      %v543 = vpop.f32.mrf.mxu0
      %v544 = vadd.f32 %v343, %v543
      %v545 = vpop.f32.mrf.mxu0
      %v546 = vadd.f32 %v343, %v545
      %547 = vmatprep.mubr.f32.mxu0 0.0
      %548 = vmatmul.mubr.f32.gmra.mxu0 %v409
      %v549 = vpop.f32.mrf.mxu0
      %v550 = vadd.f32 %v348, %v549
      %v551 = vpop.f32.mrf.mxu0
      %v552 = vadd.f32 %v348, %v551
      %553 = vmatprep.mubr.f32.mxu0 0.0
      %554 = vmatmul.mubr.f32.gmra.mxu0 %v412
      %v555 = vpop.f32.mrf.mxu0
      %v556 = vadd.f32 %v353, %v555
      %v557 = vpop.f32.mrf.mxu0
      %v558 = vadd.f32 %v353, %v557
      %559 = vmatprep.mubr.f32.mxu0 0.0
      %560 = vmatmul.mubr.f32.gmra.mxu0 %v415
      %v561 = vpop.f32.mrf.mxu0
      %v562 = vadd.f32 %v358, %v561
      %v563 = vpop.f32.mrf.mxu0
      %v564 = vadd.f32 %v358, %v563
      %565 = vmatprep.mubr.f32.mxu0 0.0
      %566 = vmatmul.mubr.f32.gmra.mxu0 %v418
      %v567 = vpop.f32.mrf.mxu0
      %v568 = vadd.f32 %v363, %v567
      %v569 = vpop.f32.mrf.mxu0
      %v570 = vadd.f32 %v363, %v569
      %571 = vmatprep.mubr.f32.mxu0 0.0
      %572 = vmatmul.mubr.f32.gmra.mxu0 %v421
      %v573 = vpop.f32.mrf.mxu0
      %v574 = vadd.f32 %v368, %v573
      %v575 = vpop.f32.mrf.mxu0
      %v576 = vadd.f32 %v368, %v575
      %577 = vmatprep.mubr.f32.mxu0 0.0
      %578 = vmatmul.mubr.f32.gmra.mxu0 %v424
      %v579 = vpop.f32.mrf.mxu0
      %v580 = vadd.f32 %v373, %v579
      %v581 = vpop.f32.mrf.mxu0
      %v582 = vadd.f32 %v373, %v581
      %583 = vmatprep.mubr.f32.mxu0 0.0
      %584 = vmatmul.mubr.f32.gmra.mxu0 %v427
      %v585 = vpop.f32.mrf.mxu0
      %v586 = vadd.f32 %v378, %v585
      %v587 = vpop.f32.mrf.mxu0
      %v588 = vadd.f32 %v378, %v587
      %589 = vdwg.mxu0
      %590 = vmatprep.subr.mxu0 0.0
      %591 = vmatpush1.msra.mxu0 0.0
      %592 = vmatprep.subr.mxu0 0.0
      %593 = vmatpush1.msra.mxu0 0.0
      %594 = vmatprep.subr.mxu0 0.0
      %595 = vmatpush1.msra.mxu0 0.0
      %596 = vmatprep.subr.mxu0 0.0
      %597 = vmatpush1.msra.mxu0 0.0
      %598 = vmatprep.subr.mxu0 0.0
      %599 = vmatpush1.msra.mxu0 0.0
      %600 = vmatprep.subr.mxu0 0.0
      %601 = vmatpush1.msra.mxu0 0.0
      %602 = vmatprep.subr.mxu0 0.0
      %603 = vmatpush1.msra.mxu0 0.0
      %604 = vmatprep.subr.mxu0 0.0
      %605 = vmatpush1.msra.mxu0 0.0
      %606 = vmatprep.subr.mxu0 0.0
      %607 = vmatpush1.msra.mxu0 0.0
      %608 = vmatprep.subr.mxu0 0.0
      %609 = vmatpush1.msra.mxu0 0.0
      %610 = vmatprep.subr.mxu0 0.0
      %611 = vmatpush1.msra.mxu0 0.0
      %612 = vmatprep.subr.mxu0 0.0
      %613 = vmatpush1.msra.mxu0 0.0
      %614 = vmatprep.subr.mxu0 0.0
      %615 = vmatpush1.msra.mxu0 0.0
      %616 = vmatprep.subr.mxu0 0.0
      %617 = vmatpush1.msra.mxu0 0.0
      %618 = vmatprep.subr.mxu0 0.0
      %619 = vmatpush1.msra.mxu0 0.0
      %620 = vmatprep.subr.mxu0 %v283
      %621 = vmatpush1.msra.mxu0 %v282
      %622 = vmatprep.subr.mxu0 0.0
      %623 = vmatpush2.msra.mxu0 0.0
      %624 = vmatprep.subr.mxu0 0.0
      %625 = vmatpush2.msra.mxu0 0.0
      %626 = vmatprep.subr.mxu0 0.0
      %627 = vmatpush2.msra.mxu0 0.0
      %628 = vmatprep.subr.mxu0 0.0
      %629 = vmatpush2.msra.mxu0 0.0
      %630 = vmatprep.subr.mxu0 0.0
      %631 = vmatpush2.msra.mxu0 0.0
      %632 = vmatprep.subr.mxu0 0.0
      %633 = vmatpush2.msra.mxu0 0.0
      %634 = vmatprep.subr.mxu0 0.0
      %635 = vmatpush2.msra.mxu0 0.0
      %636 = vmatprep.subr.mxu0 0.0
      %637 = vmatpush2.msra.mxu0 0.0
      %638 = vmatprep.subr.mxu0 0.0
      %639 = vmatpush2.msra.mxu0 0.0
      %640 = vmatprep.subr.mxu0 0.0
      %641 = vmatpush2.msra.mxu0 0.0
      %642 = vmatprep.subr.mxu0 0.0
      %643 = vmatpush2.msra.mxu0 0.0
      %644 = vmatprep.subr.mxu0 0.0
      %645 = vmatpush2.msra.mxu0 0.0
      %646 = vmatprep.subr.mxu0 0.0
      %647 = vmatpush2.msra.mxu0 0.0
      %648 = vmatprep.subr.mxu0 0.0
      %649 = vmatpush2.msra.mxu0 0.0
      %650 = vmatprep.subr.mxu0 0.0
      %651 = vmatpush2.msra.mxu0 0.0
      %652 = vmatprep.subr.mxu0 0.0
      %653 = vmatpush2.msra.mxu0 0.0
      %654 = vmatprep.mubr.f32.mxu0 0.0
      %655 = vmatmul.mubr.f32.gmra.mxu0 %v382
      %v656 = vpop.f32.mrf.mxu0
      %v657 = vadd.f32 %v303, %v656
      %v658 = vpop.f32.mrf.mxu0
      %v659 = vadd.f32 %v303, %v658
      %660 = vmatprep.mubr.f32.mxu0 0.0
      %661 = vmatmul.mubr.f32.gmra.mxu0 %v385
      %v662 = vpop.f32.mrf.mxu0
      %v663 = vadd.f32 %v308, %v662
      %v664 = vpop.f32.mrf.mxu0
      %v665 = vadd.f32 %v308, %v664
      %666 = vmatprep.mubr.f32.mxu0 0.0
      %667 = vmatmul.mubr.f32.gmra.mxu0 %v388
      %v668 = vpop.f32.mrf.mxu0
      %v669 = vadd.f32 %v313, %v668
      %v670 = vpop.f32.mrf.mxu0
      %v671 = vadd.f32 %v313, %v670
      %672 = vmatprep.mubr.f32.mxu0 0.0
      %673 = vmatmul.mubr.f32.gmra.mxu0 %v391
      %v674 = vpop.f32.mrf.mxu0
      %v675 = vadd.f32 %v318, %v674
      %v676 = vpop.f32.mrf.mxu0
      %v677 = vadd.f32 %v318, %v676
      %678 = vmatprep.mubr.f32.mxu0 0.0
      %679 = vmatmul.mubr.f32.gmra.mxu0 %v394
      %v680 = vpop.f32.mrf.mxu0
      %v681 = vadd.f32 %v323, %v680
      %v682 = vpop.f32.mrf.mxu0
      %v683 = vadd.f32 %v323, %v682
      %684 = vmatprep.mubr.f32.mxu0 0.0
      %685 = vmatmul.mubr.f32.gmra.mxu0 %v397
      %v686 = vpop.f32.mrf.mxu0
      %v687 = vadd.f32 %v328, %v686
      %v688 = vpop.f32.mrf.mxu0
      %v689 = vadd.f32 %v328, %v688
      %690 = vmatprep.mubr.f32.mxu0 0.0
      %691 = vmatmul.mubr.f32.gmra.mxu0 %v400
      %v692 = vpop.f32.mrf.mxu0
      %v693 = vadd.f32 %v333, %v692
      %v694 = vpop.f32.mrf.mxu0
      %v695 = vadd.f32 %v333, %v694
      %696 = vmatprep.mubr.f32.mxu0 0.0
      %697 = vmatmul.mubr.f32.gmra.mxu0 %v403
      %v698 = vpop.f32.mrf.mxu0
      %v699 = vadd.f32 %v338, %v698
      %v700 = vpop.f32.mrf.mxu0
      %v701 = vadd.f32 %v338, %v700
      %702 = vmatprep.mubr.f32.mxu0 0.0
      %703 = vmatmul.mubr.f32.gmra.mxu0 %v406
      %v704 = vpop.f32.mrf.mxu0
      %v705 = vadd.f32 %v343, %v704
      %v706 = vpop.f32.mrf.mxu0
      %v707 = vadd.f32 %v343, %v706
      %708 = vmatprep.mubr.f32.mxu0 0.0
      %709 = vmatmul.mubr.f32.gmra.mxu0 %v409
      %v710 = vpop.f32.mrf.mxu0
      %v711 = vadd.f32 %v348, %v710
      %v712 = vpop.f32.mrf.mxu0
      %v713 = vadd.f32 %v348, %v712
      %714 = vmatprep.mubr.f32.mxu0 0.0
      %715 = vmatmul.mubr.f32.gmra.mxu0 %v412
      %v716 = vpop.f32.mrf.mxu0
      %v717 = vadd.f32 %v353, %v716
      %v718 = vpop.f32.mrf.mxu0
      %v719 = vadd.f32 %v353, %v718
      %720 = vmatprep.mubr.f32.mxu0 0.0
      %721 = vmatmul.mubr.f32.gmra.mxu0 %v415
      %v722 = vpop.f32.mrf.mxu0
      %v723 = vadd.f32 %v358, %v722
      %v724 = vpop.f32.mrf.mxu0
      %v725 = vadd.f32 %v358, %v724
      %726 = vmatprep.mubr.f32.mxu0 0.0
      %727 = vmatmul.mubr.f32.gmra.mxu0 %v418
      %v728 = vpop.f32.mrf.mxu0
      %v729 = vadd.f32 %v363, %v728
      %v730 = vpop.f32.mrf.mxu0
      %v731 = vadd.f32 %v363, %v730
      %732 = vmatprep.mubr.f32.mxu0 0.0
      %733 = vmatmul.mubr.f32.gmra.mxu0 %v421
      %v734 = vpop.f32.mrf.mxu0
      %v735 = vadd.f32 %v368, %v734
      %v736 = vpop.f32.mrf.mxu0
      %v737 = vadd.f32 %v368, %v736
      %738 = vmatprep.mubr.f32.mxu0 0.0
      %739 = vmatmul.mubr.f32.gmra.mxu0 %v424
      %v740 = vpop.f32.mrf.mxu0
      %v741 = vadd.f32 %v373, %v740
      %v742 = vpop.f32.mrf.mxu0
      %v743 = vadd.f32 %v373, %v742
      %744 = vmatprep.mubr.f32.mxu0 0.0
      %745 = vmatmul.mubr.f32.gmra.mxu0 %v427
      %v746 = vpop.f32.mrf.mxu0
      %v747 = vadd.f32 %v378, %v746
      %v748 = vpop.f32.mrf.mxu0
      %v749 = vadd.f32 %v378, %v748
      %750 = vdwg.mxu0
      %v751 = vmax.f32 %v496, 0.0
      %v752 = vmax.f32 %v498, 0.0
      %v753 = vmax.f32 %v657, 0.0
      %v754 = vmax.f32 %v659, 0.0
      %v755 = vmax.f32 %v502, 0.0
      %v756 = vmax.f32 %v504, 0.0
      %v757 = vmax.f32 %v663, 0.0
      %v758 = vmax.f32 %v665, 0.0
      %v759 = vmax.f32 %v508, 0.0
      %v760 = vmax.f32 %v510, 0.0
      %v761 = vmax.f32 %v669, 0.0
      %v762 = vmax.f32 %v671, 0.0
      %v763 = vmax.f32 %v514, 0.0
      %v764 = vmax.f32 %v516, 0.0
      %v765 = vmax.f32 %v675, 0.0
      %v766 = vmax.f32 %v677, 0.0
      %v767 = vmax.f32 %v520, 0.0
      %v768 = vmax.f32 %v522, 0.0
      %v769 = vmax.f32 %v681, 0.0
      %v770 = vmax.f32 %v683, 0.0
      %v771 = vmax.f32 %v526, 0.0
      %v772 = vmax.f32 %v528, 0.0
      %v773 = vmax.f32 %v687, 0.0
      %v774 = vmax.f32 %v689, 0.0
      %v775 = vmax.f32 %v532, 0.0
      %v776 = vmax.f32 %v534, 0.0
      %v777 = vmax.f32 %v693, 0.0
      %v778 = vmax.f32 %v695, 0.0
      %v779 = vmax.f32 %v538, 0.0
      %v780 = vmax.f32 %v540, 0.0
      %v781 = vmax.f32 %v699, 0.0
      %v782 = vmax.f32 %v701, 0.0
      %v783 = vmax.f32 %v544, 0.0
      %v784 = vmax.f32 %v546, 0.0
      %v785 = vmax.f32 %v705, 0.0
      %v786 = vmax.f32 %v707, 0.0
      %v787 = vmax.f32 %v550, 0.0
      %v788 = vmax.f32 %v552, 0.0
      %v789 = vmax.f32 %v711, 0.0
      %v790 = vmax.f32 %v713, 0.0
      %v791 = vmax.f32 %v556, 0.0
      %v792 = vmax.f32 %v558, 0.0
      %v793 = vmax.f32 %v717, 0.0
      %v794 = vmax.f32 %v719, 0.0
      %v795 = vmax.f32 %v562, 0.0
      %v796 = vmax.f32 %v564, 0.0
      %v797 = vmax.f32 %v723, 0.0
      %v798 = vmax.f32 %v725, 0.0
      %v799 = vmax.f32 %v568, 0.0
      %v800 = vmax.f32 %v570, 0.0
      %v801 = vmax.f32 %v729, 0.0
      %v802 = vmax.f32 %v731, 0.0
      %v803 = vmax.f32 %v574, 0.0
      %v804 = vmax.f32 %v576, 0.0
      %v805 = vmax.f32 %v735, 0.0
      %v806 = vmax.f32 %v737, 0.0
      %v807 = vmax.f32 %v580, 0.0
      %v808 = vmax.f32 %v582, 0.0
      %v809 = vmax.f32 %v741, 0.0
      %v810 = vmax.f32 %v743, 0.0
      %v811 = vmax.f32 %v586, 0.0
      %v812 = vmax.f32 %v588, 0.0
      %v813 = vmax.f32 %v747, 0.0
      %v814 = vmax.f32 %v749, 0.0
      %v815 = vld [vmem:[%s3] sm:$0x1]
      %v816 = vld [vmem:[#allocation2] sm:$0x1]
      %818 = vset.pattern.permute.xlu0 0
      %819 = vperm.xlu0 %818, %v816
      %v820 = vpop.permute.xlu0 %819
      %v822 = vlaneseq
      %v823 = vshrl.u32 %v822, 7
      %v824 = vsub.s32 0, %v823
      %v825 = vrot.slane %v820, %v824
      %826 = vmatprep.subr.mxu0 %v812
      %827 = vmatpush1.msra.mxu0 %v811
      %828 = vmatprep.subr.mxu0 %v808
      %829 = vmatpush1.msra.mxu0 %v807
      %830 = vmatprep.subr.mxu0 %v804
      %831 = vmatpush1.msra.mxu0 %v803
      %832 = vmatprep.subr.mxu0 %v800
      %833 = vmatpush1.msra.mxu0 %v799
      %834 = vmatprep.subr.mxu0 %v796
      %835 = vmatpush1.msra.mxu0 %v795
      %836 = vmatprep.subr.mxu0 %v792
      %837 = vmatpush1.msra.mxu0 %v791
      %838 = vmatprep.subr.mxu0 %v788
      %839 = vmatpush1.msra.mxu0 %v787
      %840 = vmatprep.subr.mxu0 %v784
      %841 = vmatpush1.msra.mxu0 %v783
      %842 = vmatprep.subr.mxu0 %v780
      %843 = vmatpush1.msra.mxu0 %v779
      %844 = vmatprep.subr.mxu0 %v776
      %845 = vmatpush1.msra.mxu0 %v775
      %846 = vmatprep.subr.mxu0 %v772
      %847 = vmatpush1.msra.mxu0 %v771
      %848 = vmatprep.subr.mxu0 %v768
      %849 = vmatpush1.msra.mxu0 %v767
      %850 = vmatprep.subr.mxu0 %v764
      %851 = vmatpush1.msra.mxu0 %v763
      %852 = vmatprep.subr.mxu0 %v760
      %853 = vmatpush1.msra.mxu0 %v759
      %854 = vmatprep.subr.mxu0 %v756
      %855 = vmatpush1.msra.mxu0 %v755
      %856 = vmatprep.subr.mxu0 %v752
      %857 = vmatpush1.msra.mxu0 %v751
      %858 = vmatprep.subr.mxu0 0.0
      %859 = vmatpush2.msra.mxu0 0.0
      %860 = vmatprep.subr.mxu0 0.0
      %861 = vmatpush2.msra.mxu0 0.0
      %862 = vmatprep.subr.mxu0 0.0
      %863 = vmatpush2.msra.mxu0 0.0
      %864 = vmatprep.subr.mxu0 0.0
      %865 = vmatpush2.msra.mxu0 0.0
      %866 = vmatprep.subr.mxu0 0.0
      %867 = vmatpush2.msra.mxu0 0.0
      %868 = vmatprep.subr.mxu0 0.0
      %869 = vmatpush2.msra.mxu0 0.0
      %870 = vmatprep.subr.mxu0 0.0
      %871 = vmatpush2.msra.mxu0 0.0
      %872 = vmatprep.subr.mxu0 0.0
      %873 = vmatpush2.msra.mxu0 0.0
      %874 = vmatprep.subr.mxu0 0.0
      %875 = vmatpush2.msra.mxu0 0.0
      %876 = vmatprep.subr.mxu0 0.0
      %877 = vmatpush2.msra.mxu0 0.0
      %878 = vmatprep.subr.mxu0 0.0
      %879 = vmatpush2.msra.mxu0 0.0
      %880 = vmatprep.subr.mxu0 0.0
      %881 = vmatpush2.msra.mxu0 0.0
      %882 = vmatprep.subr.mxu0 0.0
      %883 = vmatpush2.msra.mxu0 0.0
      %884 = vmatprep.subr.mxu0 0.0
      %885 = vmatpush2.msra.mxu0 0.0
      %886 = vmatprep.subr.mxu0 0.0
      %887 = vmatpush2.msra.mxu0 0.0
      %888 = vmatprep.subr.mxu0 0.0
      %889 = vmatpush2.msra.mxu0 0.0
      %890 = vmatprep.mubr.f32.mxu0 0.0
      %891 = vmatmul.mubr.f32.gmra.mxu0 %v815
      %v892 = vpop.f32.mrf.mxu0
      %v893 = vadd.f32 %v825, %v892
      %v894 = vpop.f32.mrf.mxu0
      %v895 = vadd.f32 %v825, %v894
      %896 = vdwg.mxu0
      %897 = vmatprep.subr.mxu0 %v814
      %898 = vmatpush1.msra.mxu0 %v813
      %899 = vmatprep.subr.mxu0 %v810
      %900 = vmatpush1.msra.mxu0 %v809
      %901 = vmatprep.subr.mxu0 %v806
      %902 = vmatpush1.msra.mxu0 %v805
      %903 = vmatprep.subr.mxu0 %v802
      %904 = vmatpush1.msra.mxu0 %v801
      %905 = vmatprep.subr.mxu0 %v798
      %906 = vmatpush1.msra.mxu0 %v797
      %907 = vmatprep.subr.mxu0 %v794
      %908 = vmatpush1.msra.mxu0 %v793
      %909 = vmatprep.subr.mxu0 %v790
      %910 = vmatpush1.msra.mxu0 %v789
      %911 = vmatprep.subr.mxu0 %v786
      %912 = vmatpush1.msra.mxu0 %v785
      %913 = vmatprep.subr.mxu0 %v782
      %914 = vmatpush1.msra.mxu0 %v781
      %915 = vmatprep.subr.mxu0 %v778
      %916 = vmatpush1.msra.mxu0 %v777
      %917 = vmatprep.subr.mxu0 %v774
      %918 = vmatpush1.msra.mxu0 %v773
      %919 = vmatprep.subr.mxu0 %v770
      %920 = vmatpush1.msra.mxu0 %v769
      %921 = vmatprep.subr.mxu0 %v766
      %922 = vmatpush1.msra.mxu0 %v765
      %923 = vmatprep.subr.mxu0 %v762
      %924 = vmatpush1.msra.mxu0 %v761
      %925 = vmatprep.subr.mxu0 %v758
      %926 = vmatpush1.msra.mxu0 %v757
      %927 = vmatprep.subr.mxu0 %v754
      %928 = vmatpush1.msra.mxu0 %v753
      %929 = vmatprep.subr.mxu0 0.0
      %930 = vmatpush2.msra.mxu0 0.0
      %931 = vmatprep.subr.mxu0 0.0
      %932 = vmatpush2.msra.mxu0 0.0
      %933 = vmatprep.subr.mxu0 0.0
      %934 = vmatpush2.msra.mxu0 0.0
      %935 = vmatprep.subr.mxu0 0.0
      %936 = vmatpush2.msra.mxu0 0.0
      %937 = vmatprep.subr.mxu0 0.0
      %938 = vmatpush2.msra.mxu0 0.0
      %939 = vmatprep.subr.mxu0 0.0
      %940 = vmatpush2.msra.mxu0 0.0
      %941 = vmatprep.subr.mxu0 0.0
      %942 = vmatpush2.msra.mxu0 0.0
      %943 = vmatprep.subr.mxu0 0.0
      %944 = vmatpush2.msra.mxu0 0.0
      %945 = vmatprep.subr.mxu0 0.0
      %946 = vmatpush2.msra.mxu0 0.0
      %947 = vmatprep.subr.mxu0 0.0
      %948 = vmatpush2.msra.mxu0 0.0
      %949 = vmatprep.subr.mxu0 0.0
      %950 = vmatpush2.msra.mxu0 0.0
      %951 = vmatprep.subr.mxu0 0.0
      %952 = vmatpush2.msra.mxu0 0.0
      %953 = vmatprep.subr.mxu0 0.0
      %954 = vmatpush2.msra.mxu0 0.0
      %955 = vmatprep.subr.mxu0 0.0
      %956 = vmatpush2.msra.mxu0 0.0
      %957 = vmatprep.subr.mxu0 0.0
      %958 = vmatpush2.msra.mxu0 0.0
      %959 = vmatprep.subr.mxu0 0.0
      %960 = vmatpush2.msra.mxu0 0.0
      %961 = vmatprep.mubr.f32.mxu0 0.0
      %962 = vmatmul.mubr.f32.gmra.mxu0 %v815
      %v963 = vpop.f32.mrf.mxu0
      %v964 = vadd.f32 %v825, %v963
      %v965 = vpop.f32.mrf.mxu0
      %v966 = vadd.f32 %v825, %v965
      %967 = vdwg.mxu0
      %v972 = vcombine.low %v893, %v895
      %v973 = vcombine.low %v964, %v966
      %v975 = vunpack.c.l.s4 1966171168
      %v976 = vunpack.c.0.s8 %v975
      %v977 = vlaneseq
      %v978 = vshrl.u32 %v977, 7
      %v979 = vsub.s32 %v976, %v978
      %v980 = vrot.slane %v972, %v979
      %v982 = vunpack.c.l.s4 1966171168
      %v983 = vunpack.c.0.s8 %v982
      %v984 = vlaneseq
      %v985 = vshrl.u32 %v984, 7
      %v986 = vsub.s32 %v983, %v985
      %v987 = vrot.slane %v973, %v986
      %v988 = vcombine.low %v980, %v987
      %v990 = vunpack.c.l.s4 1966171168
      %v991 = vunpack.c.0.s8 %v990
      %v992 = vlaneseq
      %v993 = vshrl.u32 %v992, 7
      %v994 = vsub.s32 %v991, %v993
      %v995 = vrot.slane %v988, %v994
      %v997 = vlaneseq
      %vm998 = vcmp.ge.s32.totalorder %v997, 0
      %vm999 = vcmp.lt.s32.totalorder %v997, 512
      %vm1000 = vmand %vm998, %vm999
      %1001 = vst.msk [vmem:[%s262] sm:$0xf] %vm1000, %v995
      %s1002 = smul.u32 4, %s23
      %p1003 = scmp.lt.s32.totalorder %s22, 1
      %s1004 = scalar_select %p1003, %s22, 1
      %p1005 = scmp.lt.s32.totalorder %s1002, 3
      %s1006 = scalar_select %p1005, %s1002, 3
      %s1007 = smul.addr %s1004, 4
      %s1008 = sadd.s32 %s1006, %s1007
      %s1009 = scalar_lea.vmem %s5, %s1008
      // Predicated region
      $region41: #{net3d_forward.27} parent=39 // pred_check
        %p1010 = pneg %p162
      $region42: #{net3d_forward.27} parent=39 // pred_check_branch
        %1012 = sbr.rel (%p1010) target = $region44
      $region43: #{net3d_forward.27} parent=39 // pred_region
        %s1013 = smul.u32 4, %s23
      $region44: #{net3d_forward.27} parent=39 // pred_fallthru
        _
    $region40: #{net3d_forward.27} parent=5 // pred_fallthru
      _
    %p1014 = scmp.le.s32.totalorder 2, %s13
    // Predicated region
    $region45: #{net3d_forward.27} parent=5 // pred_check
      %p1015 = pneg %p1014
    $region46: #{net3d_forward.27} parent=5 // pred_check_branch
      %1017 = sbr.rel (%p1015) target = $region48
    $region47: #{net3d_forward.27} parent=5 // pred_region
      %s1018 = ssub.s32 %s13, 2
      // Predicated region
      $region49: #{net3d_forward.27} parent=47 // pred_check
        %p1019 = pneg %p168
      $region50: #{net3d_forward.27} parent=47 // pred_check_branch
        %1021 = sbr.rel (%p1019) target = $region52
      $region51: #{net3d_forward.27} parent=47 // pred_region
        %s1022 = smul.u32 4, %s25
        %p1023 = scmp.lt.s32.totalorder %s24, 1
        %s1024 = scalar_select %p1023, %s24, 1
        %p1025 = scmp.lt.s32.totalorder %s1022, 3
        %s1026 = scalar_select %p1025, %s1022, 3
        %s1027 = smul.addr %s1024, 4
        %s1028 = sadd.s32 %s1026, %s1027
        %s1029 = scalar_lea.vmem %s5, %s1028
      $region52: #{net3d_forward.27} parent=47 // pred_fallthru
        _
    $region48: #{net3d_forward.27} parent=5 // pred_fallthru
      _
  $region6: #{net3d_forward.27} parent=0 // loop_footer
    %s17 = sadd.s32 1, %s13
  $region7: #{net3d_forward.27} parent=0 // loop_footer_branch
    %12 = sbr.rel target = $region3
  $region8: #{net3d_forward.27} parent=0 // loop_exit
    _

</llo_original>
